<compile_context>
chip_gen: v7x
topology: tpu7x:2x2x1
jax: 0.10.0
libtpu: 0.0.40
codegen_flags: <defaults>
</compile_context>

<pallas_src>
import functools
import math

import jax
import jax.numpy as jnp
from jax import lax
from jax.experimental import pallas as pl
from jax.experimental.pallas import tpu as pltpu


def _round_up(x, m):
    return ((x + m - 1) // m) * m


def _default_n_splits():
    """2 splits only on 2-TensorCore chips (v7x); 1 elsewhere (v5e/v6e are 1-TC,
    where a 'parallel' outer axis is just a serial loop with a duplicated K|V
    projection)."""
    try:
        kind = jax.devices()[0].device_kind.lower()
    except Exception:
        return 1
    return 2 if ("v7" in kind or "tpu7" in kind) else 1


def _attention_fusion_kernel(drug_ref, prot_ref,
                             wq_ref, bq_ref,
                             wkv_ref, bkv_ref,
                             out_ref, kv_ref,
                             *, d_pad, nk, nk_pad, compute_dtype):
    # --- fused K|V projection: computed once per outer (parallel) grid index,
    #     kept resident in VMEM scratch across the inner query-tile loop. -----
    @pl.when(pl.program_id(1) == 0)
    def _():
        kv = jnp.dot(prot_ref[...], wkv_ref[...],
                     preferred_element_type=jnp.float32) + bkv_ref[...]
        kv_ref[...] = kv.astype(kv_ref.dtype)

    # Q projection; the 1/sqrt(D) scale is already folded into wq/bq.
    q = jnp.dot(drug_ref[...], wq_ref[...],
                preferred_element_type=jnp.float32) + bq_ref[...]
    q = q.astype(compute_dtype)

    k = kv_ref[:, :d_pad]          # (nk_pad, D) static lane-aligned slice
    v = kv_ref[:, d_pad:]          # (nk_pad, D)

    # scores = Q K^T, contraction on last dims (no materialized transpose).
    scores = lax.dot_general(q, k, (((1,), (1,)), ((), ())),
                             preferred_element_type=jnp.float32)

    # Padded key rows carry only the bias (K=bk, V=bv); mask them out of the
    # softmax with a large negative additive bias (static branch, cheap row).
    if nk_pad != nk:
        col = lax.broadcasted_iota(jnp.int32, (1, nk_pad), 1)
        scores = scores + jnp.where(col < nk,
                                    jnp.float32(0.0), jnp.float32(-1e30))

    # Numerically stable softmax along the key axis; denominator applied after
    # attn @ V (on the (tq, D) output) instead of rescaling the (tq, nk) tile.
    m = jnp.max(scores, axis=-1, keepdims=True)
    p = jnp.exp(scores - m)
    denom = jnp.sum(p, axis=-1, keepdims=True)

    out = jnp.dot(p.astype(compute_dtype), v,
                  preferred_element_type=jnp.float32)
    out_ref[...] = (out * pl.reciprocal(denom, approx=True)).astype(out_ref.dtype)


def prepare_params(params, feature_dim, *, compute_dtype=jnp.bfloat16):
    """One-time weight prep: transpose to (in,out), fold softmax scale into Q,
    fuse K|V weights, zero-pad feature dim to a multiple of 128, cast operands."""
    d = feature_dim
    d_pad = _round_up(d, 128)
    scale = 1.0 / math.sqrt(float(d))

    def pad_w(w):  # torch Linear weight (out, in) -> transposed + padded (d_pad, d_pad)
        return jnp.pad(w.T, ((0, d_pad - d), (0, d_pad - d)))

    def pad_b(b):
        return jnp.pad(b, (0, d_pad - d))

    wq = (pad_w(params["wq"]) * scale).astype(compute_dtype)
    bq = (pad_b(params["bq"]) * scale).astype(jnp.float32).reshape(1, d_pad)
    wkv = jnp.concatenate([pad_w(params["wk"]), pad_w(params["wv"])],
                          axis=1).astype(compute_dtype)
    bkv = jnp.concatenate([pad_b(params["bk"]), pad_b(params["bv"])],
                          axis=0).astype(jnp.float32).reshape(1, 2 * d_pad)
    return {"wq": wq, "bq": bq, "wkv": wkv, "bkv": bkv,
            "d": d, "d_pad": d_pad, "compute_dtype": compute_dtype}


def attention_fusion(drug, protein, prepared, *, tq_max=384, n_splits=None):
    d = prepared["d"]
    d_pad = prepared["d_pad"]
    compute_dtype = prepared["compute_dtype"]

    nd = drug.shape[0]
    prot = protein[:nd, :]                 # torch-style slice (clamps)
    nk = prot.shape[0]
    if nk == 0:
        raise ValueError("protein is empty after the clamping slice; softmax undefined")

    sub = 8 if compute_dtype == jnp.float32 else 16   # sublane multiple

    # Key-axis padding for clean full-vreg softmax ops / aligned contraction.
    nk_pad = _round_up(nk, 128) if nk >= 128 else _round_up(nk, sub)

    # Zero-pad feature (lane) axis — exact: padded columns stay zero end-to-end.
    if d_pad != d:
        drug = jnp.pad(drug, ((0, 0), (0, d_pad - d)))
        prot = jnp.pad(prot, ((0, 0), (0, d_pad - d)))
    if nk_pad != nk:
        prot = jnp.pad(prot, ((0, nk_pad - nk), (0, 0)))

    # Query-axis tiling: split the real rows evenly over (splits x tiles) so no
    # dead all-padding tile is added; pad only up to the sublane multiple.
    if n_splits is None:
        n_splits = _default_n_splits()
    n_splits = max(1, min(n_splits, -(-nd // sub)))
    rows_per_split = -(-nd // n_splits)
    tiles_per_split = max(1, -(-rows_per_split // tq_max))
    tq = _round_up(-(-rows_per_split // tiles_per_split), sub)
    nq_pad = n_splits * tiles_per_split * tq
    if nq_pad != nd:
        drug = jnp.pad(drug, ((0, nq_pad - nd), (0, 0)))

    drug = drug.astype(compute_dtype)
    prot = prot.astype(compute_dtype)

    q_map = lambda i, j: (i * tiles_per_split + j, 0)
    fixed = lambda i, j: (0, 0)

    kernel = functools.partial(_attention_fusion_kernel,
                               d_pad=d_pad, nk=nk, nk_pad=nk_pad,
                               compute_dtype=compute_dtype)

    itemsize = jnp.dtype(compute_dtype).itemsize
    flops = (2 * nq_pad * d_pad * d_pad            # Q projection
             + 2 * nk_pad * d_pad * 2 * d_pad      # fused K|V projection
             + 4 * nq_pad * nk_pad * d_pad)        # Q K^T and attn @ V
    bytes_accessed = (itemsize * (nq_pad * d_pad + nk_pad * d_pad
                                  + 3 * d_pad * d_pad)
                      + 4 * (nq_pad * d_pad + 3 * d_pad))

    out = pl.pallas_call(
        kernel,
        out_shape=jax.ShapeDtypeStruct((nq_pad, d_pad), jnp.float32),
        grid=(n_splits, tiles_per_split),
        in_specs=[
            pl.BlockSpec((tq, d_pad), q_map),            # drug (streamed tiles)
            pl.BlockSpec((nk_pad, d_pad), fixed),        # protein (resident)
            pl.BlockSpec((d_pad, d_pad), fixed),         # Wq^T * scale
            pl.BlockSpec((1, d_pad), fixed),             # bq * scale
            pl.BlockSpec((d_pad, 2 * d_pad), fixed),     # [Wk^T | Wv^T]
            pl.BlockSpec((1, 2 * d_pad), fixed),         # [bk | bv]
        ],
        out_specs=pl.BlockSpec((tq, d_pad), q_map),
        scratch_shapes=[pltpu.VMEM((nk_pad, 2 * d_pad), compute_dtype)],  # resident K|V
        compiler_params=pltpu.CompilerParams(
            dimension_semantics=("parallel", "arbitrary")),
        cost_estimate=pl.CostEstimate(flops=flops,
                                      transcendentals=nq_pad * nk_pad,
                                      bytes_accessed=bytes_accessed),
    )(drug, prot, prepared["wq"], prepared["bq"], prepared["wkv"], prepared["bkv"])

    return out[:nd, :d]


def init_params(key, feature_dim):
    """Deterministic init mimicking nn.Linear default (uniform +-1/sqrt(in))."""
    ks = jax.random.split(key, 6)
    lim = 1.0 / math.sqrt(feature_dim)
    u = lambda k, shape: jax.random.uniform(k, shape, jnp.float32, -lim, lim)
    return {
        "wq": u(ks[0], (feature_dim, feature_dim)), "bq": u(ks[1], (feature_dim,)),
        "wk": u(ks[2], (feature_dim, feature_dim)), "bk": u(ks[3], (feature_dim,)),
        "wv": u(ks[4], (feature_dim, feature_dim)), "bv": u(ks[5], (feature_dim,)),
    }


def reference(drug, protein, params):
    """Pure-JAX f32 reference of the PyTorch forward."""
    prot = protein[:drug.shape[0], :]
    d = drug.shape[1]
    q = drug @ params["wq"].T + params["bq"]
    k = prot @ params["wk"].T + params["bk"]
    v = prot @ params["wv"].T + params["bv"]
    scores = (q @ k.T) / math.sqrt(d)
    attn = jax.nn.softmax(scores, axis=-1)
    return attn @ v


if __name__ == "__main__":
    key = jax.random.PRNGKey(0)
    k_drug, k_prot, k_params = jax.random.split(key, 3)

    feature_dim = 128              # matches the PyTorch module (lane-dense)
    n_drug, n_prot = 708, 508      # shapes from the PyTorch spec

    drug = jax.random.normal(k_drug, (n_drug, feature_dim), jnp.float32)
    protein = jax.random.normal(k_prot, (n_prot, feature_dim), jnp.float32)
    params = init_params(k_params, feature_dim)

    ref = reference(drug, protein, params)

    # Default path: bf16 matmul operands (native MXU on v5e/v6e/v7x), f32 accumulation.
    prep_bf16 = prepare_params(params, feature_dim)
    out_bf16 = jax.block_until_ready(attention_fusion(drug, protein, prep_bf16))
    assert out_bf16.shape == (n_drug, feature_dim)
    assert jnp.allclose(out_bf16, ref, atol=5e-2, rtol=5e-2), "bf16 mismatch vs reference"

    # f32 operand path (closest to PyTorch numerics; approx EUP reciprocal in softmax).
    prep_f32 = prepare_params(params, feature_dim, compute_dtype=jnp.float32)
    out_f32 = jax.block_until_ready(attention_fusion(drug, protein, prep_f32))
    assert out_f32.shape == (n_drug, feature_dim)
    assert jnp.allclose(out_f32, ref, atol=5e-3, rtol=5e-3), "f32 mismatch vs reference"

    print("KERNEL_OK")
</pallas_src>

<mosaic_0001>
module attributes {stable_mosaic.version = 11 : i64} {
  func.func @_attention_fusion_kernel(%arg0: i32, %arg1: i32, %arg2: memref<368x128xbf16, #tpu.memory_space<vmem>>, %arg3: memref<512x128xbf16, #tpu.memory_space<vmem>>, %arg4: memref<128x128xbf16, #tpu.memory_space<vmem>>, %arg5: memref<1x128xf32, #tpu.memory_space<vmem>>, %arg6: memref<128x256xbf16, #tpu.memory_space<vmem>>, %arg7: memref<1x256xf32, #tpu.memory_space<vmem>>, %arg8: memref<368x128xf32, #tpu.memory_space<vmem>>, %arg9: memref<512x256xbf16, #tpu.memory_space<vmem>>) attributes {dimension_semantics = [#tpu.dimension_semantics<parallel>, #tpu.dimension_semantics<arbitrary>], iteration_bounds = array<i64: 1, 2>, scalar_prefetch = 0 : i64, scratch_operands = 1 : i64, tpu.core_type = #tpu.core_type<tc>, window_params = [{transform_indices = @transform_0, window_bounds = array<i64: 368, 128>}, {pipeline_mode = #tpu.pipeline_mode<synchronous>, transform_indices = @transform_1, window_bounds = array<i64: 512, 128>}, {pipeline_mode = #tpu.pipeline_mode<synchronous>, transform_indices = @transform_2, window_bounds = array<i64: 128, 128>}, {pipeline_mode = #tpu.pipeline_mode<synchronous>, transform_indices = @transform_3, window_bounds = array<i64: 1, 128>}, {pipeline_mode = #tpu.pipeline_mode<synchronous>, transform_indices = @transform_4, window_bounds = array<i64: 128, 256>}, {pipeline_mode = #tpu.pipeline_mode<synchronous>, transform_indices = @transform_5, window_bounds = array<i64: 1, 256>}, {transform_indices = @transform_6, window_bounds = array<i64: 368, 128>}]} {
    %c0_i32 = arith.constant 0 : i32
    %0 = arith.cmpi eq, %arg1, %c0_i32 : i32
    %1 = arith.extui %0 : i1 to i32
    %c0_i32_0 = arith.constant 0 : i32
    %2 = arith.cmpi ne, %1, %c0_i32_0 : i32
    scf.if %2 {
      %c0_17 = arith.constant 0 : index
      %c0_18 = arith.constant 0 : index
      %34 = vector.load %arg3[%c0_17, %c0_18] : memref<512x128xbf16, #tpu.memory_space<vmem>>, vector<512x128xbf16>
      %c0_19 = arith.constant 0 : index
      %c0_20 = arith.constant 0 : index
      %35 = vector.load %arg6[%c0_19, %c0_20] : memref<128x256xbf16, #tpu.memory_space<vmem>>, vector<128x256xbf16>
      %cst_21 = arith.constant dense<0.000000e+00> : vector<512x256xf32>
      %36 = tpu.matmul %34, %35, %cst_21 {dimension_numbers = #tpu.dot_dimension_numbers<[1], [0], [0], [1], [0, 0, 1, 1], [], []>} : vector<512x128xbf16>, vector<128x256xbf16>, vector<512x256xf32> -> vector<512x256xf32>
      %c0_22 = arith.constant 0 : index
      %c0_23 = arith.constant 0 : index
      %37 = vector.load %arg7[%c0_22, %c0_23] : memref<1x256xf32, #tpu.memory_space<vmem>>, vector<1x256xf32>
      %38 = vector.broadcast %37 : vector<1x256xf32> to vector<512x256xf32>
      %39 = arith.addf %36, %38 : vector<512x256xf32>
      %40 = arith.truncf %39 : vector<512x256xf32> to vector<512x256xbf16>
      %c0_24 = arith.constant 0 : index
      %c0_25 = arith.constant 0 : index
      %41 = vector.load %arg9[%c0_24, %c0_25] : memref<512x256xbf16, #tpu.memory_space<vmem>>, vector<512x256xbf16>
      tpu.vector_store %arg9[%c0_24, %c0_25], %40 {strides = array<i32>} : memref<512x256xbf16, #tpu.memory_space<vmem>>, vector<512x256xbf16>,
    } else {
    }
    %c0 = arith.constant 0 : index
    %c0_1 = arith.constant 0 : index
    %3 = vector.load %arg2[%c0, %c0_1] : memref<368x128xbf16, #tpu.memory_space<vmem>>, vector<368x128xbf16>
    %c0_2 = arith.constant 0 : index
    %c0_3 = arith.constant 0 : index
    %4 = vector.load %arg4[%c0_2, %c0_3] : memref<128x128xbf16, #tpu.memory_space<vmem>>, vector<128x128xbf16>
    %cst = arith.constant dense<0.000000e+00> : vector<368x128xf32>
    %5 = tpu.matmul %3, %4, %cst {dimension_numbers = #tpu.dot_dimension_numbers<[1], [0], [0], [1], [0, 0, 1, 1], [], []>} : vector<368x128xbf16>, vector<128x128xbf16>, vector<368x128xf32> -> vector<368x128xf32>
    %c0_4 = arith.constant 0 : index
    %c0_5 = arith.constant 0 : index
    %6 = vector.load %arg5[%c0_4, %c0_5] : memref<1x128xf32, #tpu.memory_space<vmem>>, vector<1x128xf32>
    %7 = vector.broadcast %6 : vector<1x128xf32> to vector<368x128xf32>
    %8 = arith.addf %5, %7 : vector<368x128xf32>
    %9 = arith.truncf %8 : vector<368x128xf32> to vector<368x128xbf16>
    %c0_6 = arith.constant 0 : index
    %c0_7 = arith.constant 0 : index
    %10 = vector.load %arg9[%c0_6, %c0_7] : memref<512x256xbf16, #tpu.memory_space<vmem>>, vector<512x128xbf16>
    %c0_8 = arith.constant 0 : index
    %c128 = arith.constant 128 : index
    %11 = vector.load %arg9[%c0_8, %c128] : memref<512x256xbf16, #tpu.memory_space<vmem>>, vector<512x128xbf16>
    %cst_9 = arith.constant dense<0.000000e+00> : vector<368x512xf32>
    %12 = tpu.matmul %9, %10, %cst_9 {dimension_numbers = #tpu.dot_dimension_numbers<[1], [1], [0], [0], [0, 0, 1, 0], [], []>} : vector<368x128xbf16>, vector<512x128xbf16>, vector<368x512xf32> -> vector<368x512xf32>
    %13 = tpu.iota {dimensions = array<i32: 1>} : vector<1x512xi32>
    %c508_i32 = arith.constant 508 : i32
    %14 = vector.broadcast %c508_i32 : i32 to vector<1x512xi32>
    %15 = arith.cmpi slt, %13, %14 : vector<1x512xi32>
    %cst_10 = arith.constant 0.000000e+00 : f32
    %cst_11 = arith.constant -1.000000e+30 : f32
    %16 = vector.broadcast %cst_10 : f32 to vector<1x512xf32>
    %17 = vector.broadcast %cst_11 : f32 to vector<1x512xf32>
    %18 = arith.select %15, %16, %17 : vector<1x512xi1>, vector<1x512xf32>
    %19 = vector.broadcast %18 : vector<1x512xf32> to vector<368x512xf32>
    %20 = arith.addf %12, %19 : vector<368x512xf32>
    %cst_12 = arith.constant dense<0xFF800000> : vector<368xf32>
    %21 = vector.multi_reduction <maximumf>, %20, %cst_12 [1] : vector<368x512xf32> to vector<368xf32>
    %22 = vector.shape_cast %21 : vector<368xf32> to vector<368x1xf32>
    %23 = vector.broadcast %22 : vector<368x1xf32> to vector<368x512xf32>
    %24 = arith.subf %20, %23 : vector<368x512xf32>
    %25 = math.exp %24 : vector<368x512xf32>
    %cst_13 = arith.constant dense<0.000000e+00> : vector<368xf32>
    %26 = vector.multi_reduction <add>, %25, %cst_13 [1] : vector<368x512xf32> to vector<368xf32>
    %27 = vector.shape_cast %26 : vector<368xf32> to vector<368x1xf32>
    %28 = arith.truncf %25 : vector<368x512xf32> to vector<368x512xbf16>
    %cst_14 = arith.constant dense<0.000000e+00> : vector<368x128xf32>
    %29 = tpu.matmul %28, %11, %cst_14 {dimension_numbers = #tpu.dot_dimension_numbers<[1], [0], [0], [1], [0, 0, 1, 1], [], []>} : vector<368x512xbf16>, vector<512x128xbf16>, vector<368x128xf32> -> vector<368x128xf32>
    %30 = tpu.reciprocal %27 {approx = true} : vector<368x1xf32> -> vector<368x1xf32>
    %31 = vector.broadcast %30 : vector<368x1xf32> to vector<368x128xf32>
    %32 = arith.mulf %29, %31 : vector<368x128xf32>
    %c0_15 = arith.constant 0 : index
    %c0_16 = arith.constant 0 : index
    %33 = vector.load %arg8[%c0_15, %c0_16] : memref<368x128xf32, #tpu.memory_space<vmem>>, vector<368x128xf32>
    tpu.vector_store %arg8[%c0_15, %c0_16], %32 {strides = array<i32>} : memref<368x128xf32, #tpu.memory_space<vmem>>, vector<368x128xf32>,
    return
  }
  func.func @transform_0(%arg0: i32, %arg1: i32) -> (i32, i32) {
    %c2_i32 = arith.constant 2 : i32
    %0 = arith.muli %arg0, %c2_i32 : i32
    %1 = arith.addi %0, %arg1 : i32
    %c0_i32 = arith.constant 0 : i32
    %c0_i32_0 = arith.constant 0 : i32
    return %1, %c0_i32 : i32, i32
  }
  func.func @transform_1(%arg0: i32, %arg1: i32) -> (i32, i32) {
    %c0_i32 = arith.constant 0 : i32
    %c0_i32_0 = arith.constant 0 : i32
    %c0_i32_1 = arith.constant 0 : i32
    return %c0_i32, %c0_i32_0 : i32, i32
  }
  func.func @transform_2(%arg0: i32, %arg1: i32) -> (i32, i32) {
    %c0_i32 = arith.constant 0 : i32
    %c0_i32_0 = arith.constant 0 : i32
    %c0_i32_1 = arith.constant 0 : i32
    return %c0_i32, %c0_i32_0 : i32, i32
  }
  func.func @transform_3(%arg0: i32, %arg1: i32) -> (i32, i32) {
    %c0_i32 = arith.constant 0 : i32
    %c0_i32_0 = arith.constant 0 : i32
    %c0_i32_1 = arith.constant 0 : i32
    return %c0_i32, %c0_i32_0 : i32, i32
  }
  func.func @transform_4(%arg0: i32, %arg1: i32) -> (i32, i32) {
    %c0_i32 = arith.constant 0 : i32
    %c0_i32_0 = arith.constant 0 : i32
    %c0_i32_1 = arith.constant 0 : i32
    return %c0_i32, %c0_i32_0 : i32, i32
  }
  func.func @transform_5(%arg0: i32, %arg1: i32) -> (i32, i32) {
    %c0_i32 = arith.constant 0 : i32
    %c0_i32_0 = arith.constant 0 : i32
    %c0_i32_1 = arith.constant 0 : i32
    return %c0_i32, %c0_i32_0 : i32, i32
  }
  func.func @transform_6(%arg0: i32, %arg1: i32) -> (i32, i32) {
    %c2_i32 = arith.constant 2 : i32
    %0 = arith.muli %arg0, %c2_i32 : i32
    %1 = arith.addi %0, %arg1 : i32
    %c0_i32 = arith.constant 0 : i32
    %c0_i32_0 = arith.constant 0 : i32
    return %1, %c0_i32 : i32, i32
  }
}

</mosaic_0001>

<llo_original>
// kernel: tpu_custom_call.1
$region0: #{tpu_custom_call.1}
  #allocation0 [shape = 'u32[]', space=smem, size = 0x4, offset = 0x4, fixed_abs, tag = 'smem constant byte address 0x4 - core index']
  #allocation1 [shape = 'u32[144,128]{1,0:T(1,128)}', space=vmem, size = 0x12000, scoped, tag = 'internal scratch']
  #allocation2 [shape = 'bf16[512,256]{1,0:T(16,128)(2,1)}', space=vmem, size = 0x40000, scoped, tag = 'scratch operand']
  %s0 = inlined_call_operand.hbm [shape: bf16[736,128], index: 0, kind: input, shape index: {}]
  %s1 = inlined_call_operand.hbm [shape: bf16[512,128], index: 1, kind: input, shape index: {}]
  %s2 = inlined_call_operand.hbm [shape: bf16[128,128], index: 2, kind: input, shape index: {}]
  %s3 = inlined_call_operand.vmem [shape: f32[1,128], index: 3, kind: input, shape index: {}]
  %s4 = inlined_call_operand.hbm [shape: bf16[128,256], index: 4, kind: input, shape index: {}]
  %s5 = inlined_call_operand.vmem [shape: f32[1,256], index: 5, kind: input, shape index: {}]
  %s6 = inlined_call_operand.hbm [shape: f32[736,128], index: 6, kind: output, shape index: {}]
  %s7 = sld [smem:[#allocation0]]
  $region77: #{tpu_custom_call.1} parent=0
    _
  %s9 = ssub.s32 1, %s7
  %s10 = scalar_select 0, %s9, %s7
  $region1: #{tpu_custom_call.1} parent=0
    #allocation3 [shape = 'u8[188416]{0}', space=vmem, size = 0x2e000, scoped, tag = 'input window, operand 0']
    #allocation4 [shape = 's32[2]{0}', space=sflag, size = 0x8, scoped, tag = 'scoped memory for tpu_custom_call.1']
    #allocation5 [shape = 's32[2]{0}', space=sflag, size = 0x8, scoped, tag = 'scoped memory for tpu_custom_call.1']
    #allocation6 [shape = 'u8[131072]{0}', space=vmem, size = 0x20000, scoped, tag = 'input window, operand 1, single buffered']
    #allocation7 [shape = 's32[1]{0}', space=sflag, size = 0x4, scoped, tag = 'scoped memory for tpu_custom_call.1']
    #allocation8 [shape = 'u8[32768]{0}', space=vmem, size = 0x8000, scoped, tag = 'input window, operand 2, single buffered']
    #allocation9 [shape = 'u8[65536]{0}', space=vmem, size = 0x10000, scoped, tag = 'input window, operand 4, single buffered']
    #allocation10 [shape = 's32[1]{0}', space=sflag, size = 0x4, scoped, tag = 'scoped memory for tpu_custom_call.1']
    #allocation11 [shape = 'u8[376832]{0}', space=vmem, size = 0x5c000, scoped, tag = 'output window, operand 0']
    %11 = vsyncpa [#allocation4], 0
    %s12 = scalar_lea.sflag [#allocation4], 1
    %13 = vsyncpa %s12, 0
    %14 = vsyncpa [#allocation7], 0
    %15 = vsyncpa [#allocation10], 0
    %16 = vsyncpa [#allocation5], 0
    %s17 = scalar_lea.sflag [#allocation5], 1
    %18 = vsyncpa %s17, 0
    loop: start=0, step=1, limit=4
    $region2: #{tpu_custom_call.1} parent=1 // loop_pre_header
      _
    $region3: #{tpu_custom_call.1} parent=1 // loop_header
      %s20 = sphi 0, %s24
      %p21 = scmp.ge.s32.totalorder %s20, 4
      %s27 = sphi 0, %s39
      %s28 = sphi 0, %s35
      %s29 = sphi 0, %s27
      %s30 = sphi 0, %s28
      %s31 = sphi 0, %s29
      %s32 = sphi 0, %s30
      %s46 = sphi 0, %s48
      %s49 = sphi 0, %s46
      %s50 = sphi 0, %s49
      %s66 = sphi 0, %s50
      %s70 = sphi 0, %s70
      %s72 = sphi 0, %s70
      %s73 = sphi 0, %s72
      %s87 = sphi 0, %s73
      %s91 = sphi 0, %s91
      %s93 = sphi 0, %s91
      %s94 = sphi 0, %s93
      %s108 = sphi 0, %s94
      %s112 = sphi 0, %s112
      %s114 = sphi 0, %s112
      %s115 = sphi 0, %s114
      %s129 = sphi 0, %s115
      %s133 = sphi 0, %s133
      %s135 = sphi 0, %s133
      %s136 = sphi 0, %s135
      %s150 = sphi 0, %s136
      %s154 = sphi 0, %s154
      %s156 = sphi 0, %s154
      %s157 = sphi 0, %s156
      %s171 = sphi 0, %s157
      %s181 = sphi 0, %s183
      %s184 = sphi 0, %s181
      %s185 = sphi 0, %s184
      %s201 = sphi 0, %s185
    $region4: #{tpu_custom_call.1} parent=1 // loop_header_branch
      %23 = sbr.rel (%p21) target = $region8
    $region5: #{tpu_custom_call.1} parent=1 // loop_body
      %s25 = ssub.s32 %s20, 1
      %s26 = ssub.s32 %s20, 2
      %s33 = sadd.s32 1, %s28
      %p34 = scmp.ge.s32.totalorder %s33, 2
      %s35 = scalar_select %p34, 0, %s33
      %s36 = sadd.s32 1, %s27
      %s37 = scalar_select %p34, %s36, %s27
      %p38 = scmp.ge.s32.totalorder %s37, 1
      %s39 = scalar_select %p38, 0, %s37
      %s40 = smul.u32 %s27, 2
      %s41 = sadd.s32 %s40, %s28
      %s42 = smul.u32 %s39, 2
      %s43 = sadd.s32 %s42, %s35
      %s44 = ssub.s32 %s41, %s43
      %p45 = scmp.eq.s32.totalorder %s44, 0
      %s47 = sadd.s32 %s46, 1
      %s48 = scalar_select %p45, %s46, %s47
      %p51 = pneg %p45
      %p52 = scmp.eq.s32.totalorder %s20, 1
      %p53 = por %p51, %p52
      %p54 = scmp.ne.s32.totalorder %s46, %s49
      %p55 = scmp.eq.s32.totalorder %s20, 0
      %p56 = por %p54, %p55
      %p57 = scmp.ne.s32.totalorder %s46, %s49
      %p58 = scmp.eq.s32.totalorder %s25, 1
      %p59 = por %p57, %p58
      %p60 = scmp.ne.s32.totalorder %s49, %s50
      %p61 = scmp.eq.s32.totalorder %s25, 0
      %p62 = por %p60, %p61
      %p63 = scmp.ne.s32.totalorder %s49, %s50
      %p64 = scmp.eq.s32.totalorder %s26, 1
      %p65 = por %p63, %p64
      %p67 = scmp.ne.s32.totalorder %s50, %s66
      %p68 = scmp.eq.s32.totalorder %s26, 0
      %p69 = por %p67, %p68
      %s71 = sadd.s32 %s70, 1
      %p74 = scmp.eq.s32.totalorder %s20, 1
      %p75 = scmp.ne.s32.totalorder %s70, %s72
      %p76 = scmp.eq.s32.totalorder %s20, 0
      %p77 = por %p75, %p76
      %p78 = scmp.ne.s32.totalorder %s70, %s72
      %p79 = scmp.eq.s32.totalorder %s25, 1
      %p80 = por %p78, %p79
      %p81 = scmp.ne.s32.totalorder %s72, %s73
      %p82 = scmp.eq.s32.totalorder %s25, 0
      %p83 = por %p81, %p82
      %p84 = scmp.ne.s32.totalorder %s72, %s73
      %p85 = scmp.eq.s32.totalorder %s26, 1
      %p86 = por %p84, %p85
      %p88 = scmp.ne.s32.totalorder %s73, %s87
      %p89 = scmp.eq.s32.totalorder %s26, 0
      %p90 = por %p88, %p89
      %s92 = sadd.s32 %s91, 1
      %p95 = scmp.eq.s32.totalorder %s20, 1
      %p96 = scmp.ne.s32.totalorder %s91, %s93
      %p97 = scmp.eq.s32.totalorder %s20, 0
      %p98 = por %p96, %p97
      %p99 = scmp.ne.s32.totalorder %s91, %s93
      %p100 = scmp.eq.s32.totalorder %s25, 1
      %p101 = por %p99, %p100
      %p102 = scmp.ne.s32.totalorder %s93, %s94
      %p103 = scmp.eq.s32.totalorder %s25, 0
      %p104 = por %p102, %p103
      %p105 = scmp.ne.s32.totalorder %s93, %s94
      %p106 = scmp.eq.s32.totalorder %s26, 1
      %p107 = por %p105, %p106
      %p109 = scmp.ne.s32.totalorder %s94, %s108
      %p110 = scmp.eq.s32.totalorder %s26, 0
      %p111 = por %p109, %p110
      %s113 = sadd.s32 %s112, 1
      %p116 = scmp.eq.s32.totalorder %s20, 1
      %p117 = scmp.ne.s32.totalorder %s112, %s114
      %p118 = scmp.eq.s32.totalorder %s20, 0
      %p119 = por %p117, %p118
      %p120 = scmp.ne.s32.totalorder %s112, %s114
      %p121 = scmp.eq.s32.totalorder %s25, 1
      %p122 = por %p120, %p121
      %p123 = scmp.ne.s32.totalorder %s114, %s115
      %p124 = scmp.eq.s32.totalorder %s25, 0
      %p125 = por %p123, %p124
      %p126 = scmp.ne.s32.totalorder %s114, %s115
      %p127 = scmp.eq.s32.totalorder %s26, 1
      %p128 = por %p126, %p127
      %p130 = scmp.ne.s32.totalorder %s115, %s129
      %p131 = scmp.eq.s32.totalorder %s26, 0
      %p132 = por %p130, %p131
      %s134 = sadd.s32 %s133, 1
      %p137 = scmp.eq.s32.totalorder %s20, 1
      %p138 = scmp.ne.s32.totalorder %s133, %s135
      %p139 = scmp.eq.s32.totalorder %s20, 0
      %p140 = por %p138, %p139
      %p141 = scmp.ne.s32.totalorder %s133, %s135
      %p142 = scmp.eq.s32.totalorder %s25, 1
      %p143 = por %p141, %p142
      %p144 = scmp.ne.s32.totalorder %s135, %s136
      %p145 = scmp.eq.s32.totalorder %s25, 0
      %p146 = por %p144, %p145
      %p147 = scmp.ne.s32.totalorder %s135, %s136
      %p148 = scmp.eq.s32.totalorder %s26, 1
      %p149 = por %p147, %p148
      %p151 = scmp.ne.s32.totalorder %s136, %s150
      %p152 = scmp.eq.s32.totalorder %s26, 0
      %p153 = por %p151, %p152
      %s155 = sadd.s32 %s154, 1
      %p158 = scmp.eq.s32.totalorder %s20, 1
      %p159 = scmp.ne.s32.totalorder %s154, %s156
      %p160 = scmp.eq.s32.totalorder %s20, 0
      %p161 = por %p159, %p160
      %p162 = scmp.ne.s32.totalorder %s154, %s156
      %p163 = scmp.eq.s32.totalorder %s25, 1
      %p164 = por %p162, %p163
      %p165 = scmp.ne.s32.totalorder %s156, %s157
      %p166 = scmp.eq.s32.totalorder %s25, 0
      %p167 = por %p165, %p166
      %p168 = scmp.ne.s32.totalorder %s156, %s157
      %p169 = scmp.eq.s32.totalorder %s26, 1
      %p170 = por %p168, %p169
      %p172 = scmp.ne.s32.totalorder %s157, %s171
      %p173 = scmp.eq.s32.totalorder %s26, 0
      %p174 = por %p172, %p173
      %s175 = smul.u32 %s27, 2
      %s176 = sadd.s32 %s175, %s28
      %s177 = smul.u32 %s39, 2
      %s178 = sadd.s32 %s177, %s35
      %s179 = ssub.s32 %s176, %s178
      %p180 = scmp.eq.s32.totalorder %s179, 0
      %s182 = sadd.s32 %s181, 1
      %s183 = scalar_select %p180, %s181, %s182
      %p186 = pneg %p180
      %p187 = scmp.eq.s32.totalorder %s20, 1
      %p188 = por %p186, %p187
      %p189 = scmp.ne.s32.totalorder %s181, %s184
      %p190 = scmp.eq.s32.totalorder %s20, 0
      %p191 = por %p189, %p190
      %p192 = scmp.ne.s32.totalorder %s181, %s184
      %p193 = scmp.eq.s32.totalorder %s25, 1
      %p194 = por %p192, %p193
      %p195 = scmp.ne.s32.totalorder %s184, %s185
      %p196 = scmp.eq.s32.totalorder %s25, 0
      %p197 = por %p195, %p196
      %p198 = scmp.ne.s32.totalorder %s184, %s185
      %p199 = scmp.eq.s32.totalorder %s26, 1
      %p200 = por %p198, %p199
      %p202 = scmp.ne.s32.totalorder %s185, %s201
      %p203 = scmp.eq.s32.totalorder %s26, 0
      %p204 = por %p202, %p203
      %p205 = scmp.le.s32.totalorder 1, %s20
      %p206 = scmp.lt.s32.totalorder %s20, 3
      %p207 = pnand %p205, %p206
      %p208 = pneg %p207
      // Predicated region
      $region9: #{tpu_custom_call.1} parent=5 // pred_check
        _
      $region10: #{tpu_custom_call.1} parent=5 // pred_check_branch
        %210 = sbr.rel (%p207) target = $region12
      $region11: #{tpu_custom_call.1} parent=5 // pred_region
        %s211 = ssub.s32 %s20, 1
        // Predicated region
        $region13: #{tpu_custom_call.1} parent=11 // pred_check
          %p212 = pneg %p83
        $region14: #{tpu_custom_call.1} parent=11 // pred_check_branch
          %214 = sbr.rel (%p212) target = $region16
        $region15: #{tpu_custom_call.1} parent=11 // pred_region
          %s216 = ssub.s32 4096, 4096
          %217 = vsyncadd [#allocation7], %s216
          %s218 = sshll.u32 [#allocation6], 4
          %s219 = int_to_ptr.vmem [resolvable:$true] %s218
          %224 = dma.hbm_to_vmem [thread:$0]  %s1, 4096, %s219, [#allocation7], 64, 64, 4
        $region16: #{tpu_custom_call.1} parent=11 // pred_fallthru
          _
        // Predicated region
        $region17: #{tpu_custom_call.1} parent=11 // pred_check
          %p225 = pneg %p104
        $region18: #{tpu_custom_call.1} parent=11 // pred_check_branch
          %227 = sbr.rel (%p225) target = $region20
        $region19: #{tpu_custom_call.1} parent=11 // pred_region
          %s229 = ssub.s32 1024, 1024
          %230 = vsyncadd [#allocation7], %s229
          %s231 = sshll.u32 [#allocation8], 4
          %s232 = int_to_ptr.vmem [resolvable:$true] %s231
          %237 = dma.hbm_to_vmem [thread:$0]  %s2, 1024, %s232, [#allocation7], 64, 64, 4
        $region20: #{tpu_custom_call.1} parent=11 // pred_fallthru
          _
        // Predicated region
        $region21: #{tpu_custom_call.1} parent=11 // pred_check
          %p238 = pneg %p125
        $region22: #{tpu_custom_call.1} parent=11 // pred_check_branch
          %240 = sbr.rel (%p238) target = $region24
        $region23: #{tpu_custom_call.1} parent=11 // pred_region
          _
        $region24: #{tpu_custom_call.1} parent=11 // pred_fallthru
          _
        // Predicated region
        $region25: #{tpu_custom_call.1} parent=11 // pred_check
          %p241 = pneg %p146
        $region26: #{tpu_custom_call.1} parent=11 // pred_check_branch
          %243 = sbr.rel (%p241) target = $region28
        $region27: #{tpu_custom_call.1} parent=11 // pred_region
          %s245 = ssub.s32 2048, 2048
          %246 = vsyncadd [#allocation10], %s245
          %s247 = sshll.u32 [#allocation9], 4
          %s248 = int_to_ptr.vmem [resolvable:$true] %s247
          %253 = dma.hbm_to_vmem [thread:$0]  %s4, 2048, %s248, [#allocation10], 128, 128, 8
        $region28: #{tpu_custom_call.1} parent=11 // pred_fallthru
          _
        // Predicated region
        $region29: #{tpu_custom_call.1} parent=11 // pred_check
          %p254 = pneg %p167
        $region30: #{tpu_custom_call.1} parent=11 // pred_check_branch
          %256 = sbr.rel (%p254) target = $region32
        $region31: #{tpu_custom_call.1} parent=11 // pred_region
          _
        $region32: #{tpu_custom_call.1} parent=11 // pred_fallthru
          _
      $region12: #{tpu_custom_call.1} parent=5 // pred_fallthru
        _
      %p257 = scmp.lt.s32.totalorder %s20, 2
      // Predicated region
      $region33: #{tpu_custom_call.1} parent=5 // pred_check
        %p258 = pneg %p257
      $region34: #{tpu_custom_call.1} parent=5 // pred_check_branch
        %260 = sbr.rel (%p258) target = $region36
      $region35: #{tpu_custom_call.1} parent=5 // pred_region
        // Predicated region
        $region37: #{tpu_custom_call.1} parent=35 // pred_check
          %p261 = pneg %p56
        $region38: #{tpu_custom_call.1} parent=35 // pred_check_branch
          %263 = sbr.rel (%p261) target = $region40
        $region39: #{tpu_custom_call.1} parent=35 // pred_region
          %s264 = sand.u32 %s46, 1
          %s265 = scalar_lea.sflag [#allocation4], %s264
          %s266 = sand.u32 %s46, 1
          %s267 = smul.addr %s266, 184
          %s268 = scalar_lea.vmem [#allocation3], %s267
          %s269 = smul.u32 %s27, 2
          %s270 = sadd.s32 %s269, %s28
          %s271 = smul.u32 46, %s270
          %s273 = ssub.s32 2944, 2944
          %274 = vsyncadd %s265, %s273
          %s275 = smul.addr %s271, 64
          %s276 = scalar_lea.hbm %s0, %s275
          %s277 = sshll.u32 %s268, 4
          %s278 = int_to_ptr.vmem [resolvable:$true] %s277
          %283 = dma.hbm_to_vmem [thread:$0]  %s276, 2944, %s278, %s265, 64, 64, 4
        $region40: #{tpu_custom_call.1} parent=35 // pred_fallthru
          _
      $region36: #{tpu_custom_call.1} parent=5 // pred_fallthru
        _
      %p284 = scmp.le.s32.totalorder 1, %s20
      %p285 = scmp.lt.s32.totalorder %s20, 3
      %p286 = pnand %p284, %p285
      %p287 = pneg %p286
      // Predicated region
      $region41: #{tpu_custom_call.1} parent=5 // pred_check
        _
      $region42: #{tpu_custom_call.1} parent=5 // pred_check_branch
        %289 = sbr.rel (%p286) target = $region44
      $region43: #{tpu_custom_call.1} parent=5 // pred_region
        %s290 = ssub.s32 %s20, 1
        %s291 = sand.u32 %s49, 1
        %s292 = scalar_lea.sflag [#allocation4], %s291
        %s293 = sand.u32 %s49, 1
        %s294 = smul.addr %s293, 184
        %s295 = scalar_lea.vmem [#allocation3], %s294
        // Predicated region
        $region45: #{tpu_custom_call.1} parent=43 // pred_check
          %p296 = pneg %p62
        $region46: #{tpu_custom_call.1} parent=43 // pred_check_branch
          %298 = sbr.rel (%p296) target = $region48
        $region47: #{tpu_custom_call.1} parent=43 // pred_region
          %299 = dma.done %s292, 2944
        $region48: #{tpu_custom_call.1} parent=43 // pred_fallthru
          _
        // Predicated region
        $region49: #{tpu_custom_call.1} parent=43 // pred_check
          %p300 = pneg %p83
        $region50: #{tpu_custom_call.1} parent=43 // pred_check_branch
          %302 = sbr.rel (%p300) target = $region52
        $region51: #{tpu_custom_call.1} parent=43 // pred_region
          %303 = dma.done [#allocation7], 4096
        $region52: #{tpu_custom_call.1} parent=43 // pred_fallthru
          _
        // Predicated region
        $region53: #{tpu_custom_call.1} parent=43 // pred_check
          %p304 = pneg %p104
        $region54: #{tpu_custom_call.1} parent=43 // pred_check_branch
          %306 = sbr.rel (%p304) target = $region56
        $region55: #{tpu_custom_call.1} parent=43 // pred_region
          %307 = dma.done [#allocation7], 1024
        $region56: #{tpu_custom_call.1} parent=43 // pred_fallthru
          _
        // Predicated region
        $region57: #{tpu_custom_call.1} parent=43 // pred_check
          %p308 = pneg %p146
        $region58: #{tpu_custom_call.1} parent=43 // pred_check_branch
          %310 = sbr.rel (%p308) target = $region60
        $region59: #{tpu_custom_call.1} parent=43 // pred_region
          %311 = dma.done [#allocation10], 2048
        $region60: #{tpu_custom_call.1} parent=43 // pred_fallthru
          _
        %s312 = sand.u32 %s49, 1
        %s313 = scalar_lea.sflag [#allocation4], %s312
        %s314 = sand.u32 %s49, 1
        %s315 = smul.addr %s314, 184
        %s316 = scalar_lea.vmem [#allocation3], %s315
        %p317 = pneg %p62
        %p318 = pneg %p59
        %p319 = pneg %p83
        %p320 = pneg %p80
        %p321 = pneg %p104
        %p322 = pneg %p101
        %p323 = pneg %p125
        %p324 = pneg %p122
        %p325 = pneg %p146
        %p326 = pneg %p143
        %p327 = pneg %p167
        %p328 = pneg %p164
        %p329 = pneg %p197
        %p330 = pneg %p194
        %s331 = sand.u32 %s184, 1
        %s332 = scalar_lea.sflag [#allocation5], %s331
        %s333 = sand.u32 %s184, 1
        %s334 = smul.addr %s333, 368
        %s335 = scalar_lea.vmem [#allocation11], %s334
        %s336 = smul.u32 %s29, 2
        %s337 = sadd.s32 %s336, %s30
        %s338 = smul.u32 46, %s337
        %s339 = smul.u32 %s29, 2
        %s340 = sadd.s32 %s339, %s30
        %s341 = smul.u32 46, %s340
        %p343 = scmp.eq.s32.totalorder %s30, 0
        // Predicated region
        $region61: #{tpu_custom_call.1} parent=43 // pred_check
          %p344 = pneg %p343
        $region62: #{tpu_custom_call.1} parent=43 // pred_check_branch
          %346 = sbr.rel (%p344) target = $region64
        $region63: #{tpu_custom_call.1} parent=43 // pred_region
          %v347 = vld [vmem:[#allocation6] sm:$0xf]
          %v348 = vld [vmem:[#allocation6 + $0x4] sm:$0xf]
          %v349 = vld [vmem:[#allocation6 + $0x8] sm:$0xf]
          %v350 = vld [vmem:[#allocation6 + $0xc] sm:$0xf]
          %v351 = vld [vmem:[#allocation6 + $0x10] sm:$0xf]
          %v352 = vld [vmem:[#allocation6 + $0x14] sm:$0xf]
          %v353 = vld [vmem:[#allocation6 + $0x18] sm:$0xf]
          %v354 = vld [vmem:[#allocation6 + $0x1c] sm:$0xf]
          %v355 = vld [vmem:[#allocation6 + $0x20] sm:$0xf]
          %v356 = vld [vmem:[#allocation6 + $0x24] sm:$0xf]
          %v357 = vld [vmem:[#allocation6 + $0x28] sm:$0xf]
          %v358 = vld [vmem:[#allocation6 + $0x2c] sm:$0xf]
          %v359 = vld [vmem:[#allocation6 + $0x30] sm:$0xf]
          %v360 = vld [vmem:[#allocation6 + $0x34] sm:$0xf]
          %v361 = vld [vmem:[#allocation6 + $0x38] sm:$0xf]
          %v362 = vld [vmem:[#allocation6 + $0x3c] sm:$0xf]
          %v363 = vld [vmem:[#allocation6 + $0x40] sm:$0xf]
          %v364 = vld [vmem:[#allocation6 + $0x44] sm:$0xf]
          %v365 = vld [vmem:[#allocation6 + $0x48] sm:$0xf]
          %v366 = vld [vmem:[#allocation6 + $0x4c] sm:$0xf]
          %v367 = vld [vmem:[#allocation6 + $0x50] sm:$0xf]
          %v368 = vld [vmem:[#allocation6 + $0x54] sm:$0xf]
          %v369 = vld [vmem:[#allocation6 + $0x58] sm:$0xf]
          %v370 = vld [vmem:[#allocation6 + $0x5c] sm:$0xf]
          %v371 = vld [vmem:[#allocation6 + $0x60] sm:$0xf]
          %v372 = vld [vmem:[#allocation6 + $0x64] sm:$0xf]
          %v373 = vld [vmem:[#allocation6 + $0x68] sm:$0xf]
          %v374 = vld [vmem:[#allocation6 + $0x6c] sm:$0xf]
          %v375 = vld [vmem:[#allocation6 + $0x70] sm:$0xf]
          %v376 = vld [vmem:[#allocation6 + $0x74] sm:$0xf]
          %v377 = vld [vmem:[#allocation6 + $0x78] sm:$0xf]
          %v378 = vld [vmem:[#allocation6 + $0x7c] sm:$0xf]
          %v379 = vld [vmem:[#allocation6 + $0x80] sm:$0xf]
          %v380 = vld [vmem:[#allocation6 + $0x84] sm:$0xf]
          %v381 = vld [vmem:[#allocation6 + $0x88] sm:$0xf]
          %v382 = vld [vmem:[#allocation6 + $0x8c] sm:$0xf]
          %v383 = vld [vmem:[#allocation6 + $0x90] sm:$0xf]
          %v384 = vld [vmem:[#allocation6 + $0x94] sm:$0xf]
          %v385 = vld [vmem:[#allocation6 + $0x98] sm:$0xf]
          %v386 = vld [vmem:[#allocation6 + $0x9c] sm:$0xf]
          %v387 = vld [vmem:[#allocation6 + $0xa0] sm:$0xf]
          %v388 = vld [vmem:[#allocation6 + $0xa4] sm:$0xf]
          %v389 = vld [vmem:[#allocation6 + $0xa8] sm:$0xf]
          %v390 = vld [vmem:[#allocation6 + $0xac] sm:$0xf]
          %v391 = vld [vmem:[#allocation6 + $0xb0] sm:$0xf]
          %v392 = vld [vmem:[#allocation6 + $0xb4] sm:$0xf]
          %v393 = vld [vmem:[#allocation6 + $0xb8] sm:$0xf]
          %v394 = vld [vmem:[#allocation6 + $0xbc] sm:$0xf]
          %v395 = vld [vmem:[#allocation6 + $0xc0] sm:$0xf]
          %v396 = vld [vmem:[#allocation6 + $0xc4] sm:$0xf]
          %v397 = vld [vmem:[#allocation6 + $0xc8] sm:$0xf]
          %v398 = vld [vmem:[#allocation6 + $0xcc] sm:$0xf]
          %v399 = vld [vmem:[#allocation6 + $0xd0] sm:$0xf]
          %v400 = vld [vmem:[#allocation6 + $0xd4] sm:$0xf]
          %v401 = vld [vmem:[#allocation6 + $0xd8] sm:$0xf]
          %v402 = vld [vmem:[#allocation6 + $0xdc] sm:$0xf]
          %v403 = vld [vmem:[#allocation6 + $0xe0] sm:$0xf]
          %v404 = vld [vmem:[#allocation6 + $0xe4] sm:$0xf]
          %v405 = vld [vmem:[#allocation6 + $0xe8] sm:$0xf]
          %v406 = vld [vmem:[#allocation6 + $0xec] sm:$0xf]
          %v407 = vld [vmem:[#allocation6 + $0xf0] sm:$0xf]
          %v408 = vld [vmem:[#allocation6 + $0xf4] sm:$0xf]
          %v409 = vld [vmem:[#allocation6 + $0xf8] sm:$0xf]
          %v410 = vld [vmem:[#allocation6 + $0xfc] sm:$0xf]
          %v411 = vld [vmem:[#allocation9] sm:$0xff]
          %v412 = vld [vmem:[#allocation9 + $0x8] sm:$0xff]
          %v413 = vld [vmem:[#allocation9 + $0x10] sm:$0xff]
          %v414 = vld [vmem:[#allocation9 + $0x18] sm:$0xff]
          %v415 = vld [vmem:[#allocation9 + $0x20] sm:$0xff]
          %v416 = vld [vmem:[#allocation9 + $0x28] sm:$0xff]
          %v417 = vld [vmem:[#allocation9 + $0x30] sm:$0xff]
          %v418 = vld [vmem:[#allocation9 + $0x38] sm:$0xff]
          %v419 = vld [vmem:[#allocation9 + $0x40] sm:$0xff]
          %v420 = vld [vmem:[#allocation9 + $0x48] sm:$0xff]
          %v421 = vld [vmem:[#allocation9 + $0x50] sm:$0xff]
          %v422 = vld [vmem:[#allocation9 + $0x58] sm:$0xff]
          %v423 = vld [vmem:[#allocation9 + $0x60] sm:$0xff]
          %v424 = vld [vmem:[#allocation9 + $0x68] sm:$0xff]
          %v425 = vld [vmem:[#allocation9 + $0x70] sm:$0xff]
          %v426 = vld [vmem:[#allocation9 + $0x78] sm:$0xff]
          %v427 = vld [vmem:[%s5] sm:$0x3]
          %v429 = vlaneseq
          %v430 = vshrl.u32 %v429, 7
          %v431 = vsub.s32 0, %v430
          %v432 = vrot.slane %v427, %v431
          %v433 = vlaneseq
          %v434 = vshrl.u32 %v433, 7
          %v435 = vsub.s32 1, %v434
          %v436 = vrot.slane %v427, %v435
          %v503 = vunpack.c.l.b16 %v347
          %v504 = vunpack.c.l.b16 %v348
          %v505 = vunpack.c.l.b16 %v349
          %v506 = vunpack.c.l.b16 %v350
          %v507 = vunpack.c.l.b16 %v351
          %v508 = vunpack.c.l.b16 %v352
          %v509 = vunpack.c.l.b16 %v353
          %v510 = vunpack.c.l.b16 %v354
          %v511 = vunpack.c.l.b16 %v355
          %v512 = vunpack.c.l.b16 %v356
          %v513 = vunpack.c.l.b16 %v357
          %v514 = vunpack.c.l.b16 %v358
          %v515 = vunpack.c.l.b16 %v359
          %v516 = vunpack.c.l.b16 %v360
          %v517 = vunpack.c.l.b16 %v361
          %v518 = vunpack.c.l.b16 %v362
          %v519 = vunpack.c.l.b16 %v363
          %v520 = vunpack.c.l.b16 %v364
          %v521 = vunpack.c.l.b16 %v365
          %v522 = vunpack.c.l.b16 %v366
          %v523 = vunpack.c.l.b16 %v367
          %v524 = vunpack.c.l.b16 %v368
          %v525 = vunpack.c.l.b16 %v369
          %v526 = vunpack.c.l.b16 %v370
          %v527 = vunpack.c.l.b16 %v371
          %v528 = vunpack.c.l.b16 %v372
          %v529 = vunpack.c.l.b16 %v373
          %v530 = vunpack.c.l.b16 %v374
          %v531 = vunpack.c.l.b16 %v375
          %v532 = vunpack.c.l.b16 %v376
          %v533 = vunpack.c.l.b16 %v377
          %v534 = vunpack.c.l.b16 %v378
          %v535 = vunpack.c.l.b16 %v379
          %v536 = vunpack.c.l.b16 %v380
          %v537 = vunpack.c.l.b16 %v381
          %v538 = vunpack.c.l.b16 %v382
          %v539 = vunpack.c.l.b16 %v383
          %v540 = vunpack.c.l.b16 %v384
          %v541 = vunpack.c.l.b16 %v385
          %v542 = vunpack.c.l.b16 %v386
          %v543 = vunpack.c.l.b16 %v387
          %v544 = vunpack.c.l.b16 %v388
          %v545 = vunpack.c.l.b16 %v389
          %v546 = vunpack.c.l.b16 %v390
          %v547 = vunpack.c.l.b16 %v391
          %v548 = vunpack.c.l.b16 %v392
          %v549 = vunpack.c.l.b16 %v393
          %v550 = vunpack.c.l.b16 %v394
          %v551 = vunpack.c.l.b16 %v395
          %v552 = vunpack.c.l.b16 %v396
          %v553 = vunpack.c.l.b16 %v397
          %v554 = vunpack.c.l.b16 %v398
          %v555 = vunpack.c.l.b16 %v399
          %v556 = vunpack.c.l.b16 %v400
          %v557 = vunpack.c.l.b16 %v401
          %v558 = vunpack.c.l.b16 %v402
          %v559 = vunpack.c.l.b16 %v403
          %v560 = vunpack.c.l.b16 %v404
          %v561 = vunpack.c.l.b16 %v405
          %v562 = vunpack.c.l.b16 %v406
          %v563 = vunpack.c.l.b16 %v407
          %v564 = vunpack.c.l.b16 %v408
          %v565 = vunpack.c.l.b16 %v409
          %v566 = vunpack.c.l.b16 %v410
          %v567 = vpack.c.b16 %v504, %v503
          %v568 = vpack.c.b16 %v506, %v505
          %v569 = vpack.c.b16 %v508, %v507
          %v570 = vpack.c.b16 %v510, %v509
          %v571 = vpack.c.b16 %v512, %v511
          %v572 = vpack.c.b16 %v514, %v513
          %v573 = vpack.c.b16 %v516, %v515
          %v574 = vpack.c.b16 %v518, %v517
          %v575 = vpack.c.b16 %v520, %v519
          %v576 = vpack.c.b16 %v522, %v521
          %v577 = vpack.c.b16 %v524, %v523
          %v578 = vpack.c.b16 %v526, %v525
          %v579 = vpack.c.b16 %v528, %v527
          %v580 = vpack.c.b16 %v530, %v529
          %v581 = vpack.c.b16 %v532, %v531
          %v582 = vpack.c.b16 %v534, %v533
          %v583 = vpack.c.b16 %v536, %v535
          %v584 = vpack.c.b16 %v538, %v537
          %v585 = vpack.c.b16 %v540, %v539
          %v586 = vpack.c.b16 %v542, %v541
          %v587 = vpack.c.b16 %v544, %v543
          %v588 = vpack.c.b16 %v546, %v545
          %v589 = vpack.c.b16 %v548, %v547
          %v590 = vpack.c.b16 %v550, %v549
          %v591 = vpack.c.b16 %v552, %v551
          %v592 = vpack.c.b16 %v554, %v553
          %v593 = vpack.c.b16 %v556, %v555
          %v594 = vpack.c.b16 %v558, %v557
          %v595 = vpack.c.b16 %v560, %v559
          %v596 = vpack.c.b16 %v562, %v561
          %v597 = vpack.c.b16 %v564, %v563
          %v598 = vpack.c.b16 %v566, %v565
          %v647 = vunpack.c.l.b16 %v411
          %v648 = vunpack.c.h.b16 %v411
          %v649 = vunpack.c.l.b16 %v412
          %v650 = vunpack.c.h.b16 %v412
          %v651 = vunpack.c.l.b16 %v413
          %v652 = vunpack.c.h.b16 %v413
          %v653 = vunpack.c.l.b16 %v414
          %v654 = vunpack.c.h.b16 %v414
          %v655 = vunpack.c.l.b16 %v415
          %v656 = vunpack.c.h.b16 %v415
          %v657 = vunpack.c.l.b16 %v416
          %v658 = vunpack.c.h.b16 %v416
          %v659 = vunpack.c.l.b16 %v417
          %v660 = vunpack.c.h.b16 %v417
          %v661 = vunpack.c.l.b16 %v418
          %v662 = vunpack.c.h.b16 %v418
          %v663 = vunpack.c.l.b16 %v419
          %v664 = vunpack.c.h.b16 %v419
          %v665 = vunpack.c.l.b16 %v420
          %v666 = vunpack.c.h.b16 %v420
          %v667 = vunpack.c.l.b16 %v421
          %v668 = vunpack.c.h.b16 %v421
          %v669 = vunpack.c.l.b16 %v422
          %v670 = vunpack.c.h.b16 %v422
          %v671 = vunpack.c.l.b16 %v423
          %v672 = vunpack.c.h.b16 %v423
          %v673 = vunpack.c.l.b16 %v424
          %v674 = vunpack.c.h.b16 %v424
          %v675 = vunpack.c.l.b16 %v425
          %v676 = vunpack.c.h.b16 %v425
          %v677 = vunpack.c.l.b16 %v426
          %v678 = vunpack.c.h.b16 %v426
          %v679 = vpack.c.b16 %v649, %v647
          %v680 = vpack.c.b16 %v650, %v648
          %v681 = vpack.c.b16 %v653, %v651
          %v682 = vpack.c.b16 %v654, %v652
          %v683 = vpack.c.b16 %v657, %v655
          %v684 = vpack.c.b16 %v658, %v656
          %v685 = vpack.c.b16 %v661, %v659
          %v686 = vpack.c.b16 %v662, %v660
          %v687 = vpack.c.b16 %v665, %v663
          %v688 = vpack.c.b16 %v666, %v664
          %v689 = vpack.c.b16 %v669, %v667
          %v690 = vpack.c.b16 %v670, %v668
          %v691 = vpack.c.b16 %v673, %v671
          %v692 = vpack.c.b16 %v674, %v672
          %v693 = vpack.c.b16 %v677, %v675
          %v694 = vpack.c.b16 %v678, %v676
          %711 = vmatprep.subr.bf16.mxu0 %v680
          %712 = vmatpush1.bf16.msra.mxu0 %v679
          %713 = vmatprep.subr.bf16.mxu0 %v682
          %714 = vmatpush1.bf16.msra.mxu0 %v681
          %715 = vmatprep.subr.bf16.mxu0 %v684
          %716 = vmatpush1.bf16.msra.mxu0 %v683
          %717 = vmatprep.subr.bf16.mxu0 %v686
          %718 = vmatpush1.bf16.msra.mxu0 %v685
          %719 = vmatprep.subr.bf16.mxu0 %v688
          %720 = vmatpush1.bf16.msra.mxu0 %v687
          %721 = vmatprep.subr.bf16.mxu0 %v690
          %722 = vmatpush1.bf16.msra.mxu0 %v689
          %723 = vmatprep.subr.bf16.mxu0 %v692
          %724 = vmatpush1.bf16.msra.mxu0 %v691
          %725 = vmatprep.subr.bf16.mxu0 %v694
          %726 = vmatpush1.bf16.msra.mxu0 %v693
          %727 = vmatprep.subr.bf16.mxu0 0
          %728 = vmatpush1.bf16.msra.mxu0 0
          %729 = vmatprep.subr.bf16.mxu0 0
          %730 = vmatpush1.bf16.msra.mxu0 0
          %731 = vmatprep.subr.bf16.mxu0 0
          %732 = vmatpush1.bf16.msra.mxu0 0
          %733 = vmatprep.subr.bf16.mxu0 0
          %734 = vmatpush1.bf16.msra.mxu0 0
          %735 = vmatprep.subr.bf16.mxu0 0
          %736 = vmatpush1.bf16.msra.mxu0 0
          %737 = vmatprep.subr.bf16.mxu0 0
          %738 = vmatpush1.bf16.msra.mxu0 0
          %739 = vmatprep.subr.bf16.mxu0 0
          %740 = vmatpush1.bf16.msra.mxu0 0
          %741 = vmatprep.subr.bf16.mxu0 0
          %742 = vmatpush1.bf16.msra.mxu0 0
          %743 = vmatprep.mubr.bf16.mxu0 0
          %744 = vmatmul.mubr.bf16.gmra.mrb[0].mxu0 %v567
          %v745 = vpop.f32.mrb[0].mxu0
          %v746 = vadd.f32 %v432, %v745
          %v747 = vpop.f32.mrb[0].mxu0
          %v748 = vadd.f32 %v436, %v747
          %v749 = vpop.f32.mrb[0].mxu0
          %v750 = vadd.f32 %v432, %v749
          %v751 = vpop.f32.mrb[0].mxu0
          %v752 = vadd.f32 %v436, %v751
          %753 = vmatprep.mubr.bf16.mxu0 0
          %754 = vmatmul.mubr.bf16.gmra.mrb[0].mxu0 %v568
          %v755 = vpop.f32.mrb[0].mxu0
          %v756 = vadd.f32 %v432, %v755
          %v757 = vpop.f32.mrb[0].mxu0
          %v758 = vadd.f32 %v436, %v757
          %v759 = vpop.f32.mrb[0].mxu0
          %v760 = vadd.f32 %v432, %v759
          %v761 = vpop.f32.mrb[0].mxu0
          %v762 = vadd.f32 %v436, %v761
          %763 = vmatprep.mubr.bf16.mxu0 0
          %764 = vmatmul.mubr.bf16.gmra.mrb[0].mxu0 %v569
          %v765 = vpop.f32.mrb[0].mxu0
          %v766 = vadd.f32 %v432, %v765
          %v767 = vpop.f32.mrb[0].mxu0
          %v768 = vadd.f32 %v436, %v767
          %v769 = vpop.f32.mrb[0].mxu0
          %v770 = vadd.f32 %v432, %v769
          %v771 = vpop.f32.mrb[0].mxu0
          %v772 = vadd.f32 %v436, %v771
          %773 = vmatprep.mubr.bf16.mxu0 0
          %774 = vmatmul.mubr.bf16.gmra.mrb[0].mxu0 %v570
          %v775 = vpop.f32.mrb[0].mxu0
          %v776 = vadd.f32 %v432, %v775
          %v777 = vpop.f32.mrb[0].mxu0
          %v778 = vadd.f32 %v436, %v777
          %v779 = vpop.f32.mrb[0].mxu0
          %v780 = vadd.f32 %v432, %v779
          %v781 = vpop.f32.mrb[0].mxu0
          %v782 = vadd.f32 %v436, %v781
          %783 = vmatprep.mubr.bf16.mxu0 0
          %784 = vmatmul.mubr.bf16.gmra.mrb[0].mxu0 %v571
          %v785 = vpop.f32.mrb[0].mxu0
          %v786 = vadd.f32 %v432, %v785
          %v787 = vpop.f32.mrb[0].mxu0
          %v788 = vadd.f32 %v436, %v787
          %v789 = vpop.f32.mrb[0].mxu0
          %v790 = vadd.f32 %v432, %v789
          %v791 = vpop.f32.mrb[0].mxu0
          %v792 = vadd.f32 %v436, %v791
          %793 = vmatprep.mubr.bf16.mxu0 0
          %794 = vmatmul.mubr.bf16.gmra.mrb[0].mxu0 %v572
          %v795 = vpop.f32.mrb[0].mxu0
          %v796 = vadd.f32 %v432, %v795
          %v797 = vpop.f32.mrb[0].mxu0
          %v798 = vadd.f32 %v436, %v797
          %v799 = vpop.f32.mrb[0].mxu0
          %v800 = vadd.f32 %v432, %v799
          %v801 = vpop.f32.mrb[0].mxu0
          %v802 = vadd.f32 %v436, %v801
          %803 = vmatprep.mubr.bf16.mxu0 0
          %804 = vmatmul.mubr.bf16.gmra.mrb[0].mxu0 %v573
          %v805 = vpop.f32.mrb[0].mxu0
          %v806 = vadd.f32 %v432, %v805
          %v807 = vpop.f32.mrb[0].mxu0
          %v808 = vadd.f32 %v436, %v807
          %v809 = vpop.f32.mrb[0].mxu0
          %v810 = vadd.f32 %v432, %v809
          %v811 = vpop.f32.mrb[0].mxu0
          %v812 = vadd.f32 %v436, %v811
          %813 = vmatprep.mubr.bf16.mxu0 0
          %814 = vmatmul.mubr.bf16.gmra.mrb[0].mxu0 %v574
          %v815 = vpop.f32.mrb[0].mxu0
          %v816 = vadd.f32 %v432, %v815
          %v817 = vpop.f32.mrb[0].mxu0
          %v818 = vadd.f32 %v436, %v817
          %v819 = vpop.f32.mrb[0].mxu0
          %v820 = vadd.f32 %v432, %v819
          %v821 = vpop.f32.mrb[0].mxu0
          %v822 = vadd.f32 %v436, %v821
          %823 = vmatprep.mubr.bf16.mxu0 0
          %824 = vmatmul.mubr.bf16.gmra.mrb[0].mxu0 %v575
          %v825 = vpop.f32.mrb[0].mxu0
          %v826 = vadd.f32 %v432, %v825
          %v827 = vpop.f32.mrb[0].mxu0
          %v828 = vadd.f32 %v436, %v827
          %v829 = vpop.f32.mrb[0].mxu0
          %v830 = vadd.f32 %v432, %v829
          %v831 = vpop.f32.mrb[0].mxu0
          %v832 = vadd.f32 %v436, %v831
          %833 = vmatprep.mubr.bf16.mxu0 0
          %834 = vmatmul.mubr.bf16.gmra.mrb[0].mxu0 %v576
          %v835 = vpop.f32.mrb[0].mxu0
          %v836 = vadd.f32 %v432, %v835
          %v837 = vpop.f32.mrb[0].mxu0
          %v838 = vadd.f32 %v436, %v837
          %v839 = vpop.f32.mrb[0].mxu0
          %v840 = vadd.f32 %v432, %v839
          %v841 = vpop.f32.mrb[0].mxu0
          %v842 = vadd.f32 %v436, %v841
          %843 = vmatprep.mubr.bf16.mxu0 0
          %844 = vmatmul.mubr.bf16.gmra.mrb[0].mxu0 %v577
          %v845 = vpop.f32.mrb[0].mxu0
          %v846 = vadd.f32 %v432, %v845
          %v847 = vpop.f32.mrb[0].mxu0
          %v848 = vadd.f32 %v436, %v847
          %v849 = vpop.f32.mrb[0].mxu0
          %v850 = vadd.f32 %v432, %v849
          %v851 = vpop.f32.mrb[0].mxu0
          %v852 = vadd.f32 %v436, %v851
          %853 = vmatprep.mubr.bf16.mxu0 0
          %854 = vmatmul.mubr.bf16.gmra.mrb[0].mxu0 %v578
          %v855 = vpop.f32.mrb[0].mxu0
          %v856 = vadd.f32 %v432, %v855
          %v857 = vpop.f32.mrb[0].mxu0
          %v858 = vadd.f32 %v436, %v857
          %v859 = vpop.f32.mrb[0].mxu0
          %v860 = vadd.f32 %v432, %v859
          %v861 = vpop.f32.mrb[0].mxu0
          %v862 = vadd.f32 %v436, %v861
          %863 = vmatprep.mubr.bf16.mxu0 0
          %864 = vmatmul.mubr.bf16.gmra.mrb[0].mxu0 %v579
          %v865 = vpop.f32.mrb[0].mxu0
          %v866 = vadd.f32 %v432, %v865
          %v867 = vpop.f32.mrb[0].mxu0
          %v868 = vadd.f32 %v436, %v867
          %v869 = vpop.f32.mrb[0].mxu0
          %v870 = vadd.f32 %v432, %v869
          %v871 = vpop.f32.mrb[0].mxu0
          %v872 = vadd.f32 %v436, %v871
          %873 = vmatprep.mubr.bf16.mxu0 0
          %874 = vmatmul.mubr.bf16.gmra.mrb[0].mxu0 %v580
          %v875 = vpop.f32.mrb[0].mxu0
          %v876 = vadd.f32 %v432, %v875
          %v877 = vpop.f32.mrb[0].mxu0
          %v878 = vadd.f32 %v436, %v877
          %v879 = vpop.f32.mrb[0].mxu0
          %v880 = vadd.f32 %v432, %v879
          %v881 = vpop.f32.mrb[0].mxu0
          %v882 = vadd.f32 %v436, %v881
          %883 = vmatprep.mubr.bf16.mxu0 0
          %884 = vmatmul.mubr.bf16.gmra.mrb[0].mxu0 %v581
          %v885 = vpop.f32.mrb[0].mxu0
          %v886 = vadd.f32 %v432, %v885
          %v887 = vpop.f32.mrb[0].mxu0
          %v888 = vadd.f32 %v436, %v887
          %v889 = vpop.f32.mrb[0].mxu0
          %v890 = vadd.f32 %v432, %v889
          %v891 = vpop.f32.mrb[0].mxu0
          %v892 = vadd.f32 %v436, %v891
          %893 = vmatprep.mubr.bf16.mxu0 0
          %894 = vmatmul.mubr.bf16.gmra.mrb[0].mxu0 %v582
          %v895 = vpop.f32.mrb[0].mxu0
          %v896 = vadd.f32 %v432, %v895
          %v897 = vpop.f32.mrb[0].mxu0
          %v898 = vadd.f32 %v436, %v897
          %v899 = vpop.f32.mrb[0].mxu0
          %v900 = vadd.f32 %v432, %v899
          %v901 = vpop.f32.mrb[0].mxu0
          %v902 = vadd.f32 %v436, %v901
          %903 = vmatprep.mubr.bf16.mxu0 0
          %904 = vmatmul.mubr.bf16.gmra.mrb[0].mxu0 %v583
          %v905 = vpop.f32.mrb[0].mxu0
          %v906 = vadd.f32 %v432, %v905
          %v907 = vpop.f32.mrb[0].mxu0
          %v908 = vadd.f32 %v436, %v907
          %v909 = vpop.f32.mrb[0].mxu0
          %v910 = vadd.f32 %v432, %v909
          %v911 = vpop.f32.mrb[0].mxu0
          %v912 = vadd.f32 %v436, %v911
          %913 = vmatprep.mubr.bf16.mxu0 0
          %914 = vmatmul.mubr.bf16.gmra.mrb[0].mxu0 %v584
          %v915 = vpop.f32.mrb[0].mxu0
          %v916 = vadd.f32 %v432, %v915
          %v917 = vpop.f32.mrb[0].mxu0
          %v918 = vadd.f32 %v436, %v917
          %v919 = vpop.f32.mrb[0].mxu0
          %v920 = vadd.f32 %v432, %v919
          %v921 = vpop.f32.mrb[0].mxu0
          %v922 = vadd.f32 %v436, %v921
          %923 = vmatprep.mubr.bf16.mxu0 0
          %924 = vmatmul.mubr.bf16.gmra.mrb[0].mxu0 %v585
          %v925 = vpop.f32.mrb[0].mxu0
          %v926 = vadd.f32 %v432, %v925
          %v927 = vpop.f32.mrb[0].mxu0
          %v928 = vadd.f32 %v436, %v927
          %v929 = vpop.f32.mrb[0].mxu0
          %v930 = vadd.f32 %v432, %v929
          %v931 = vpop.f32.mrb[0].mxu0
          %v932 = vadd.f32 %v436, %v931
          %933 = vmatprep.mubr.bf16.mxu0 0
          %934 = vmatmul.mubr.bf16.gmra.mrb[0].mxu0 %v586
          %v935 = vpop.f32.mrb[0].mxu0
          %v936 = vadd.f32 %v432, %v935
          %v937 = vpop.f32.mrb[0].mxu0
          %v938 = vadd.f32 %v436, %v937
          %v939 = vpop.f32.mrb[0].mxu0
          %v940 = vadd.f32 %v432, %v939
          %v941 = vpop.f32.mrb[0].mxu0
          %v942 = vadd.f32 %v436, %v941
          %943 = vmatprep.mubr.bf16.mxu0 0
          %944 = vmatmul.mubr.bf16.gmra.mrb[0].mxu0 %v587
          %v945 = vpop.f32.mrb[0].mxu0
          %v946 = vadd.f32 %v432, %v945
          %v947 = vpop.f32.mrb[0].mxu0
          %v948 = vadd.f32 %v436, %v947
          %v949 = vpop.f32.mrb[0].mxu0
          %v950 = vadd.f32 %v432, %v949
          %v951 = vpop.f32.mrb[0].mxu0
          %v952 = vadd.f32 %v436, %v951
          %953 = vmatprep.mubr.bf16.mxu0 0
          %954 = vmatmul.mubr.bf16.gmra.mrb[0].mxu0 %v588
          %v955 = vpop.f32.mrb[0].mxu0
          %v956 = vadd.f32 %v432, %v955
          %v957 = vpop.f32.mrb[0].mxu0
          %v958 = vadd.f32 %v436, %v957
          %v959 = vpop.f32.mrb[0].mxu0
          %v960 = vadd.f32 %v432, %v959
          %v961 = vpop.f32.mrb[0].mxu0
          %v962 = vadd.f32 %v436, %v961
          %963 = vmatprep.mubr.bf16.mxu0 0
          %964 = vmatmul.mubr.bf16.gmra.mrb[0].mxu0 %v589
          %v965 = vpop.f32.mrb[0].mxu0
          %v966 = vadd.f32 %v432, %v965
          %v967 = vpop.f32.mrb[0].mxu0
          %v968 = vadd.f32 %v436, %v967
          %v969 = vpop.f32.mrb[0].mxu0
          %v970 = vadd.f32 %v432, %v969
          %v971 = vpop.f32.mrb[0].mxu0
          %v972 = vadd.f32 %v436, %v971
          %973 = vmatprep.mubr.bf16.mxu0 0
          %974 = vmatmul.mubr.bf16.gmra.mrb[0].mxu0 %v590
          %v975 = vpop.f32.mrb[0].mxu0
          %v976 = vadd.f32 %v432, %v975
          %v977 = vpop.f32.mrb[0].mxu0
          %v978 = vadd.f32 %v436, %v977
          %v979 = vpop.f32.mrb[0].mxu0
          %v980 = vadd.f32 %v432, %v979
          %v981 = vpop.f32.mrb[0].mxu0
          %v982 = vadd.f32 %v436, %v981
          %983 = vmatprep.mubr.bf16.mxu0 0
          %984 = vmatmul.mubr.bf16.gmra.mrb[0].mxu0 %v591
          %v985 = vpop.f32.mrb[0].mxu0
          %v986 = vadd.f32 %v432, %v985
          %v987 = vpop.f32.mrb[0].mxu0
          %v988 = vadd.f32 %v436, %v987
          %v989 = vpop.f32.mrb[0].mxu0
          %v990 = vadd.f32 %v432, %v989
          %v991 = vpop.f32.mrb[0].mxu0
          %v992 = vadd.f32 %v436, %v991
          %993 = vmatprep.mubr.bf16.mxu0 0
          %994 = vmatmul.mubr.bf16.gmra.mrb[0].mxu0 %v592
          %v995 = vpop.f32.mrb[0].mxu0
          %v996 = vadd.f32 %v432, %v995
          %v997 = vpop.f32.mrb[0].mxu0
          %v998 = vadd.f32 %v436, %v997
          %v999 = vpop.f32.mrb[0].mxu0
          %v1000 = vadd.f32 %v432, %v999
          %v1001 = vpop.f32.mrb[0].mxu0
          %v1002 = vadd.f32 %v436, %v1001
          %1003 = vmatprep.mubr.bf16.mxu0 0
          %1004 = vmatmul.mubr.bf16.gmra.mrb[0].mxu0 %v593
          %v1005 = vpop.f32.mrb[0].mxu0
          %v1006 = vadd.f32 %v432, %v1005
          %v1007 = vpop.f32.mrb[0].mxu0
          %v1008 = vadd.f32 %v436, %v1007
          %v1009 = vpop.f32.mrb[0].mxu0
          %v1010 = vadd.f32 %v432, %v1009
          %v1011 = vpop.f32.mrb[0].mxu0
          %v1012 = vadd.f32 %v436, %v1011
          %1013 = vmatprep.mubr.bf16.mxu0 0
          %1014 = vmatmul.mubr.bf16.gmra.mrb[0].mxu0 %v594
          %v1015 = vpop.f32.mrb[0].mxu0
          %v1016 = vadd.f32 %v432, %v1015
          %v1017 = vpop.f32.mrb[0].mxu0
          %v1018 = vadd.f32 %v436, %v1017
          %v1019 = vpop.f32.mrb[0].mxu0
          %v1020 = vadd.f32 %v432, %v1019
          %v1021 = vpop.f32.mrb[0].mxu0
          %v1022 = vadd.f32 %v436, %v1021
          %1023 = vmatprep.mubr.bf16.mxu0 0
          %1024 = vmatmul.mubr.bf16.gmra.mrb[0].mxu0 %v595
          %v1025 = vpop.f32.mrb[0].mxu0
          %v1026 = vadd.f32 %v432, %v1025
          %v1027 = vpop.f32.mrb[0].mxu0
          %v1028 = vadd.f32 %v436, %v1027
          %v1029 = vpop.f32.mrb[0].mxu0
          %v1030 = vadd.f32 %v432, %v1029
          %v1031 = vpop.f32.mrb[0].mxu0
          %v1032 = vadd.f32 %v436, %v1031
          %1033 = vmatprep.mubr.bf16.mxu0 0
          %1034 = vmatmul.mubr.bf16.gmra.mrb[0].mxu0 %v596
          %v1035 = vpop.f32.mrb[0].mxu0
          %v1036 = vadd.f32 %v432, %v1035
          %v1037 = vpop.f32.mrb[0].mxu0
          %v1038 = vadd.f32 %v436, %v1037
          %v1039 = vpop.f32.mrb[0].mxu0
          %v1040 = vadd.f32 %v432, %v1039
          %v1041 = vpop.f32.mrb[0].mxu0
          %v1042 = vadd.f32 %v436, %v1041
          %1043 = vmatprep.mubr.bf16.mxu0 0
          %1044 = vmatmul.mubr.bf16.gmra.mrb[0].mxu0 %v597
          %v1045 = vpop.f32.mrb[0].mxu0
          %v1046 = vadd.f32 %v432, %v1045
          %v1047 = vpop.f32.mrb[0].mxu0
          %v1048 = vadd.f32 %v436, %v1047
          %v1049 = vpop.f32.mrb[0].mxu0
          %v1050 = vadd.f32 %v432, %v1049
          %v1051 = vpop.f32.mrb[0].mxu0
          %v1052 = vadd.f32 %v436, %v1051
          %1053 = vmatprep.mubr.bf16.mxu0 0
          %1054 = vmatmul.mubr.bf16.gmra.mrb[0].mxu0 %v598
          %v1055 = vpop.f32.mrb[0].mxu0
          %v1056 = vadd.f32 %v432, %v1055
          %v1057 = vpop.f32.mrb[0].mxu0
          %v1058 = vadd.f32 %v436, %v1057
          %v1059 = vpop.f32.mrb[0].mxu0
          %v1060 = vadd.f32 %v432, %v1059
          %v1061 = vpop.f32.mrb[0].mxu0
          %v1062 = vadd.f32 %v436, %v1061
          %1063 = vdwg.mxu0
          %v1064 = vpack.c.bf16 %v750, %v746
          %v1065 = vpack.c.bf16 %v752, %v748
          %v1066 = vpack.c.bf16 %v760, %v756
          %v1067 = vpack.c.bf16 %v762, %v758
          %v1068 = vpack.c.bf16 %v770, %v766
          %v1069 = vpack.c.bf16 %v772, %v768
          %v1070 = vpack.c.bf16 %v780, %v776
          %v1071 = vpack.c.bf16 %v782, %v778
          %v1072 = vpack.c.bf16 %v790, %v786
          %v1073 = vpack.c.bf16 %v792, %v788
          %v1074 = vpack.c.bf16 %v800, %v796
          %v1075 = vpack.c.bf16 %v802, %v798
          %v1076 = vpack.c.bf16 %v810, %v806
          %v1077 = vpack.c.bf16 %v812, %v808
          %v1078 = vpack.c.bf16 %v820, %v816
          %v1079 = vpack.c.bf16 %v822, %v818
          %v1080 = vpack.c.bf16 %v830, %v826
          %v1081 = vpack.c.bf16 %v832, %v828
          %v1082 = vpack.c.bf16 %v840, %v836
          %v1083 = vpack.c.bf16 %v842, %v838
          %v1084 = vpack.c.bf16 %v850, %v846
          %v1085 = vpack.c.bf16 %v852, %v848
          %v1086 = vpack.c.bf16 %v860, %v856
          %v1087 = vpack.c.bf16 %v862, %v858
          %v1088 = vpack.c.bf16 %v870, %v866
          %v1089 = vpack.c.bf16 %v872, %v868
          %v1090 = vpack.c.bf16 %v880, %v876
          %v1091 = vpack.c.bf16 %v882, %v878
          %v1092 = vpack.c.bf16 %v890, %v886
          %v1093 = vpack.c.bf16 %v892, %v888
          %v1094 = vpack.c.bf16 %v900, %v896
          %v1095 = vpack.c.bf16 %v902, %v898
          %v1096 = vpack.c.bf16 %v910, %v906
          %v1097 = vpack.c.bf16 %v912, %v908
          %v1098 = vpack.c.bf16 %v920, %v916
          %v1099 = vpack.c.bf16 %v922, %v918
          %v1100 = vpack.c.bf16 %v930, %v926
          %v1101 = vpack.c.bf16 %v932, %v928
          %v1102 = vpack.c.bf16 %v940, %v936
          %v1103 = vpack.c.bf16 %v942, %v938
          %v1104 = vpack.c.bf16 %v950, %v946
          %v1105 = vpack.c.bf16 %v952, %v948
          %v1106 = vpack.c.bf16 %v960, %v956
          %v1107 = vpack.c.bf16 %v962, %v958
          %v1108 = vpack.c.bf16 %v970, %v966
          %v1109 = vpack.c.bf16 %v972, %v968
          %v1110 = vpack.c.bf16 %v980, %v976
          %v1111 = vpack.c.bf16 %v982, %v978
          %v1112 = vpack.c.bf16 %v990, %v986
          %v1113 = vpack.c.bf16 %v992, %v988
          %v1114 = vpack.c.bf16 %v1000, %v996
          %v1115 = vpack.c.bf16 %v1002, %v998
          %v1116 = vpack.c.bf16 %v1010, %v1006
          %v1117 = vpack.c.bf16 %v1012, %v1008
          %v1118 = vpack.c.bf16 %v1020, %v1016
          %v1119 = vpack.c.bf16 %v1022, %v1018
          %v1120 = vpack.c.bf16 %v1030, %v1026
          %v1121 = vpack.c.bf16 %v1032, %v1028
          %v1122 = vpack.c.bf16 %v1040, %v1036
          %v1123 = vpack.c.bf16 %v1042, %v1038
          %v1124 = vpack.c.bf16 %v1050, %v1046
          %v1125 = vpack.c.bf16 %v1052, %v1048
          %v1126 = vpack.c.bf16 %v1060, %v1056
          %v1127 = vpack.c.bf16 %v1062, %v1058
          %1128 = vst [vmem:[#allocation2] sm:$0xff] %v1064
          %1129 = vst [vmem:[#allocation2 + $0x8] sm:$0xff] %v1065
          %1130 = vst [vmem:[#allocation2 + $0x10] sm:$0xff] %v1066
          %1131 = vst [vmem:[#allocation2 + $0x18] sm:$0xff] %v1067
          %1132 = vst [vmem:[#allocation2 + $0x20] sm:$0xff] %v1068
          %1133 = vst [vmem:[#allocation2 + $0x28] sm:$0xff] %v1069
          %1134 = vst [vmem:[#allocation2 + $0x30] sm:$0xff] %v1070
          %1135 = vst [vmem:[#allocation2 + $0x38] sm:$0xff] %v1071
          %1136 = vst [vmem:[#allocation2 + $0x40] sm:$0xff] %v1072
          %1137 = vst [vmem:[#allocation2 + $0x48] sm:$0xff] %v1073
          %1138 = vst [vmem:[#allocation2 + $0x50] sm:$0xff] %v1074
          %1139 = vst [vmem:[#allocation2 + $0x58] sm:$0xff] %v1075
          %1140 = vst [vmem:[#allocation2 + $0x60] sm:$0xff] %v1076
          %1141 = vst [vmem:[#allocation2 + $0x68] sm:$0xff] %v1077
          %1142 = vst [vmem:[#allocation2 + $0x70] sm:$0xff] %v1078
          %1143 = vst [vmem:[#allocation2 + $0x78] sm:$0xff] %v1079
          %1144 = vst [vmem:[#allocation2 + $0x80] sm:$0xff] %v1080
          %1145 = vst [vmem:[#allocation2 + $0x88] sm:$0xff] %v1081
          %1146 = vst [vmem:[#allocation2 + $0x90] sm:$0xff] %v1082
          %1147 = vst [vmem:[#allocation2 + $0x98] sm:$0xff] %v1083
          %1148 = vst [vmem:[#allocation2 + $0xa0] sm:$0xff] %v1084
          %1149 = vst [vmem:[#allocation2 + $0xa8] sm:$0xff] %v1085
          %1150 = vst [vmem:[#allocation2 + $0xb0] sm:$0xff] %v1086
          %1151 = vst [vmem:[#allocation2 + $0xb8] sm:$0xff] %v1087
          %1152 = vst [vmem:[#allocation2 + $0xc0] sm:$0xff] %v1088
          %1153 = vst [vmem:[#allocation2 + $0xc8] sm:$0xff] %v1089
          %1154 = vst [vmem:[#allocation2 + $0xd0] sm:$0xff] %v1090
          %1155 = vst [vmem:[#allocation2 + $0xd8] sm:$0xff] %v1091
          %1156 = vst [vmem:[#allocation2 + $0xe0] sm:$0xff] %v1092
          %1157 = vst [vmem:[#allocation2 + $0xe8] sm:$0xff] %v1093
          %1158 = vst [vmem:[#allocation2 + $0xf0] sm:$0xff] %v1094
          %1159 = vst [vmem:[#allocation2 + $0xf8] sm:$0xff] %v1095
          %1160 = vst [vmem:[#allocation2 + $0x100] sm:$0xff] %v1096
          %1161 = vst [vmem:[#allocation2 + $0x108] sm:$0xff] %v1097
          %1162 = vst [vmem:[#allocation2 + $0x110] sm:$0xff] %v1098
          %1163 = vst [vmem:[#allocation2 + $0x118] sm:$0xff] %v1099
          %1164 = vst [vmem:[#allocation2 + $0x120] sm:$0xff] %v1100
          %1165 = vst [vmem:[#allocation2 + $0x128] sm:$0xff] %v1101
          %1166 = vst [vmem:[#allocation2 + $0x130] sm:$0xff] %v1102
          %1167 = vst [vmem:[#allocation2 + $0x138] sm:$0xff] %v1103
          %1168 = vst [vmem:[#allocation2 + $0x140] sm:$0xff] %v1104
          %1169 = vst [vmem:[#allocation2 + $0x148] sm:$0xff] %v1105
          %1170 = vst [vmem:[#allocation2 + $0x150] sm:$0xff] %v1106
          %1171 = vst [vmem:[#allocation2 + $0x158] sm:$0xff] %v1107
          %1172 = vst [vmem:[#allocation2 + $0x160] sm:$0xff] %v1108
          %1173 = vst [vmem:[#allocation2 + $0x168] sm:$0xff] %v1109
          %1174 = vst [vmem:[#allocation2 + $0x170] sm:$0xff] %v1110
          %1175 = vst [vmem:[#allocation2 + $0x178] sm:$0xff] %v1111
          %1176 = vst [vmem:[#allocation2 + $0x180] sm:$0xff] %v1112
          %1177 = vst [vmem:[#allocation2 + $0x188] sm:$0xff] %v1113
          %1178 = vst [vmem:[#allocation2 + $0x190] sm:$0xff] %v1114
          %1179 = vst [vmem:[#allocation2 + $0x198] sm:$0xff] %v1115
          %1180 = vst [vmem:[#allocation2 + $0x1a0] sm:$0xff] %v1116
          %1181 = vst [vmem:[#allocation2 + $0x1a8] sm:$0xff] %v1117
          %1182 = vst [vmem:[#allocation2 + $0x1b0] sm:$0xff] %v1118
          %1183 = vst [vmem:[#allocation2 + $0x1b8] sm:$0xff] %v1119
          %1184 = vst [vmem:[#allocation2 + $0x1c0] sm:$0xff] %v1120
          %1185 = vst [vmem:[#allocation2 + $0x1c8] sm:$0xff] %v1121
          %1186 = vst [vmem:[#allocation2 + $0x1d0] sm:$0xff] %v1122
          %1187 = vst [vmem:[#allocation2 + $0x1d8] sm:$0xff] %v1123
          %1188 = vst [vmem:[#allocation2 + $0x1e0] sm:$0xff] %v1124
          %1189 = vst [vmem:[#allocation2 + $0x1e8] sm:$0xff] %v1125
          %1190 = vst [vmem:[#allocation2 + $0x1f0] sm:$0xff] %v1126
          %1191 = vst [vmem:[#allocation2 + $0x1f8] sm:$0xff] %v1127
        $region64: #{tpu_custom_call.1} parent=43 // pred_fallthru
          _
        %v1192 = vld [vmem:[%s295] sm:$0xf]
        %v1193 = vld [vmem:[%s295 + $0x4] sm:$0xf]
        %v1194 = vld [vmem:[%s295 + $0x8] sm:$0xf]
        %v1195 = vld [vmem:[%s295 + $0xc] sm:$0xf]
        %v1196 = vld [vmem:[%s295 + $0x10] sm:$0xf]
        %v1197 = vld [vmem:[%s295 + $0x14] sm:$0xf]
        %v1198 = vld [vmem:[%s295 + $0x18] sm:$0xf]
        %v1199 = vld [vmem:[%s295 + $0x1c] sm:$0xf]
        %v1200 = vld [vmem:[%s295 + $0x20] sm:$0xf]
        %v1201 = vld [vmem:[%s295 + $0x24] sm:$0xf]
        %v1202 = vld [vmem:[%s295 + $0x28] sm:$0xf]
        %v1203 = vld [vmem:[%s295 + $0x2c] sm:$0xf]
        %v1204 = vld [vmem:[%s295 + $0x30] sm:$0xf]
        %v1205 = vld [vmem:[%s295 + $0x34] sm:$0xf]
        %v1206 = vld [vmem:[%s295 + $0x38] sm:$0xf]
        %v1207 = vld [vmem:[%s295 + $0x3c] sm:$0xf]
        %v1208 = vld [vmem:[%s295 + $0x40] sm:$0xf]
        %v1209 = vld [vmem:[%s295 + $0x44] sm:$0xf]
        %v1210 = vld [vmem:[%s295 + $0x48] sm:$0xf]
        %v1211 = vld [vmem:[%s295 + $0x4c] sm:$0xf]
        %v1212 = vld [vmem:[%s295 + $0x50] sm:$0xf]
        %v1213 = vld [vmem:[%s295 + $0x54] sm:$0xf]
        %v1214 = vld [vmem:[%s295 + $0x58] sm:$0xf]
        %v1215 = vld [vmem:[%s295 + $0x5c] sm:$0xf]
        %v1216 = vld [vmem:[%s295 + $0x60] sm:$0xf]
        %v1217 = vld [vmem:[%s295 + $0x64] sm:$0xf]
        %v1218 = vld [vmem:[%s295 + $0x68] sm:$0xf]
        %v1219 = vld [vmem:[%s295 + $0x6c] sm:$0xf]
        %v1220 = vld [vmem:[%s295 + $0x70] sm:$0xf]
        %v1221 = vld [vmem:[%s295 + $0x74] sm:$0xf]
        %v1222 = vld [vmem:[%s295 + $0x78] sm:$0xf]
        %v1223 = vld [vmem:[%s295 + $0x7c] sm:$0xf]
        %v1224 = vld [vmem:[%s295 + $0x80] sm:$0xf]
        %v1225 = vld [vmem:[%s295 + $0x84] sm:$0xf]
        %v1226 = vld [vmem:[%s295 + $0x88] sm:$0xf]
        %v1227 = vld [vmem:[%s295 + $0x8c] sm:$0xf]
        %v1228 = vld [vmem:[%s295 + $0x90] sm:$0xf]
        %v1229 = vld [vmem:[%s295 + $0x94] sm:$0xf]
        %v1230 = vld [vmem:[%s295 + $0x98] sm:$0xf]
        %v1231 = vld [vmem:[%s295 + $0x9c] sm:$0xf]
        %v1232 = vld [vmem:[%s295 + $0xa0] sm:$0xf]
        %v1233 = vld [vmem:[%s295 + $0xa4] sm:$0xf]
        %v1234 = vld [vmem:[%s295 + $0xa8] sm:$0xf]
        %v1235 = vld [vmem:[%s295 + $0xac] sm:$0xf]
        %v1236 = vld [vmem:[%s295 + $0xb0] sm:$0xf]
        %v1237 = vld [vmem:[%s295 + $0xb4] sm:$0xf]
        %v1238 = vld [vmem:[#allocation8] sm:$0xf]
        %v1239 = vld [vmem:[#allocation8 + $0x4] sm:$0xf]
        %v1240 = vld [vmem:[#allocation8 + $0x8] sm:$0xf]
        %v1241 = vld [vmem:[#allocation8 + $0xc] sm:$0xf]
        %v1242 = vld [vmem:[#allocation8 + $0x10] sm:$0xf]
        %v1243 = vld [vmem:[#allocation8 + $0x14] sm:$0xf]
        %v1244 = vld [vmem:[#allocation8 + $0x18] sm:$0xf]
        %v1245 = vld [vmem:[#allocation8 + $0x1c] sm:$0xf]
        %v1246 = vld [vmem:[#allocation8 + $0x20] sm:$0xf]
        %v1247 = vld [vmem:[#allocation8 + $0x24] sm:$0xf]
        %v1248 = vld [vmem:[#allocation8 + $0x28] sm:$0xf]
        %v1249 = vld [vmem:[#allocation8 + $0x2c] sm:$0xf]
        %v1250 = vld [vmem:[#allocation8 + $0x30] sm:$0xf]
        %v1251 = vld [vmem:[#allocation8 + $0x34] sm:$0xf]
        %v1252 = vld [vmem:[#allocation8 + $0x38] sm:$0xf]
        %v1253 = vld [vmem:[#allocation8 + $0x3c] sm:$0xf]
        %v1254 = vld [vmem:[%s3] sm:$0x1]
        %v1256 = vlaneseq
        %v1257 = vshrl.u32 %v1256, 7
        %v1258 = vsub.s32 0, %v1257
        %v1259 = vrot.slane %v1254, %v1258
        %v1307 = vunpack.c.l.b16 %v1192
        %v1308 = vunpack.c.l.b16 %v1193
        %v1309 = vunpack.c.l.b16 %v1194
        %v1310 = vunpack.c.l.b16 %v1195
        %v1311 = vunpack.c.l.b16 %v1196
        %v1312 = vunpack.c.l.b16 %v1197
        %v1313 = vunpack.c.l.b16 %v1198
        %v1314 = vunpack.c.l.b16 %v1199
        %v1315 = vunpack.c.l.b16 %v1200
        %v1316 = vunpack.c.l.b16 %v1201
        %v1317 = vunpack.c.l.b16 %v1202
        %v1318 = vunpack.c.l.b16 %v1203
        %v1319 = vunpack.c.l.b16 %v1204
        %v1320 = vunpack.c.l.b16 %v1205
        %v1321 = vunpack.c.l.b16 %v1206
        %v1322 = vunpack.c.l.b16 %v1207
        %v1323 = vunpack.c.l.b16 %v1208
        %v1324 = vunpack.c.l.b16 %v1209
        %v1325 = vunpack.c.l.b16 %v1210
        %v1326 = vunpack.c.l.b16 %v1211
        %v1327 = vunpack.c.l.b16 %v1212
        %v1328 = vunpack.c.l.b16 %v1213
        %v1329 = vunpack.c.l.b16 %v1214
        %v1330 = vunpack.c.l.b16 %v1215
        %v1331 = vunpack.c.l.b16 %v1216
        %v1332 = vunpack.c.l.b16 %v1217
        %v1333 = vunpack.c.l.b16 %v1218
        %v1334 = vunpack.c.l.b16 %v1219
        %v1335 = vunpack.c.l.b16 %v1220
        %v1336 = vunpack.c.l.b16 %v1221
        %v1337 = vunpack.c.l.b16 %v1222
        %v1338 = vunpack.c.l.b16 %v1223
        %v1339 = vunpack.c.l.b16 %v1224
        %v1340 = vunpack.c.l.b16 %v1225
        %v1341 = vunpack.c.l.b16 %v1226
        %v1342 = vunpack.c.l.b16 %v1227
        %v1343 = vunpack.c.l.b16 %v1228
        %v1344 = vunpack.c.l.b16 %v1229
        %v1345 = vunpack.c.l.b16 %v1230
        %v1346 = vunpack.c.l.b16 %v1231
        %v1347 = vunpack.c.l.b16 %v1232
        %v1348 = vunpack.c.l.b16 %v1233
        %v1349 = vunpack.c.l.b16 %v1234
        %v1350 = vunpack.c.l.b16 %v1235
        %v1351 = vunpack.c.l.b16 %v1236
        %v1352 = vunpack.c.l.b16 %v1237
        %v1353 = vpack.c.b16 %v1308, %v1307
        %v1354 = vpack.c.b16 %v1310, %v1309
        %v1355 = vpack.c.b16 %v1312, %v1311
        %v1356 = vpack.c.b16 %v1314, %v1313
        %v1357 = vpack.c.b16 %v1316, %v1315
        %v1358 = vpack.c.b16 %v1318, %v1317
        %v1359 = vpack.c.b16 %v1320, %v1319
        %v1360 = vpack.c.b16 %v1322, %v1321
        %v1361 = vpack.c.b16 %v1324, %v1323
        %v1362 = vpack.c.b16 %v1326, %v1325
        %v1363 = vpack.c.b16 %v1328, %v1327
        %v1364 = vpack.c.b16 %v1330, %v1329
        %v1365 = vpack.c.b16 %v1332, %v1331
        %v1366 = vpack.c.b16 %v1334, %v1333
        %v1367 = vpack.c.b16 %v1336, %v1335
        %v1368 = vpack.c.b16 %v1338, %v1337
        %v1369 = vpack.c.b16 %v1340, %v1339
        %v1370 = vpack.c.b16 %v1342, %v1341
        %v1371 = vpack.c.b16 %v1344, %v1343
        %v1372 = vpack.c.b16 %v1346, %v1345
        %v1373 = vpack.c.b16 %v1348, %v1347
        %v1374 = vpack.c.b16 %v1350, %v1349
        %v1375 = vpack.c.b16 %v1352, %v1351
        %v1415 = vunpack.c.l.b16 %v1238
        %v1416 = vunpack.c.l.b16 %v1239
        %v1417 = vunpack.c.l.b16 %v1240
        %v1418 = vunpack.c.l.b16 %v1241
        %v1419 = vunpack.c.l.b16 %v1242
        %v1420 = vunpack.c.l.b16 %v1243
        %v1421 = vunpack.c.l.b16 %v1244
        %v1422 = vunpack.c.l.b16 %v1245
        %v1423 = vunpack.c.l.b16 %v1246
        %v1424 = vunpack.c.l.b16 %v1247
        %v1425 = vunpack.c.l.b16 %v1248
        %v1426 = vunpack.c.l.b16 %v1249
        %v1427 = vunpack.c.l.b16 %v1250
        %v1428 = vunpack.c.l.b16 %v1251
        %v1429 = vunpack.c.l.b16 %v1252
        %v1430 = vunpack.c.l.b16 %v1253
        %v1431 = vpack.c.b16 %v1416, %v1415
        %v1432 = vpack.c.b16 %v1418, %v1417
        %v1433 = vpack.c.b16 %v1420, %v1419
        %v1434 = vpack.c.b16 %v1422, %v1421
        %v1435 = vpack.c.b16 %v1424, %v1423
        %v1436 = vpack.c.b16 %v1426, %v1425
        %v1437 = vpack.c.b16 %v1428, %v1427
        %v1438 = vpack.c.b16 %v1430, %v1429
        %1447 = vmatprep.subr.bf16.mxu0 0
        %1448 = vmatpush1.bf16.msra.mxu0 %v1431
        %1449 = vmatprep.subr.bf16.mxu0 0
        %1450 = vmatpush1.bf16.msra.mxu0 %v1432
        %1451 = vmatprep.subr.bf16.mxu0 0
        %1452 = vmatpush1.bf16.msra.mxu0 %v1433
        %1453 = vmatprep.subr.bf16.mxu0 0
        %1454 = vmatpush1.bf16.msra.mxu0 %v1434
        %1455 = vmatprep.subr.bf16.mxu0 0
        %1456 = vmatpush1.bf16.msra.mxu0 %v1435
        %1457 = vmatprep.subr.bf16.mxu0 0
        %1458 = vmatpush1.bf16.msra.mxu0 %v1436
        %1459 = vmatprep.subr.bf16.mxu0 0
        %1460 = vmatpush1.bf16.msra.mxu0 %v1437
        %1461 = vmatprep.subr.bf16.mxu0 0
        %1462 = vmatpush1.bf16.msra.mxu0 %v1438
        %1463 = vmatprep.subr.bf16.mxu0 0
        %1464 = vmatpush1.bf16.msra.mxu0 0
        %1465 = vmatprep.subr.bf16.mxu0 0
        %1466 = vmatpush1.bf16.msra.mxu0 0
        %1467 = vmatprep.subr.bf16.mxu0 0
        %1468 = vmatpush1.bf16.msra.mxu0 0
        %1469 = vmatprep.subr.bf16.mxu0 0
        %1470 = vmatpush1.bf16.msra.mxu0 0
        %1471 = vmatprep.subr.bf16.mxu0 0
        %1472 = vmatpush1.bf16.msra.mxu0 0
        %1473 = vmatprep.subr.bf16.mxu0 0
        %1474 = vmatpush1.bf16.msra.mxu0 0
        %1475 = vmatprep.subr.bf16.mxu0 0
        %1476 = vmatpush1.bf16.msra.mxu0 0
        %1477 = vmatprep.subr.bf16.mxu0 0
        %1478 = vmatpush1.bf16.msra.mxu0 0
        %1479 = vmatprep.mubr.bf16.mxu0 0
        %1480 = vmatmul.mubr.bf16.gmra.mrb[0].mxu0 %v1353
        %v1481 = vpop.f32.mrb[0].mxu0
        %v1482 = vadd.f32 %v1259, %v1481
        %v1483 = vpop.f32.mrb[0].mxu0
        %v1484 = vpop.f32.mrb[0].mxu0
        %v1485 = vadd.f32 %v1259, %v1484
        %v1486 = vpop.f32.mrb[0].mxu0
        %1487 = vmatprep.mubr.bf16.mxu0 0
        %1488 = vmatmul.mubr.bf16.gmra.mrb[0].mxu0 %v1354
        %v1489 = vpop.f32.mrb[0].mxu0
        %v1490 = vadd.f32 %v1259, %v1489
        %v1491 = vpop.f32.mrb[0].mxu0
        %v1492 = vpop.f32.mrb[0].mxu0
        %v1493 = vadd.f32 %v1259, %v1492
        %v1494 = vpop.f32.mrb[0].mxu0
        %1495 = vmatprep.mubr.bf16.mxu0 0
        %1496 = vmatmul.mubr.bf16.gmra.mrb[0].mxu0 %v1355
        %v1497 = vpop.f32.mrb[0].mxu0
        %v1498 = vadd.f32 %v1259, %v1497
        %v1499 = vpop.f32.mrb[0].mxu0
        %v1500 = vpop.f32.mrb[0].mxu0
        %v1501 = vadd.f32 %v1259, %v1500
        %v1502 = vpop.f32.mrb[0].mxu0
        %1503 = vmatprep.mubr.bf16.mxu0 0
        %1504 = vmatmul.mubr.bf16.gmra.mrb[0].mxu0 %v1356
        %v1505 = vpop.f32.mrb[0].mxu0
        %v1506 = vadd.f32 %v1259, %v1505
        %v1507 = vpop.f32.mrb[0].mxu0
        %v1508 = vpop.f32.mrb[0].mxu0
        %v1509 = vadd.f32 %v1259, %v1508
        %v1510 = vpop.f32.mrb[0].mxu0
        %1511 = vmatprep.mubr.bf16.mxu0 0
        %1512 = vmatmul.mubr.bf16.gmra.mrb[0].mxu0 %v1357
        %v1513 = vpop.f32.mrb[0].mxu0
        %v1514 = vadd.f32 %v1259, %v1513
        %v1515 = vpop.f32.mrb[0].mxu0
        %v1516 = vpop.f32.mrb[0].mxu0
        %v1517 = vadd.f32 %v1259, %v1516
        %v1518 = vpop.f32.mrb[0].mxu0
        %1519 = vmatprep.mubr.bf16.mxu0 0
        %1520 = vmatmul.mubr.bf16.gmra.mrb[0].mxu0 %v1358
        %v1521 = vpop.f32.mrb[0].mxu0
        %v1522 = vadd.f32 %v1259, %v1521
        %v1523 = vpop.f32.mrb[0].mxu0
        %v1524 = vpop.f32.mrb[0].mxu0
        %v1525 = vadd.f32 %v1259, %v1524
        %v1526 = vpop.f32.mrb[0].mxu0
        %1527 = vmatprep.mubr.bf16.mxu0 0
        %1528 = vmatmul.mubr.bf16.gmra.mrb[0].mxu0 %v1359
        %v1529 = vpop.f32.mrb[0].mxu0
        %v1530 = vadd.f32 %v1259, %v1529
        %v1531 = vpop.f32.mrb[0].mxu0
        %v1532 = vpop.f32.mrb[0].mxu0
        %v1533 = vadd.f32 %v1259, %v1532
        %v1534 = vpop.f32.mrb[0].mxu0
        %1535 = vmatprep.mubr.bf16.mxu0 0
        %1536 = vmatmul.mubr.bf16.gmra.mrb[0].mxu0 %v1360
        %v1537 = vpop.f32.mrb[0].mxu0
        %v1538 = vadd.f32 %v1259, %v1537
        %v1539 = vpop.f32.mrb[0].mxu0
        %v1540 = vpop.f32.mrb[0].mxu0
        %v1541 = vadd.f32 %v1259, %v1540
        %v1542 = vpop.f32.mrb[0].mxu0
        %1543 = vmatprep.mubr.bf16.mxu0 0
        %1544 = vmatmul.mubr.bf16.gmra.mrb[0].mxu0 %v1361
        %v1545 = vpop.f32.mrb[0].mxu0
        %v1546 = vadd.f32 %v1259, %v1545
        %v1547 = vpop.f32.mrb[0].mxu0
        %v1548 = vpop.f32.mrb[0].mxu0
        %v1549 = vadd.f32 %v1259, %v1548
        %v1550 = vpop.f32.mrb[0].mxu0
        %1551 = vmatprep.mubr.bf16.mxu0 0
        %1552 = vmatmul.mubr.bf16.gmra.mrb[0].mxu0 %v1362
        %v1553 = vpop.f32.mrb[0].mxu0
        %v1554 = vadd.f32 %v1259, %v1553
        %v1555 = vpop.f32.mrb[0].mxu0
        %v1556 = vpop.f32.mrb[0].mxu0
        %v1557 = vadd.f32 %v1259, %v1556
        %v1558 = vpop.f32.mrb[0].mxu0
        %1559 = vmatprep.mubr.bf16.mxu0 0
        %1560 = vmatmul.mubr.bf16.gmra.mrb[0].mxu0 %v1363
        %v1561 = vpop.f32.mrb[0].mxu0
        %v1562 = vadd.f32 %v1259, %v1561
        %v1563 = vpop.f32.mrb[0].mxu0
        %v1564 = vpop.f32.mrb[0].mxu0
        %v1565 = vadd.f32 %v1259, %v1564
        %v1566 = vpop.f32.mrb[0].mxu0
        %1567 = vmatprep.mubr.bf16.mxu0 0
        %1568 = vmatmul.mubr.bf16.gmra.mrb[0].mxu0 %v1364
        %v1569 = vpop.f32.mrb[0].mxu0
        %v1570 = vadd.f32 %v1259, %v1569
        %v1571 = vpop.f32.mrb[0].mxu0
        %v1572 = vpop.f32.mrb[0].mxu0
        %v1573 = vadd.f32 %v1259, %v1572
        %v1574 = vpop.f32.mrb[0].mxu0
        %1575 = vmatprep.mubr.bf16.mxu0 0
        %1576 = vmatmul.mubr.bf16.gmra.mrb[0].mxu0 %v1365
        %v1577 = vpop.f32.mrb[0].mxu0
        %v1578 = vadd.f32 %v1259, %v1577
        %v1579 = vpop.f32.mrb[0].mxu0
        %v1580 = vpop.f32.mrb[0].mxu0
        %v1581 = vadd.f32 %v1259, %v1580
        %v1582 = vpop.f32.mrb[0].mxu0
        %1583 = vmatprep.mubr.bf16.mxu0 0
        %1584 = vmatmul.mubr.bf16.gmra.mrb[0].mxu0 %v1366
        %v1585 = vpop.f32.mrb[0].mxu0
        %v1586 = vadd.f32 %v1259, %v1585
        %v1587 = vpop.f32.mrb[0].mxu0
        %v1588 = vpop.f32.mrb[0].mxu0
        %v1589 = vadd.f32 %v1259, %v1588
        %v1590 = vpop.f32.mrb[0].mxu0
        %1591 = vmatprep.mubr.bf16.mxu0 0
        %1592 = vmatmul.mubr.bf16.gmra.mrb[0].mxu0 %v1367
        %v1593 = vpop.f32.mrb[0].mxu0
        %v1594 = vadd.f32 %v1259, %v1593
        %v1595 = vpop.f32.mrb[0].mxu0
        %v1596 = vpop.f32.mrb[0].mxu0
        %v1597 = vadd.f32 %v1259, %v1596
        %v1598 = vpop.f32.mrb[0].mxu0
        %1599 = vmatprep.mubr.bf16.mxu0 0
        %1600 = vmatmul.mubr.bf16.gmra.mrb[0].mxu0 %v1368
        %v1601 = vpop.f32.mrb[0].mxu0
        %v1602 = vadd.f32 %v1259, %v1601
        %v1603 = vpop.f32.mrb[0].mxu0
        %v1604 = vpop.f32.mrb[0].mxu0
        %v1605 = vadd.f32 %v1259, %v1604
        %v1606 = vpop.f32.mrb[0].mxu0
        %1607 = vmatprep.mubr.bf16.mxu0 0
        %1608 = vmatmul.mubr.bf16.gmra.mrb[0].mxu0 %v1369
        %v1609 = vpop.f32.mrb[0].mxu0
        %v1610 = vadd.f32 %v1259, %v1609
        %v1611 = vpop.f32.mrb[0].mxu0
        %v1612 = vpop.f32.mrb[0].mxu0
        %v1613 = vadd.f32 %v1259, %v1612
        %v1614 = vpop.f32.mrb[0].mxu0
        %1615 = vmatprep.mubr.bf16.mxu0 0
        %1616 = vmatmul.mubr.bf16.gmra.mrb[0].mxu0 %v1370
        %v1617 = vpop.f32.mrb[0].mxu0
        %v1618 = vadd.f32 %v1259, %v1617
        %v1619 = vpop.f32.mrb[0].mxu0
        %v1620 = vpop.f32.mrb[0].mxu0
        %v1621 = vadd.f32 %v1259, %v1620
        %v1622 = vpop.f32.mrb[0].mxu0
        %1623 = vmatprep.mubr.bf16.mxu0 0
        %1624 = vmatmul.mubr.bf16.gmra.mrb[0].mxu0 %v1371
        %v1625 = vpop.f32.mrb[0].mxu0
        %v1626 = vadd.f32 %v1259, %v1625
        %v1627 = vpop.f32.mrb[0].mxu0
        %v1628 = vpop.f32.mrb[0].mxu0
        %v1629 = vadd.f32 %v1259, %v1628
        %v1630 = vpop.f32.mrb[0].mxu0
        %1631 = vmatprep.mubr.bf16.mxu0 0
        %1632 = vmatmul.mubr.bf16.gmra.mrb[0].mxu0 %v1372
        %v1633 = vpop.f32.mrb[0].mxu0
        %v1634 = vadd.f32 %v1259, %v1633
        %v1635 = vpop.f32.mrb[0].mxu0
        %v1636 = vpop.f32.mrb[0].mxu0
        %v1637 = vadd.f32 %v1259, %v1636
        %v1638 = vpop.f32.mrb[0].mxu0
        %1639 = vmatprep.mubr.bf16.mxu0 0
        %1640 = vmatmul.mubr.bf16.gmra.mrb[0].mxu0 %v1373
        %v1641 = vpop.f32.mrb[0].mxu0
        %v1642 = vadd.f32 %v1259, %v1641
        %v1643 = vpop.f32.mrb[0].mxu0
        %v1644 = vpop.f32.mrb[0].mxu0
        %v1645 = vadd.f32 %v1259, %v1644
        %v1646 = vpop.f32.mrb[0].mxu0
        %1647 = vmatprep.mubr.bf16.mxu0 0
        %1648 = vmatmul.mubr.bf16.gmra.mrb[0].mxu0 %v1374
        %v1649 = vpop.f32.mrb[0].mxu0
        %v1650 = vadd.f32 %v1259, %v1649
        %v1651 = vpop.f32.mrb[0].mxu0
        %v1652 = vpop.f32.mrb[0].mxu0
        %v1653 = vadd.f32 %v1259, %v1652
        %v1654 = vpop.f32.mrb[0].mxu0
        %1655 = vmatprep.mubr.bf16.mxu0 0
        %1656 = vmatmul.mubr.bf16.gmra.mrb[0].mxu0 %v1375
        %v1657 = vpop.f32.mrb[0].mxu0
        %v1658 = vadd.f32 %v1259, %v1657
        %v1659 = vpop.f32.mrb[0].mxu0
        %v1660 = vpop.f32.mrb[0].mxu0
        %v1661 = vadd.f32 %v1259, %v1660
        %v1662 = vpop.f32.mrb[0].mxu0
        %1663 = vdwg.mxu0
        %v1664 = vpack.c.bf16 %v1485, %v1482
        %v1665 = vpack.c.bf16 %v1493, %v1490
        %v1666 = vpack.c.bf16 %v1501, %v1498
        %v1667 = vpack.c.bf16 %v1509, %v1506
        %v1668 = vpack.c.bf16 %v1517, %v1514
        %v1669 = vpack.c.bf16 %v1525, %v1522
        %v1670 = vpack.c.bf16 %v1533, %v1530
        %v1671 = vpack.c.bf16 %v1541, %v1538
        %v1672 = vpack.c.bf16 %v1549, %v1546
        %v1673 = vpack.c.bf16 %v1557, %v1554
        %v1674 = vpack.c.bf16 %v1565, %v1562
        %v1675 = vpack.c.bf16 %v1573, %v1570
        %v1676 = vpack.c.bf16 %v1581, %v1578
        %v1677 = vpack.c.bf16 %v1589, %v1586
        %v1678 = vpack.c.bf16 %v1597, %v1594
        %v1679 = vpack.c.bf16 %v1605, %v1602
        %v1680 = vpack.c.bf16 %v1613, %v1610
        %v1681 = vpack.c.bf16 %v1621, %v1618
        %v1682 = vpack.c.bf16 %v1629, %v1626
        %v1683 = vpack.c.bf16 %v1637, %v1634
        %v1684 = vpack.c.bf16 %v1645, %v1642
        %v1685 = vpack.c.bf16 %v1653, %v1650
        %v1686 = vpack.c.bf16 %v1661, %v1658
        %v1687 = vld [vmem:[#allocation2] sm:$0xff]
        %v1688 = vld [vmem:[#allocation2 + $0x10] sm:$0xff]
        %v1689 = vld [vmem:[#allocation2 + $0x20] sm:$0xff]
        %v1690 = vld [vmem:[#allocation2 + $0x30] sm:$0xff]
        %v1691 = vld [vmem:[#allocation2 + $0x40] sm:$0xff]
        %v1692 = vld [vmem:[#allocation2 + $0x50] sm:$0xff]
        %v1693 = vld [vmem:[#allocation2 + $0x60] sm:$0xff]
        %v1694 = vld [vmem:[#allocation2 + $0x70] sm:$0xff]
        %v1695 = vld [vmem:[#allocation2 + $0x80] sm:$0xff]
        %v1696 = vld [vmem:[#allocation2 + $0x90] sm:$0xff]
        %v1697 = vld [vmem:[#allocation2 + $0xa0] sm:$0xff]
        %v1698 = vld [vmem:[#allocation2 + $0xb0] sm:$0xff]
        %v1699 = vld [vmem:[#allocation2 + $0xc0] sm:$0xff]
        %v1700 = vld [vmem:[#allocation2 + $0xd0] sm:$0xff]
        %v1701 = vld [vmem:[#allocation2 + $0xe0] sm:$0xff]
        %v1702 = vld [vmem:[#allocation2 + $0xf0] sm:$0xff]
        %v1703 = vld [vmem:[#allocation2 + $0x100] sm:$0xff]
        %v1704 = vld [vmem:[#allocation2 + $0x110] sm:$0xff]
        %v1705 = vld [vmem:[#allocation2 + $0x120] sm:$0xff]
        %v1706 = vld [vmem:[#allocation2 + $0x130] sm:$0xff]
        %v1707 = vld [vmem:[#allocation2 + $0x140] sm:$0xff]
        %v1708 = vld [vmem:[#allocation2 + $0x150] sm:$0xff]
        %v1709 = vld [vmem:[#allocation2 + $0x160] sm:$0xff]
        %v1710 = vld [vmem:[#allocation2 + $0x170] sm:$0xff]
        %v1711 = vld [vmem:[#allocation2 + $0x180] sm:$0xff]
        %v1712 = vld [vmem:[#allocation2 + $0x190] sm:$0xff]
        %v1713 = vld [vmem:[#allocation2 + $0x1a0] sm:$0xff]
        %v1714 = vld [vmem:[#allocation2 + $0x1b0] sm:$0xff]
        %v1715 = vld [vmem:[#allocation2 + $0x1c0] sm:$0xff]
        %v1716 = vld [vmem:[#allocation2 + $0x1d0] sm:$0xff]
        %v1717 = vld [vmem:[#allocation2 + $0x1e0] sm:$0xff]
        %v1718 = vld [vmem:[#allocation2 + $0x1f0] sm:$0xff]
        %v1719 = vld [vmem:[#allocation2 + $0x8] sm:$0xff]
        %v1720 = vld [vmem:[#allocation2 + $0x18] sm:$0xff]
        %v1721 = vld [vmem:[#allocation2 + $0x28] sm:$0xff]
        %v1722 = vld [vmem:[#allocation2 + $0x38] sm:$0xff]
        %v1723 = vld [vmem:[#allocation2 + $0x48] sm:$0xff]
        %v1724 = vld [vmem:[#allocation2 + $0x58] sm:$0xff]
        %v1725 = vld [vmem:[#allocation2 + $0x68] sm:$0xff]
        %v1726 = vld [vmem:[#allocation2 + $0x78] sm:$0xff]
        %v1727 = vld [vmem:[#allocation2 + $0x88] sm:$0xff]
        %v1728 = vld [vmem:[#allocation2 + $0x98] sm:$0xff]
        %v1729 = vld [vmem:[#allocation2 + $0xa8] sm:$0xff]
        %v1730 = vld [vmem:[#allocation2 + $0xb8] sm:$0xff]
        %v1731 = vld [vmem:[#allocation2 + $0xc8] sm:$0xff]
        %v1732 = vld [vmem:[#allocation2 + $0xd8] sm:$0xff]
        %v1733 = vld [vmem:[#allocation2 + $0xe8] sm:$0xff]
        %v1734 = vld [vmem:[#allocation2 + $0xf8] sm:$0xff]
        %v1735 = vld [vmem:[#allocation2 + $0x108] sm:$0xff]
        %v1736 = vld [vmem:[#allocation2 + $0x118] sm:$0xff]
        %v1737 = vld [vmem:[#allocation2 + $0x128] sm:$0xff]
        %v1738 = vld [vmem:[#allocation2 + $0x138] sm:$0xff]
        %v1739 = vld [vmem:[#allocation2 + $0x148] sm:$0xff]
        %v1740 = vld [vmem:[#allocation2 + $0x158] sm:$0xff]
        %v1741 = vld [vmem:[#allocation2 + $0x168] sm:$0xff]
        %v1742 = vld [vmem:[#allocation2 + $0x178] sm:$0xff]
        %v1743 = vld [vmem:[#allocation2 + $0x188] sm:$0xff]
        %v1744 = vld [vmem:[#allocation2 + $0x198] sm:$0xff]
        %v1745 = vld [vmem:[#allocation2 + $0x1a8] sm:$0xff]
        %v1746 = vld [vmem:[#allocation2 + $0x1b8] sm:$0xff]
        %v1747 = vld [vmem:[#allocation2 + $0x1c8] sm:$0xff]
        %v1748 = vld [vmem:[#allocation2 + $0x1d8] sm:$0xff]
        %v1749 = vld [vmem:[#allocation2 + $0x1e8] sm:$0xff]
        %v1750 = vld [vmem:[#allocation2 + $0x1f8] sm:$0xff]
        %v1751 = vlaneseq
        %v1752 = vand.u32 %v1751, 127
        %v1753 = vadd.s32 %v1752, 128
        %v1754 = vadd.s32 %v1752, 256
        %v1755 = vadd.s32 %v1752, 384
        %vm1756 = vcmp.lt.s32.totalorder %v1752, 508
        %vm1757 = vcmp.lt.s32.totalorder %v1753, 508
        %vm1758 = vcmp.lt.s32.totalorder %v1754, 508
        %vm1759 = vcmp.lt.s32.totalorder %v1755, 508
        %v1760 = vsel %vm1756, 0.0, -1e+30
        %v1761 = vsel %vm1757, 0.0, -1e+30
        %v1762 = vsel %vm1758, 0.0, -1e+30
        %v1763 = vsel %vm1759, 0.0, -1e+30
        %1764 = vmatprep.subr.bf16.mxu0 0
        %1765 = vmatpush1.bf16.xpose.msra.mxu0 %v1687
        %1766 = vmatprep.subr.bf16.mxu0 0
        %1767 = vmatpush1.bf16.xpose.msra.mxu0 %v1688
        %1768 = vmatprep.subr.bf16.mxu0 0
        %1769 = vmatpush1.bf16.xpose.msra.mxu0 %v1689
        %1770 = vmatprep.subr.bf16.mxu0 0
        %1771 = vmatpush1.bf16.xpose.msra.mxu0 %v1690
        %1772 = vmatprep.subr.bf16.mxu0 0
        %1773 = vmatpush1.bf16.xpose.msra.mxu0 %v1691
        %1774 = vmatprep.subr.bf16.mxu0 0
        %1775 = vmatpush1.bf16.xpose.msra.mxu0 %v1692
        %1776 = vmatprep.subr.bf16.mxu0 0
        %1777 = vmatpush1.bf16.xpose.msra.mxu0 %v1693
        %1778 = vmatprep.subr.bf16.mxu0 0
        %1779 = vmatpush1.bf16.xpose.msra.mxu0 %v1694
        %1780 = vmatprep.subr.bf16.mxu0 0
        %1781 = vmatpush1.bf16.xpose.msra.mxu0 %v1695
        %1782 = vmatprep.subr.bf16.mxu0 0
        %1783 = vmatpush1.bf16.xpose.msra.mxu0 %v1696
        %1784 = vmatprep.subr.bf16.mxu0 0
        %1785 = vmatpush1.bf16.xpose.msra.mxu0 %v1697
        %1786 = vmatprep.subr.bf16.mxu0 0
        %1787 = vmatpush1.bf16.xpose.msra.mxu0 %v1698
        %1788 = vmatprep.subr.bf16.mxu0 0
        %1789 = vmatpush1.bf16.xpose.msra.mxu0 %v1699
        %1790 = vmatprep.subr.bf16.mxu0 0
        %1791 = vmatpush1.bf16.xpose.msra.mxu0 %v1700
        %1792 = vmatprep.subr.bf16.mxu0 0
        %1793 = vmatpush1.bf16.xpose.msra.mxu0 %v1701
        %1794 = vmatprep.subr.bf16.mxu0 0
        %1795 = vmatpush1.bf16.xpose.msra.mxu0 %v1702
        %1796 = vmatprep.mubr.bf16.mxu0 0
        %1797 = vmatmul.mubr.bf16.gmra.mrb[0].mxu0 %v1664
        %v1798 = vpop.f32.mrb[0].mxu0
        %v1799 = vadd.f32 %v1760, %v1798
        %v1800 = vpop.f32.mrb[0].mxu0
        %v1801 = vadd.f32 %v1761, %v1800
        %v1802 = vpop.f32.mrb[0].mxu0
        %v1803 = vadd.f32 %v1760, %v1802
        %v1804 = vpop.f32.mrb[0].mxu0
        %v1805 = vadd.f32 %v1761, %v1804
        %1806 = vmatprep.mubr.bf16.mxu0 0
        %1807 = vmatmul.mubr.bf16.gmra.mrb[0].mxu0 %v1665
        %v1808 = vpop.f32.mrb[0].mxu0
        %v1809 = vadd.f32 %v1760, %v1808
        %v1810 = vpop.f32.mrb[0].mxu0
        %v1811 = vadd.f32 %v1761, %v1810
        %v1812 = vpop.f32.mrb[0].mxu0
        %v1813 = vadd.f32 %v1760, %v1812
        %v1814 = vpop.f32.mrb[0].mxu0
        %v1815 = vadd.f32 %v1761, %v1814
        %1816 = vmatprep.mubr.bf16.mxu0 0
        %1817 = vmatmul.mubr.bf16.gmra.mrb[0].mxu0 %v1666
        %v1818 = vpop.f32.mrb[0].mxu0
        %v1819 = vadd.f32 %v1760, %v1818
        %v1820 = vpop.f32.mrb[0].mxu0
        %v1821 = vadd.f32 %v1761, %v1820
        %v1822 = vpop.f32.mrb[0].mxu0
        %v1823 = vadd.f32 %v1760, %v1822
        %v1824 = vpop.f32.mrb[0].mxu0
        %v1825 = vadd.f32 %v1761, %v1824
        %1826 = vmatprep.mubr.bf16.mxu0 0
        %1827 = vmatmul.mubr.bf16.gmra.mrb[0].mxu0 %v1667
        %v1828 = vpop.f32.mrb[0].mxu0
        %v1829 = vadd.f32 %v1760, %v1828
        %v1830 = vpop.f32.mrb[0].mxu0
        %v1831 = vadd.f32 %v1761, %v1830
        %v1832 = vpop.f32.mrb[0].mxu0
        %v1833 = vadd.f32 %v1760, %v1832
        %v1834 = vpop.f32.mrb[0].mxu0
        %v1835 = vadd.f32 %v1761, %v1834
        %1836 = vmatprep.mubr.bf16.mxu0 0
        %1837 = vmatmul.mubr.bf16.gmra.mrb[0].mxu0 %v1668
        %v1838 = vpop.f32.mrb[0].mxu0
        %v1839 = vadd.f32 %v1760, %v1838
        %v1840 = vpop.f32.mrb[0].mxu0
        %v1841 = vadd.f32 %v1761, %v1840
        %v1842 = vpop.f32.mrb[0].mxu0
        %v1843 = vadd.f32 %v1760, %v1842
        %v1844 = vpop.f32.mrb[0].mxu0
        %v1845 = vadd.f32 %v1761, %v1844
        %1846 = vmatprep.mubr.bf16.mxu0 0
        %1847 = vmatmul.mubr.bf16.gmra.mrb[0].mxu0 %v1669
        %v1848 = vpop.f32.mrb[0].mxu0
        %v1849 = vadd.f32 %v1760, %v1848
        %v1850 = vpop.f32.mrb[0].mxu0
        %v1851 = vadd.f32 %v1761, %v1850
        %v1852 = vpop.f32.mrb[0].mxu0
        %v1853 = vadd.f32 %v1760, %v1852
        %v1854 = vpop.f32.mrb[0].mxu0
        %v1855 = vadd.f32 %v1761, %v1854
        %1856 = vmatprep.mubr.bf16.mxu0 0
        %1857 = vmatmul.mubr.bf16.gmra.mrb[0].mxu0 %v1670
        %v1858 = vpop.f32.mrb[0].mxu0
        %v1859 = vadd.f32 %v1760, %v1858
        %v1860 = vpop.f32.mrb[0].mxu0
        %v1861 = vadd.f32 %v1761, %v1860
        %v1862 = vpop.f32.mrb[0].mxu0
        %v1863 = vadd.f32 %v1760, %v1862
        %v1864 = vpop.f32.mrb[0].mxu0
        %v1865 = vadd.f32 %v1761, %v1864
        %1866 = vmatprep.mubr.bf16.mxu0 0
        %1867 = vmatmul.mubr.bf16.gmra.mrb[0].mxu0 %v1671
        %v1868 = vpop.f32.mrb[0].mxu0
        %v1869 = vadd.f32 %v1760, %v1868
        %v1870 = vpop.f32.mrb[0].mxu0
        %v1871 = vadd.f32 %v1761, %v1870
        %v1872 = vpop.f32.mrb[0].mxu0
        %v1873 = vadd.f32 %v1760, %v1872
        %v1874 = vpop.f32.mrb[0].mxu0
        %v1875 = vadd.f32 %v1761, %v1874
        %1876 = vmatprep.mubr.bf16.mxu0 0
        %1877 = vmatmul.mubr.bf16.gmra.mrb[0].mxu0 %v1672
        %v1878 = vpop.f32.mrb[0].mxu0
        %v1879 = vadd.f32 %v1760, %v1878
        %v1880 = vpop.f32.mrb[0].mxu0
        %v1881 = vadd.f32 %v1761, %v1880
        %v1882 = vpop.f32.mrb[0].mxu0
        %v1883 = vadd.f32 %v1760, %v1882
        %v1884 = vpop.f32.mrb[0].mxu0
        %v1885 = vadd.f32 %v1761, %v1884
        %1886 = vmatprep.mubr.bf16.mxu0 0
        %1887 = vmatmul.mubr.bf16.gmra.mrb[0].mxu0 %v1673
        %v1888 = vpop.f32.mrb[0].mxu0
        %v1889 = vadd.f32 %v1760, %v1888
        %v1890 = vpop.f32.mrb[0].mxu0
        %v1891 = vadd.f32 %v1761, %v1890
        %v1892 = vpop.f32.mrb[0].mxu0
        %v1893 = vadd.f32 %v1760, %v1892
        %v1894 = vpop.f32.mrb[0].mxu0
        %v1895 = vadd.f32 %v1761, %v1894
        %1896 = vmatprep.mubr.bf16.mxu0 0
        %1897 = vmatmul.mubr.bf16.gmra.mrb[0].mxu0 %v1674
        %v1898 = vpop.f32.mrb[0].mxu0
        %v1899 = vadd.f32 %v1760, %v1898
        %v1900 = vpop.f32.mrb[0].mxu0
        %v1901 = vadd.f32 %v1761, %v1900
        %v1902 = vpop.f32.mrb[0].mxu0
        %v1903 = vadd.f32 %v1760, %v1902
        %v1904 = vpop.f32.mrb[0].mxu0
        %v1905 = vadd.f32 %v1761, %v1904
        %1906 = vmatprep.mubr.bf16.mxu0 0
        %1907 = vmatmul.mubr.bf16.gmra.mrb[0].mxu0 %v1675
        %v1908 = vpop.f32.mrb[0].mxu0
        %v1909 = vadd.f32 %v1760, %v1908
        %v1910 = vpop.f32.mrb[0].mxu0
        %v1911 = vadd.f32 %v1761, %v1910
        %v1912 = vpop.f32.mrb[0].mxu0
        %v1913 = vadd.f32 %v1760, %v1912
        %v1914 = vpop.f32.mrb[0].mxu0
        %v1915 = vadd.f32 %v1761, %v1914
        %1916 = vmatprep.mubr.bf16.mxu0 0
        %1917 = vmatmul.mubr.bf16.gmra.mrb[0].mxu0 %v1676
        %v1918 = vpop.f32.mrb[0].mxu0
        %v1919 = vadd.f32 %v1760, %v1918
        %v1920 = vpop.f32.mrb[0].mxu0
        %v1921 = vadd.f32 %v1761, %v1920
        %v1922 = vpop.f32.mrb[0].mxu0
        %v1923 = vadd.f32 %v1760, %v1922
        %v1924 = vpop.f32.mrb[0].mxu0
        %v1925 = vadd.f32 %v1761, %v1924
        %1926 = vmatprep.mubr.bf16.mxu0 0
        %1927 = vmatmul.mubr.bf16.gmra.mrb[0].mxu0 %v1677
        %v1928 = vpop.f32.mrb[0].mxu0
        %v1929 = vadd.f32 %v1760, %v1928
        %v1930 = vpop.f32.mrb[0].mxu0
        %v1931 = vadd.f32 %v1761, %v1930
        %v1932 = vpop.f32.mrb[0].mxu0
        %v1933 = vadd.f32 %v1760, %v1932
        %v1934 = vpop.f32.mrb[0].mxu0
        %v1935 = vadd.f32 %v1761, %v1934
        %1936 = vmatprep.mubr.bf16.mxu0 0
        %1937 = vmatmul.mubr.bf16.gmra.mrb[0].mxu0 %v1678
        %v1938 = vpop.f32.mrb[0].mxu0
        %v1939 = vadd.f32 %v1760, %v1938
        %v1940 = vpop.f32.mrb[0].mxu0
        %v1941 = vadd.f32 %v1761, %v1940
        %v1942 = vpop.f32.mrb[0].mxu0
        %v1943 = vadd.f32 %v1760, %v1942
        %v1944 = vpop.f32.mrb[0].mxu0
        %v1945 = vadd.f32 %v1761, %v1944
        %1946 = vmatprep.mubr.bf16.mxu0 0
        %1947 = vmatmul.mubr.bf16.gmra.mrb[0].mxu0 %v1679
        %v1948 = vpop.f32.mrb[0].mxu0
        %v1949 = vadd.f32 %v1760, %v1948
        %v1950 = vpop.f32.mrb[0].mxu0
        %v1951 = vadd.f32 %v1761, %v1950
        %v1952 = vpop.f32.mrb[0].mxu0
        %v1953 = vadd.f32 %v1760, %v1952
        %v1954 = vpop.f32.mrb[0].mxu0
        %v1955 = vadd.f32 %v1761, %v1954
        %1956 = vmatprep.mubr.bf16.mxu0 0
        %1957 = vmatmul.mubr.bf16.gmra.mrb[0].mxu0 %v1680
        %v1958 = vpop.f32.mrb[0].mxu0
        %v1959 = vadd.f32 %v1760, %v1958
        %v1960 = vpop.f32.mrb[0].mxu0
        %v1961 = vadd.f32 %v1761, %v1960
        %v1962 = vpop.f32.mrb[0].mxu0
        %v1963 = vadd.f32 %v1760, %v1962
        %v1964 = vpop.f32.mrb[0].mxu0
        %v1965 = vadd.f32 %v1761, %v1964
        %1966 = vmatprep.mubr.bf16.mxu0 0
        %1967 = vmatmul.mubr.bf16.gmra.mrb[0].mxu0 %v1681
        %v1968 = vpop.f32.mrb[0].mxu0
        %v1969 = vadd.f32 %v1760, %v1968
        %v1970 = vpop.f32.mrb[0].mxu0
        %v1971 = vadd.f32 %v1761, %v1970
        %v1972 = vpop.f32.mrb[0].mxu0
        %v1973 = vadd.f32 %v1760, %v1972
        %v1974 = vpop.f32.mrb[0].mxu0
        %v1975 = vadd.f32 %v1761, %v1974
        %1976 = vmatprep.mubr.bf16.mxu0 0
        %1977 = vmatmul.mubr.bf16.gmra.mrb[0].mxu0 %v1682
        %v1978 = vpop.f32.mrb[0].mxu0
        %v1979 = vadd.f32 %v1760, %v1978
        %v1980 = vpop.f32.mrb[0].mxu0
        %v1981 = vadd.f32 %v1761, %v1980
        %v1982 = vpop.f32.mrb[0].mxu0
        %v1983 = vadd.f32 %v1760, %v1982
        %v1984 = vpop.f32.mrb[0].mxu0
        %v1985 = vadd.f32 %v1761, %v1984
        %1986 = vmatprep.mubr.bf16.mxu0 0
        %1987 = vmatmul.mubr.bf16.gmra.mrb[0].mxu0 %v1683
        %v1988 = vpop.f32.mrb[0].mxu0
        %v1989 = vadd.f32 %v1760, %v1988
        %v1990 = vpop.f32.mrb[0].mxu0
        %v1991 = vadd.f32 %v1761, %v1990
        %v1992 = vpop.f32.mrb[0].mxu0
        %v1993 = vadd.f32 %v1760, %v1992
        %v1994 = vpop.f32.mrb[0].mxu0
        %v1995 = vadd.f32 %v1761, %v1994
        %1996 = vmatprep.mubr.bf16.mxu0 0
        %1997 = vmatmul.mubr.bf16.gmra.mrb[0].mxu0 %v1684
        %v1998 = vpop.f32.mrb[0].mxu0
        %v1999 = vadd.f32 %v1760, %v1998
        %v2000 = vpop.f32.mrb[0].mxu0
        %v2001 = vadd.f32 %v1761, %v2000
        %v2002 = vpop.f32.mrb[0].mxu0
        %v2003 = vadd.f32 %v1760, %v2002
        %v2004 = vpop.f32.mrb[0].mxu0
        %v2005 = vadd.f32 %v1761, %v2004
        %2006 = vmatprep.mubr.bf16.mxu0 0
        %2007 = vmatmul.mubr.bf16.gmra.mrb[0].mxu0 %v1685
        %v2008 = vpop.f32.mrb[0].mxu0
        %v2009 = vadd.f32 %v1760, %v2008
        %v2010 = vpop.f32.mrb[0].mxu0
        %v2011 = vadd.f32 %v1761, %v2010
        %v2012 = vpop.f32.mrb[0].mxu0
        %v2013 = vadd.f32 %v1760, %v2012
        %v2014 = vpop.f32.mrb[0].mxu0
        %v2015 = vadd.f32 %v1761, %v2014
        %2016 = vmatprep.mubr.bf16.mxu0 0
        %2017 = vmatmul.mubr.bf16.gmra.mrb[0].mxu0 %v1686
        %v2018 = vpop.f32.mrb[0].mxu0
        %v2019 = vadd.f32 %v1760, %v2018
        %v2020 = vpop.f32.mrb[0].mxu0
        %v2021 = vadd.f32 %v1761, %v2020
        %v2022 = vpop.f32.mrb[0].mxu0
        %v2023 = vadd.f32 %v1760, %v2022
        %v2024 = vpop.f32.mrb[0].mxu0
        %v2025 = vadd.f32 %v1761, %v2024
        %2026 = vdwg.mxu0
        %2027 = vmatprep.subr.bf16.mxu0 0
        %2028 = vmatpush1.bf16.xpose.msra.mxu0 %v1703
        %2029 = vmatprep.subr.bf16.mxu0 0
        %2030 = vmatpush1.bf16.xpose.msra.mxu0 %v1704
        %2031 = vmatprep.subr.bf16.mxu0 0
        %2032 = vmatpush1.bf16.xpose.msra.mxu0 %v1705
        %2033 = vmatprep.subr.bf16.mxu0 0
        %2034 = vmatpush1.bf16.xpose.msra.mxu0 %v1706
        %2035 = vmatprep.subr.bf16.mxu0 0
        %2036 = vmatpush1.bf16.xpose.msra.mxu0 %v1707
        %2037 = vmatprep.subr.bf16.mxu0 0
        %2038 = vmatpush1.bf16.xpose.msra.mxu0 %v1708
        %2039 = vmatprep.subr.bf16.mxu0 0
        %2040 = vmatpush1.bf16.xpose.msra.mxu0 %v1709
        %2041 = vmatprep.subr.bf16.mxu0 0
        %2042 = vmatpush1.bf16.xpose.msra.mxu0 %v1710
        %2043 = vmatprep.subr.bf16.mxu0 0
        %2044 = vmatpush1.bf16.xpose.msra.mxu0 %v1711
        %2045 = vmatprep.subr.bf16.mxu0 0
        %2046 = vmatpush1.bf16.xpose.msra.mxu0 %v1712
        %2047 = vmatprep.subr.bf16.mxu0 0
        %2048 = vmatpush1.bf16.xpose.msra.mxu0 %v1713
        %2049 = vmatprep.subr.bf16.mxu0 0
        %2050 = vmatpush1.bf16.xpose.msra.mxu0 %v1714
        %2051 = vmatprep.subr.bf16.mxu0 0
        %2052 = vmatpush1.bf16.xpose.msra.mxu0 %v1715
        %2053 = vmatprep.subr.bf16.mxu0 0
        %2054 = vmatpush1.bf16.xpose.msra.mxu0 %v1716
        %2055 = vmatprep.subr.bf16.mxu0 0
        %2056 = vmatpush1.bf16.xpose.msra.mxu0 %v1717
        %2057 = vmatprep.subr.bf16.mxu0 0
        %2058 = vmatpush1.bf16.xpose.msra.mxu0 %v1718
        %2059 = vmatprep.mubr.bf16.mxu0 0
        %2060 = vmatmul.mubr.bf16.gmra.mrb[0].mxu0 %v1664
        %v2061 = vpop.f32.mrb[0].mxu0
        %v2062 = vadd.f32 %v1762, %v2061
        %v2063 = vpop.f32.mrb[0].mxu0
        %v2064 = vadd.f32 %v1763, %v2063
        %v2065 = vpop.f32.mrb[0].mxu0
        %v2066 = vadd.f32 %v1762, %v2065
        %v2067 = vpop.f32.mrb[0].mxu0
        %v2068 = vadd.f32 %v1763, %v2067
        %2069 = vmatprep.mubr.bf16.mxu0 0
        %2070 = vmatmul.mubr.bf16.gmra.mrb[0].mxu0 %v1665
        %v2071 = vpop.f32.mrb[0].mxu0
        %v2072 = vadd.f32 %v1762, %v2071
        %v2073 = vpop.f32.mrb[0].mxu0
        %v2074 = vadd.f32 %v1763, %v2073
        %v2075 = vpop.f32.mrb[0].mxu0
        %v2076 = vadd.f32 %v1762, %v2075
        %v2077 = vpop.f32.mrb[0].mxu0
        %v2078 = vadd.f32 %v1763, %v2077
        %2079 = vmatprep.mubr.bf16.mxu0 0
        %2080 = vmatmul.mubr.bf16.gmra.mrb[0].mxu0 %v1666
        %v2081 = vpop.f32.mrb[0].mxu0
        %v2082 = vadd.f32 %v1762, %v2081
        %v2083 = vpop.f32.mrb[0].mxu0
        %v2084 = vadd.f32 %v1763, %v2083
        %v2085 = vpop.f32.mrb[0].mxu0
        %v2086 = vadd.f32 %v1762, %v2085
        %v2087 = vpop.f32.mrb[0].mxu0
        %v2088 = vadd.f32 %v1763, %v2087
        %2089 = vmatprep.mubr.bf16.mxu0 0
        %2090 = vmatmul.mubr.bf16.gmra.mrb[0].mxu0 %v1667
        %v2091 = vpop.f32.mrb[0].mxu0
        %v2092 = vadd.f32 %v1762, %v2091
        %v2093 = vpop.f32.mrb[0].mxu0
        %v2094 = vadd.f32 %v1763, %v2093
        %v2095 = vpop.f32.mrb[0].mxu0
        %v2096 = vadd.f32 %v1762, %v2095
        %v2097 = vpop.f32.mrb[0].mxu0
        %v2098 = vadd.f32 %v1763, %v2097
        %2099 = vmatprep.mubr.bf16.mxu0 0
        %2100 = vmatmul.mubr.bf16.gmra.mrb[0].mxu0 %v1668
        %v2101 = vpop.f32.mrb[0].mxu0
        %v2102 = vadd.f32 %v1762, %v2101
        %v2103 = vpop.f32.mrb[0].mxu0
        %v2104 = vadd.f32 %v1763, %v2103
        %v2105 = vpop.f32.mrb[0].mxu0
        %v2106 = vadd.f32 %v1762, %v2105
        %v2107 = vpop.f32.mrb[0].mxu0
        %v2108 = vadd.f32 %v1763, %v2107
        %2109 = vmatprep.mubr.bf16.mxu0 0
        %2110 = vmatmul.mubr.bf16.gmra.mrb[0].mxu0 %v1669
        %v2111 = vpop.f32.mrb[0].mxu0
        %v2112 = vadd.f32 %v1762, %v2111
        %v2113 = vpop.f32.mrb[0].mxu0
        %v2114 = vadd.f32 %v1763, %v2113
        %v2115 = vpop.f32.mrb[0].mxu0
        %v2116 = vadd.f32 %v1762, %v2115
        %v2117 = vpop.f32.mrb[0].mxu0
        %v2118 = vadd.f32 %v1763, %v2117
        %2119 = vmatprep.mubr.bf16.mxu0 0
        %2120 = vmatmul.mubr.bf16.gmra.mrb[0].mxu0 %v1670
        %v2121 = vpop.f32.mrb[0].mxu0
        %v2122 = vadd.f32 %v1762, %v2121
        %v2123 = vpop.f32.mrb[0].mxu0
        %v2124 = vadd.f32 %v1763, %v2123
        %v2125 = vpop.f32.mrb[0].mxu0
        %v2126 = vadd.f32 %v1762, %v2125
        %v2127 = vpop.f32.mrb[0].mxu0
        %v2128 = vadd.f32 %v1763, %v2127
        %2129 = vmatprep.mubr.bf16.mxu0 0
        %2130 = vmatmul.mubr.bf16.gmra.mrb[0].mxu0 %v1671
        %v2131 = vpop.f32.mrb[0].mxu0
        %v2132 = vadd.f32 %v1762, %v2131
        %v2133 = vpop.f32.mrb[0].mxu0
        %v2134 = vadd.f32 %v1763, %v2133
        %v2135 = vpop.f32.mrb[0].mxu0
        %v2136 = vadd.f32 %v1762, %v2135
        %v2137 = vpop.f32.mrb[0].mxu0
        %v2138 = vadd.f32 %v1763, %v2137
        %2139 = vmatprep.mubr.bf16.mxu0 0
        %2140 = vmatmul.mubr.bf16.gmra.mrb[0].mxu0 %v1672
        %v2141 = vpop.f32.mrb[0].mxu0
        %v2142 = vadd.f32 %v1762, %v2141
        %v2143 = vpop.f32.mrb[0].mxu0
        %v2144 = vadd.f32 %v1763, %v2143
        %v2145 = vpop.f32.mrb[0].mxu0
        %v2146 = vadd.f32 %v1762, %v2145
        %v2147 = vpop.f32.mrb[0].mxu0
        %v2148 = vadd.f32 %v1763, %v2147
        %2149 = vmatprep.mubr.bf16.mxu0 0
        %2150 = vmatmul.mubr.bf16.gmra.mrb[0].mxu0 %v1673
        %v2151 = vpop.f32.mrb[0].mxu0
        %v2152 = vadd.f32 %v1762, %v2151
        %v2153 = vpop.f32.mrb[0].mxu0
        %v2154 = vadd.f32 %v1763, %v2153
        %v2155 = vpop.f32.mrb[0].mxu0
        %v2156 = vadd.f32 %v1762, %v2155
        %v2157 = vpop.f32.mrb[0].mxu0
        %v2158 = vadd.f32 %v1763, %v2157
        %2159 = vmatprep.mubr.bf16.mxu0 0
        %2160 = vmatmul.mubr.bf16.gmra.mrb[0].mxu0 %v1674
        %v2161 = vpop.f32.mrb[0].mxu0
        %v2162 = vadd.f32 %v1762, %v2161
        %v2163 = vpop.f32.mrb[0].mxu0
        %v2164 = vadd.f32 %v1763, %v2163
        %v2165 = vpop.f32.mrb[0].mxu0
        %v2166 = vadd.f32 %v1762, %v2165
        %v2167 = vpop.f32.mrb[0].mxu0
        %v2168 = vadd.f32 %v1763, %v2167
        %2169 = vmatprep.mubr.bf16.mxu0 0
        %2170 = vmatmul.mubr.bf16.gmra.mrb[0].mxu0 %v1675
        %v2171 = vpop.f32.mrb[0].mxu0
        %v2172 = vadd.f32 %v1762, %v2171
        %v2173 = vpop.f32.mrb[0].mxu0
        %v2174 = vadd.f32 %v1763, %v2173
        %v2175 = vpop.f32.mrb[0].mxu0
        %v2176 = vadd.f32 %v1762, %v2175
        %v2177 = vpop.f32.mrb[0].mxu0
        %v2178 = vadd.f32 %v1763, %v2177
        %2179 = vmatprep.mubr.bf16.mxu0 0
        %2180 = vmatmul.mubr.bf16.gmra.mrb[0].mxu0 %v1676
        %v2181 = vpop.f32.mrb[0].mxu0
        %v2182 = vadd.f32 %v1762, %v2181
        %v2183 = vpop.f32.mrb[0].mxu0
        %v2184 = vadd.f32 %v1763, %v2183
        %v2185 = vpop.f32.mrb[0].mxu0
        %v2186 = vadd.f32 %v1762, %v2185
        %v2187 = vpop.f32.mrb[0].mxu0
        %v2188 = vadd.f32 %v1763, %v2187
        %2189 = vmatprep.mubr.bf16.mxu0 0
        %2190 = vmatmul.mubr.bf16.gmra.mrb[0].mxu0 %v1677
        %v2191 = vpop.f32.mrb[0].mxu0
        %v2192 = vadd.f32 %v1762, %v2191
        %v2193 = vpop.f32.mrb[0].mxu0
        %v2194 = vadd.f32 %v1763, %v2193
        %v2195 = vpop.f32.mrb[0].mxu0
        %v2196 = vadd.f32 %v1762, %v2195
        %v2197 = vpop.f32.mrb[0].mxu0
        %v2198 = vadd.f32 %v1763, %v2197
        %2199 = vmatprep.mubr.bf16.mxu0 0
        %2200 = vmatmul.mubr.bf16.gmra.mrb[0].mxu0 %v1678
        %v2201 = vpop.f32.mrb[0].mxu0
        %v2202 = vadd.f32 %v1762, %v2201
        %v2203 = vpop.f32.mrb[0].mxu0
        %v2204 = vadd.f32 %v1763, %v2203
        %v2205 = vpop.f32.mrb[0].mxu0
        %v2206 = vadd.f32 %v1762, %v2205
        %v2207 = vpop.f32.mrb[0].mxu0
        %v2208 = vadd.f32 %v1763, %v2207
        %2209 = vmatprep.mubr.bf16.mxu0 0
        %2210 = vmatmul.mubr.bf16.gmra.mrb[0].mxu0 %v1679
        %v2211 = vpop.f32.mrb[0].mxu0
        %v2212 = vadd.f32 %v1762, %v2211
        %v2213 = vpop.f32.mrb[0].mxu0
        %v2214 = vadd.f32 %v1763, %v2213
        %v2215 = vpop.f32.mrb[0].mxu0
        %v2216 = vadd.f32 %v1762, %v2215
        %v2217 = vpop.f32.mrb[0].mxu0
        %v2218 = vadd.f32 %v1763, %v2217
        %2219 = vmatprep.mubr.bf16.mxu0 0
        %2220 = vmatmul.mubr.bf16.gmra.mrb[0].mxu0 %v1680
        %v2221 = vpop.f32.mrb[0].mxu0
        %v2222 = vadd.f32 %v1762, %v2221
        %v2223 = vpop.f32.mrb[0].mxu0
        %v2224 = vadd.f32 %v1763, %v2223
        %v2225 = vpop.f32.mrb[0].mxu0
        %v2226 = vadd.f32 %v1762, %v2225
        %v2227 = vpop.f32.mrb[0].mxu0
        %v2228 = vadd.f32 %v1763, %v2227
        %2229 = vmatprep.mubr.bf16.mxu0 0
        %2230 = vmatmul.mubr.bf16.gmra.mrb[0].mxu0 %v1681
        %v2231 = vpop.f32.mrb[0].mxu0
        %v2232 = vadd.f32 %v1762, %v2231
        %v2233 = vpop.f32.mrb[0].mxu0
        %v2234 = vadd.f32 %v1763, %v2233
        %v2235 = vpop.f32.mrb[0].mxu0
        %v2236 = vadd.f32 %v1762, %v2235
        %v2237 = vpop.f32.mrb[0].mxu0
        %v2238 = vadd.f32 %v1763, %v2237
        %2239 = vmatprep.mubr.bf16.mxu0 0
        %2240 = vmatmul.mubr.bf16.gmra.mrb[0].mxu0 %v1682
        %v2241 = vpop.f32.mrb[0].mxu0
        %v2242 = vadd.f32 %v1762, %v2241
        %v2243 = vpop.f32.mrb[0].mxu0
        %v2244 = vadd.f32 %v1763, %v2243
        %v2245 = vpop.f32.mrb[0].mxu0
        %v2246 = vadd.f32 %v1762, %v2245
        %v2247 = vpop.f32.mrb[0].mxu0
        %v2248 = vadd.f32 %v1763, %v2247
        %2249 = vmatprep.mubr.bf16.mxu0 0
        %2250 = vmatmul.mubr.bf16.gmra.mrb[0].mxu0 %v1683
        %v2251 = vpop.f32.mrb[0].mxu0
        %v2252 = vadd.f32 %v1762, %v2251
        %v2253 = vpop.f32.mrb[0].mxu0
        %v2254 = vadd.f32 %v1763, %v2253
        %v2255 = vpop.f32.mrb[0].mxu0
        %v2256 = vadd.f32 %v1762, %v2255
        %v2257 = vpop.f32.mrb[0].mxu0
        %v2258 = vadd.f32 %v1763, %v2257
        %2259 = vmatprep.mubr.bf16.mxu0 0
        %2260 = vmatmul.mubr.bf16.gmra.mrb[0].mxu0 %v1684
        %v2261 = vpop.f32.mrb[0].mxu0
        %v2262 = vadd.f32 %v1762, %v2261
        %v2263 = vpop.f32.mrb[0].mxu0
        %v2264 = vadd.f32 %v1763, %v2263
        %v2265 = vpop.f32.mrb[0].mxu0
        %v2266 = vadd.f32 %v1762, %v2265
        %v2267 = vpop.f32.mrb[0].mxu0
        %v2268 = vadd.f32 %v1763, %v2267
        %2269 = vmatprep.mubr.bf16.mxu0 0
        %2270 = vmatmul.mubr.bf16.gmra.mrb[0].mxu0 %v1685
        %v2271 = vpop.f32.mrb[0].mxu0
        %v2272 = vadd.f32 %v1762, %v2271
        %v2273 = vpop.f32.mrb[0].mxu0
        %v2274 = vadd.f32 %v1763, %v2273
        %v2275 = vpop.f32.mrb[0].mxu0
        %v2276 = vadd.f32 %v1762, %v2275
        %v2277 = vpop.f32.mrb[0].mxu0
        %v2278 = vadd.f32 %v1763, %v2277
        %2279 = vmatprep.mubr.bf16.mxu0 0
        %2280 = vmatmul.mubr.bf16.gmra.mrb[0].mxu0 %v1686
        %v2281 = vpop.f32.mrb[0].mxu0
        %v2282 = vadd.f32 %v1762, %v2281
        %v2283 = vpop.f32.mrb[0].mxu0
        %v2284 = vadd.f32 %v1763, %v2283
        %v2285 = vpop.f32.mrb[0].mxu0
        %v2286 = vadd.f32 %v1762, %v2285
        %v2287 = vpop.f32.mrb[0].mxu0
        %v2288 = vadd.f32 %v1763, %v2287
        %2289 = vdwg.mxu0
        %v2290 = vmax.f32 %v1799, %v1801
        %v2291 = vmax.f32 %v2290, %v2062
        %v2292 = vmax.f32 %v2291, %v2064
        %2293 = vmax.xlane.f32.xlu0 %v2292
        %v2294 = vpop.xlane.xlu0 %2293
        %v2295 = vmax.f32 %v1803, %v1805
        %v2296 = vmax.f32 %v2295, %v2066
        %v2297 = vmax.f32 %v2296, %v2068
        %2298 = vmax.xlane.f32.xlu0 %v2297
        %v2299 = vpop.xlane.xlu0 %2298
        %v2300 = vmax.f32 %v1809, %v1811
        %v2301 = vmax.f32 %v2300, %v2072
        %v2302 = vmax.f32 %v2301, %v2074
        %2303 = vmax.xlane.f32.xlu0 %v2302
        %v2304 = vpop.xlane.xlu0 %2303
        %v2305 = vmax.f32 %v1813, %v1815
        %v2306 = vmax.f32 %v2305, %v2076
        %v2307 = vmax.f32 %v2306, %v2078
        %2308 = vmax.xlane.f32.xlu0 %v2307
        %v2309 = vpop.xlane.xlu0 %2308
        %v2310 = vmax.f32 %v1819, %v1821
        %v2311 = vmax.f32 %v2310, %v2082
        %v2312 = vmax.f32 %v2311, %v2084
        %2313 = vmax.xlane.f32.xlu0 %v2312
        %v2314 = vpop.xlane.xlu0 %2313
        %v2315 = vmax.f32 %v1823, %v1825
        %v2316 = vmax.f32 %v2315, %v2086
        %v2317 = vmax.f32 %v2316, %v2088
        %2318 = vmax.xlane.f32.xlu0 %v2317
        %v2319 = vpop.xlane.xlu0 %2318
        %v2320 = vmax.f32 %v1829, %v1831
        %v2321 = vmax.f32 %v2320, %v2092
        %v2322 = vmax.f32 %v2321, %v2094
        %2323 = vmax.xlane.f32.xlu0 %v2322
        %v2324 = vpop.xlane.xlu0 %2323
        %v2325 = vmax.f32 %v1833, %v1835
        %v2326 = vmax.f32 %v2325, %v2096
        %v2327 = vmax.f32 %v2326, %v2098
        %2328 = vmax.xlane.f32.xlu0 %v2327
        %v2329 = vpop.xlane.xlu0 %2328
        %v2330 = vmax.f32 %v1839, %v1841
        %v2331 = vmax.f32 %v2330, %v2102
        %v2332 = vmax.f32 %v2331, %v2104
        %2333 = vmax.xlane.f32.xlu0 %v2332
        %v2334 = vpop.xlane.xlu0 %2333
        %v2335 = vmax.f32 %v1843, %v1845
        %v2336 = vmax.f32 %v2335, %v2106
        %v2337 = vmax.f32 %v2336, %v2108
        %2338 = vmax.xlane.f32.xlu0 %v2337
        %v2339 = vpop.xlane.xlu0 %2338
        %v2340 = vmax.f32 %v1849, %v1851
        %v2341 = vmax.f32 %v2340, %v2112
        %v2342 = vmax.f32 %v2341, %v2114
        %2343 = vmax.xlane.f32.xlu0 %v2342
        %v2344 = vpop.xlane.xlu0 %2343
        %v2345 = vmax.f32 %v1853, %v1855
        %v2346 = vmax.f32 %v2345, %v2116
        %v2347 = vmax.f32 %v2346, %v2118
        %2348 = vmax.xlane.f32.xlu0 %v2347
        %v2349 = vpop.xlane.xlu0 %2348
        %v2350 = vmax.f32 %v1859, %v1861
        %v2351 = vmax.f32 %v2350, %v2122
        %v2352 = vmax.f32 %v2351, %v2124
        %2353 = vmax.xlane.f32.xlu0 %v2352
        %v2354 = vpop.xlane.xlu0 %2353
        %v2355 = vmax.f32 %v1863, %v1865
        %v2356 = vmax.f32 %v2355, %v2126
        %v2357 = vmax.f32 %v2356, %v2128
        %2358 = vmax.xlane.f32.xlu0 %v2357
        %v2359 = vpop.xlane.xlu0 %2358
        %v2360 = vmax.f32 %v1869, %v1871
        %v2361 = vmax.f32 %v2360, %v2132
        %v2362 = vmax.f32 %v2361, %v2134
        %2363 = vmax.xlane.f32.xlu0 %v2362
        %v2364 = vpop.xlane.xlu0 %2363
        %v2365 = vmax.f32 %v1873, %v1875
        %v2366 = vmax.f32 %v2365, %v2136
        %v2367 = vmax.f32 %v2366, %v2138
        %2368 = vmax.xlane.f32.xlu0 %v2367
        %v2369 = vpop.xlane.xlu0 %2368
        %v2370 = vmax.f32 %v1879, %v1881
        %v2371 = vmax.f32 %v2370, %v2142
        %v2372 = vmax.f32 %v2371, %v2144
        %2373 = vmax.xlane.f32.xlu0 %v2372
        %v2374 = vpop.xlane.xlu0 %2373
        %v2375 = vmax.f32 %v1883, %v1885
        %v2376 = vmax.f32 %v2375, %v2146
        %v2377 = vmax.f32 %v2376, %v2148
        %2378 = vmax.xlane.f32.xlu0 %v2377
        %v2379 = vpop.xlane.xlu0 %2378
        %v2380 = vmax.f32 %v1889, %v1891
        %v2381 = vmax.f32 %v2380, %v2152
        %v2382 = vmax.f32 %v2381, %v2154
        %2383 = vmax.xlane.f32.xlu0 %v2382
        %v2384 = vpop.xlane.xlu0 %2383
        %v2385 = vmax.f32 %v1893, %v1895
        %v2386 = vmax.f32 %v2385, %v2156
        %v2387 = vmax.f32 %v2386, %v2158
        %2388 = vmax.xlane.f32.xlu0 %v2387
        %v2389 = vpop.xlane.xlu0 %2388
        %v2390 = vmax.f32 %v1899, %v1901
        %v2391 = vmax.f32 %v2390, %v2162
        %v2392 = vmax.f32 %v2391, %v2164
        %2393 = vmax.xlane.f32.xlu0 %v2392
        %v2394 = vpop.xlane.xlu0 %2393
        %v2395 = vmax.f32 %v1903, %v1905
        %v2396 = vmax.f32 %v2395, %v2166
        %v2397 = vmax.f32 %v2396, %v2168
        %2398 = vmax.xlane.f32.xlu0 %v2397
        %v2399 = vpop.xlane.xlu0 %2398
        %v2400 = vmax.f32 %v1909, %v1911
        %v2401 = vmax.f32 %v2400, %v2172
        %v2402 = vmax.f32 %v2401, %v2174
        %2403 = vmax.xlane.f32.xlu0 %v2402
        %v2404 = vpop.xlane.xlu0 %2403
        %v2405 = vmax.f32 %v1913, %v1915
        %v2406 = vmax.f32 %v2405, %v2176
        %v2407 = vmax.f32 %v2406, %v2178
        %2408 = vmax.xlane.f32.xlu0 %v2407
        %v2409 = vpop.xlane.xlu0 %2408
        %v2410 = vmax.f32 %v1919, %v1921
        %v2411 = vmax.f32 %v2410, %v2182
        %v2412 = vmax.f32 %v2411, %v2184
        %2413 = vmax.xlane.f32.xlu0 %v2412
        %v2414 = vpop.xlane.xlu0 %2413
        %v2415 = vmax.f32 %v1923, %v1925
        %v2416 = vmax.f32 %v2415, %v2186
        %v2417 = vmax.f32 %v2416, %v2188
        %2418 = vmax.xlane.f32.xlu0 %v2417
        %v2419 = vpop.xlane.xlu0 %2418
        %v2420 = vmax.f32 %v1929, %v1931
        %v2421 = vmax.f32 %v2420, %v2192
        %v2422 = vmax.f32 %v2421, %v2194
        %2423 = vmax.xlane.f32.xlu0 %v2422
        %v2424 = vpop.xlane.xlu0 %2423
        %v2425 = vmax.f32 %v1933, %v1935
        %v2426 = vmax.f32 %v2425, %v2196
        %v2427 = vmax.f32 %v2426, %v2198
        %2428 = vmax.xlane.f32.xlu0 %v2427
        %v2429 = vpop.xlane.xlu0 %2428
        %v2430 = vmax.f32 %v1939, %v1941
        %v2431 = vmax.f32 %v2430, %v2202
        %v2432 = vmax.f32 %v2431, %v2204
        %2433 = vmax.xlane.f32.xlu0 %v2432
        %v2434 = vpop.xlane.xlu0 %2433
        %v2435 = vmax.f32 %v1943, %v1945
        %v2436 = vmax.f32 %v2435, %v2206
        %v2437 = vmax.f32 %v2436, %v2208
        %2438 = vmax.xlane.f32.xlu0 %v2437
        %v2439 = vpop.xlane.xlu0 %2438
        %v2440 = vmax.f32 %v1949, %v1951
        %v2441 = vmax.f32 %v2440, %v2212
        %v2442 = vmax.f32 %v2441, %v2214
        %2443 = vmax.xlane.f32.xlu0 %v2442
        %v2444 = vpop.xlane.xlu0 %2443
        %v2445 = vmax.f32 %v1953, %v1955
        %v2446 = vmax.f32 %v2445, %v2216
        %v2447 = vmax.f32 %v2446, %v2218
        %2448 = vmax.xlane.f32.xlu0 %v2447
        %v2449 = vpop.xlane.xlu0 %2448
        %v2450 = vmax.f32 %v1959, %v1961
        %v2451 = vmax.f32 %v2450, %v2222
        %v2452 = vmax.f32 %v2451, %v2224
        %2453 = vmax.xlane.f32.xlu0 %v2452
        %v2454 = vpop.xlane.xlu0 %2453
        %v2455 = vmax.f32 %v1963, %v1965
        %v2456 = vmax.f32 %v2455, %v2226
        %v2457 = vmax.f32 %v2456, %v2228
        %2458 = vmax.xlane.f32.xlu0 %v2457
        %v2459 = vpop.xlane.xlu0 %2458
        %v2460 = vmax.f32 %v1969, %v1971
        %v2461 = vmax.f32 %v2460, %v2232
        %v2462 = vmax.f32 %v2461, %v2234
        %2463 = vmax.xlane.f32.xlu0 %v2462
        %v2464 = vpop.xlane.xlu0 %2463
        %v2465 = vmax.f32 %v1973, %v1975
        %v2466 = vmax.f32 %v2465, %v2236
        %v2467 = vmax.f32 %v2466, %v2238
        %2468 = vmax.xlane.f32.xlu0 %v2467
        %v2469 = vpop.xlane.xlu0 %2468
        %v2470 = vmax.f32 %v1979, %v1981
        %v2471 = vmax.f32 %v2470, %v2242
        %v2472 = vmax.f32 %v2471, %v2244
        %2473 = vmax.xlane.f32.xlu0 %v2472
        %v2474 = vpop.xlane.xlu0 %2473
        %v2475 = vmax.f32 %v1983, %v1985
        %v2476 = vmax.f32 %v2475, %v2246
        %v2477 = vmax.f32 %v2476, %v2248
        %2478 = vmax.xlane.f32.xlu0 %v2477
        %v2479 = vpop.xlane.xlu0 %2478
        %v2480 = vmax.f32 %v1989, %v1991
        %v2481 = vmax.f32 %v2480, %v2252
        %v2482 = vmax.f32 %v2481, %v2254
        %2483 = vmax.xlane.f32.xlu0 %v2482
        %v2484 = vpop.xlane.xlu0 %2483
        %v2485 = vmax.f32 %v1993, %v1995
        %v2486 = vmax.f32 %v2485, %v2256
        %v2487 = vmax.f32 %v2486, %v2258
        %2488 = vmax.xlane.f32.xlu0 %v2487
        %v2489 = vpop.xlane.xlu0 %2488
        %v2490 = vmax.f32 %v1999, %v2001
        %v2491 = vmax.f32 %v2490, %v2262
        %v2492 = vmax.f32 %v2491, %v2264
        %2493 = vmax.xlane.f32.xlu0 %v2492
        %v2494 = vpop.xlane.xlu0 %2493
        %v2495 = vmax.f32 %v2003, %v2005
        %v2496 = vmax.f32 %v2495, %v2266
        %v2497 = vmax.f32 %v2496, %v2268
        %2498 = vmax.xlane.f32.xlu0 %v2497
        %v2499 = vpop.xlane.xlu0 %2498
        %v2500 = vmax.f32 %v2009, %v2011
        %v2501 = vmax.f32 %v2500, %v2272
        %v2502 = vmax.f32 %v2501, %v2274
        %2503 = vmax.xlane.f32.xlu0 %v2502
        %v2504 = vpop.xlane.xlu0 %2503
        %v2505 = vmax.f32 %v2013, %v2015
        %v2506 = vmax.f32 %v2505, %v2276
        %v2507 = vmax.f32 %v2506, %v2278
        %2508 = vmax.xlane.f32.xlu0 %v2507
        %v2509 = vpop.xlane.xlu0 %2508
        %v2510 = vmax.f32 %v2019, %v2021
        %v2511 = vmax.f32 %v2510, %v2282
        %v2512 = vmax.f32 %v2511, %v2284
        %2513 = vmax.xlane.f32.xlu0 %v2512
        %v2514 = vpop.xlane.xlu0 %2513
        %v2515 = vmax.f32 %v2023, %v2025
        %v2516 = vmax.f32 %v2515, %v2286
        %v2517 = vmax.f32 %v2516, %v2288
        %2518 = vmax.xlane.f32.xlu0 %v2517
        %v2519 = vpop.xlane.xlu0 %2518
        %v2520 = vsub.f32 %v1799, %v2294
        %v2521 = vsub.f32 %v1801, %v2294
        %v2522 = vsub.f32 %v2062, %v2294
        %v2523 = vsub.f32 %v2064, %v2294
        %v2524 = vsub.f32 %v1803, %v2299
        %v2525 = vsub.f32 %v1805, %v2299
        %v2526 = vsub.f32 %v2066, %v2299
        %v2527 = vsub.f32 %v2068, %v2299
        %v2528 = vsub.f32 %v1809, %v2304
        %v2529 = vsub.f32 %v1811, %v2304
        %v2530 = vsub.f32 %v2072, %v2304
        %v2531 = vsub.f32 %v2074, %v2304
        %v2532 = vsub.f32 %v1813, %v2309
        %v2533 = vsub.f32 %v1815, %v2309
        %v2534 = vsub.f32 %v2076, %v2309
        %v2535 = vsub.f32 %v2078, %v2309
        %v2536 = vsub.f32 %v1819, %v2314
        %v2537 = vsub.f32 %v1821, %v2314
        %v2538 = vsub.f32 %v2082, %v2314
        %v2539 = vsub.f32 %v2084, %v2314
        %v2540 = vsub.f32 %v1823, %v2319
        %v2541 = vsub.f32 %v1825, %v2319
        %v2542 = vsub.f32 %v2086, %v2319
        %v2543 = vsub.f32 %v2088, %v2319
        %v2544 = vsub.f32 %v1829, %v2324
        %v2545 = vsub.f32 %v1831, %v2324
        %v2546 = vsub.f32 %v2092, %v2324
        %v2547 = vsub.f32 %v2094, %v2324
        %v2548 = vsub.f32 %v1833, %v2329
        %v2549 = vsub.f32 %v1835, %v2329
        %v2550 = vsub.f32 %v2096, %v2329
        %v2551 = vsub.f32 %v2098, %v2329
        %v2552 = vsub.f32 %v1839, %v2334
        %v2553 = vsub.f32 %v1841, %v2334
        %v2554 = vsub.f32 %v2102, %v2334
        %v2555 = vsub.f32 %v2104, %v2334
        %v2556 = vsub.f32 %v1843, %v2339
        %v2557 = vsub.f32 %v1845, %v2339
        %v2558 = vsub.f32 %v2106, %v2339
        %v2559 = vsub.f32 %v2108, %v2339
        %v2560 = vsub.f32 %v1849, %v2344
        %v2561 = vsub.f32 %v1851, %v2344
        %v2562 = vsub.f32 %v2112, %v2344
        %v2563 = vsub.f32 %v2114, %v2344
        %v2564 = vsub.f32 %v1853, %v2349
        %v2565 = vsub.f32 %v1855, %v2349
        %v2566 = vsub.f32 %v2116, %v2349
        %v2567 = vsub.f32 %v2118, %v2349
        %v2568 = vsub.f32 %v1859, %v2354
        %v2569 = vsub.f32 %v1861, %v2354
        %v2570 = vsub.f32 %v2122, %v2354
        %v2571 = vsub.f32 %v2124, %v2354
        %v2572 = vsub.f32 %v1863, %v2359
        %v2573 = vsub.f32 %v1865, %v2359
        %v2574 = vsub.f32 %v2126, %v2359
        %v2575 = vsub.f32 %v2128, %v2359
        %v2576 = vsub.f32 %v1869, %v2364
        %v2577 = vsub.f32 %v1871, %v2364
        %v2578 = vsub.f32 %v2132, %v2364
        %v2579 = vsub.f32 %v2134, %v2364
        %v2580 = vsub.f32 %v1873, %v2369
        %v2581 = vsub.f32 %v1875, %v2369
        %v2582 = vsub.f32 %v2136, %v2369
        %v2583 = vsub.f32 %v2138, %v2369
        %v2584 = vsub.f32 %v1879, %v2374
        %v2585 = vsub.f32 %v1881, %v2374
        %v2586 = vsub.f32 %v2142, %v2374
        %v2587 = vsub.f32 %v2144, %v2374
        %v2588 = vsub.f32 %v1883, %v2379
        %v2589 = vsub.f32 %v1885, %v2379
        %v2590 = vsub.f32 %v2146, %v2379
        %v2591 = vsub.f32 %v2148, %v2379
        %v2592 = vsub.f32 %v1889, %v2384
        %v2593 = vsub.f32 %v1891, %v2384
        %v2594 = vsub.f32 %v2152, %v2384
        %v2595 = vsub.f32 %v2154, %v2384
        %v2596 = vsub.f32 %v1893, %v2389
        %v2597 = vsub.f32 %v1895, %v2389
        %v2598 = vsub.f32 %v2156, %v2389
        %v2599 = vsub.f32 %v2158, %v2389
        %v2600 = vsub.f32 %v1899, %v2394
        %v2601 = vsub.f32 %v1901, %v2394
        %v2602 = vsub.f32 %v2162, %v2394
        %v2603 = vsub.f32 %v2164, %v2394
        %v2604 = vsub.f32 %v1903, %v2399
        %v2605 = vsub.f32 %v1905, %v2399
        %v2606 = vsub.f32 %v2166, %v2399
        %v2607 = vsub.f32 %v2168, %v2399
        %v2608 = vsub.f32 %v1909, %v2404
        %v2609 = vsub.f32 %v1911, %v2404
        %v2610 = vsub.f32 %v2172, %v2404
        %v2611 = vsub.f32 %v2174, %v2404
        %v2612 = vsub.f32 %v1913, %v2409
        %v2613 = vsub.f32 %v1915, %v2409
        %v2614 = vsub.f32 %v2176, %v2409
        %v2615 = vsub.f32 %v2178, %v2409
        %v2616 = vsub.f32 %v1919, %v2414
        %v2617 = vsub.f32 %v1921, %v2414
        %v2618 = vsub.f32 %v2182, %v2414
        %v2619 = vsub.f32 %v2184, %v2414
        %v2620 = vsub.f32 %v1923, %v2419
        %v2621 = vsub.f32 %v1925, %v2419
        %v2622 = vsub.f32 %v2186, %v2419
        %v2623 = vsub.f32 %v2188, %v2419
        %v2624 = vsub.f32 %v1929, %v2424
        %v2625 = vsub.f32 %v1931, %v2424
        %v2626 = vsub.f32 %v2192, %v2424
        %v2627 = vsub.f32 %v2194, %v2424
        %v2628 = vsub.f32 %v1933, %v2429
        %v2629 = vsub.f32 %v1935, %v2429
        %v2630 = vsub.f32 %v2196, %v2429
        %v2631 = vsub.f32 %v2198, %v2429
        %v2632 = vsub.f32 %v1939, %v2434
        %v2633 = vsub.f32 %v1941, %v2434
        %v2634 = vsub.f32 %v2202, %v2434
        %v2635 = vsub.f32 %v2204, %v2434
        %v2636 = vsub.f32 %v1943, %v2439
        %v2637 = vsub.f32 %v1945, %v2439
        %v2638 = vsub.f32 %v2206, %v2439
        %v2639 = vsub.f32 %v2208, %v2439
        %v2640 = vsub.f32 %v1949, %v2444
        %v2641 = vsub.f32 %v1951, %v2444
        %v2642 = vsub.f32 %v2212, %v2444
        %v2643 = vsub.f32 %v2214, %v2444
        %v2644 = vsub.f32 %v1953, %v2449
        %v2645 = vsub.f32 %v1955, %v2449
        %v2646 = vsub.f32 %v2216, %v2449
        %v2647 = vsub.f32 %v2218, %v2449
        %v2648 = vsub.f32 %v1959, %v2454
        %v2649 = vsub.f32 %v1961, %v2454
        %v2650 = vsub.f32 %v2222, %v2454
        %v2651 = vsub.f32 %v2224, %v2454
        %v2652 = vsub.f32 %v1963, %v2459
        %v2653 = vsub.f32 %v1965, %v2459
        %v2654 = vsub.f32 %v2226, %v2459
        %v2655 = vsub.f32 %v2228, %v2459
        %v2656 = vsub.f32 %v1969, %v2464
        %v2657 = vsub.f32 %v1971, %v2464
        %v2658 = vsub.f32 %v2232, %v2464
        %v2659 = vsub.f32 %v2234, %v2464
        %v2660 = vsub.f32 %v1973, %v2469
        %v2661 = vsub.f32 %v1975, %v2469
        %v2662 = vsub.f32 %v2236, %v2469
        %v2663 = vsub.f32 %v2238, %v2469
        %v2664 = vsub.f32 %v1979, %v2474
        %v2665 = vsub.f32 %v1981, %v2474
        %v2666 = vsub.f32 %v2242, %v2474
        %v2667 = vsub.f32 %v2244, %v2474
        %v2668 = vsub.f32 %v1983, %v2479
        %v2669 = vsub.f32 %v1985, %v2479
        %v2670 = vsub.f32 %v2246, %v2479
        %v2671 = vsub.f32 %v2248, %v2479
        %v2672 = vsub.f32 %v1989, %v2484
        %v2673 = vsub.f32 %v1991, %v2484
        %v2674 = vsub.f32 %v2252, %v2484
        %v2675 = vsub.f32 %v2254, %v2484
        %v2676 = vsub.f32 %v1993, %v2489
        %v2677 = vsub.f32 %v1995, %v2489
        %v2678 = vsub.f32 %v2256, %v2489
        %v2679 = vsub.f32 %v2258, %v2489
        %v2680 = vsub.f32 %v1999, %v2494
        %v2681 = vsub.f32 %v2001, %v2494
        %v2682 = vsub.f32 %v2262, %v2494
        %v2683 = vsub.f32 %v2264, %v2494
        %v2684 = vsub.f32 %v2003, %v2499
        %v2685 = vsub.f32 %v2005, %v2499
        %v2686 = vsub.f32 %v2266, %v2499
        %v2687 = vsub.f32 %v2268, %v2499
        %v2688 = vsub.f32 %v2009, %v2504
        %v2689 = vsub.f32 %v2011, %v2504
        %v2690 = vsub.f32 %v2272, %v2504
        %v2691 = vsub.f32 %v2274, %v2504
        %v2692 = vsub.f32 %v2013, %v2509
        %v2693 = vsub.f32 %v2015, %v2509
        %v2694 = vsub.f32 %v2276, %v2509
        %v2695 = vsub.f32 %v2278, %v2509
        %v2696 = vsub.f32 %v2019, %v2514
        %v2697 = vsub.f32 %v2021, %v2514
        %v2698 = vsub.f32 %v2282, %v2514
        %v2699 = vsub.f32 %v2284, %v2514
        %v2700 = vsub.f32 %v2023, %v2519
        %v2701 = vsub.f32 %v2025, %v2519
        %v2702 = vsub.f32 %v2286, %v2519
        %v2703 = vsub.f32 %v2288, %v2519
        %v2704 = vmul.f32 %v2520, 1.442695
        %v2705 = vpow.pop %v2704
        %v2706 = vmul.f32 %v2521, 1.442695
        %v2707 = vpow.pop %v2706
        %v2708 = vmul.f32 %v2522, 1.442695
        %v2709 = vpow.pop %v2708
        %v2710 = vmul.f32 %v2523, 1.442695
        %v2711 = vpow.pop %v2710
        %v2712 = vmul.f32 %v2524, 1.442695
        %v2713 = vpow.pop %v2712
        %v2714 = vmul.f32 %v2525, 1.442695
        %v2715 = vpow.pop %v2714
        %v2716 = vmul.f32 %v2526, 1.442695
        %v2717 = vpow.pop %v2716
        %v2718 = vmul.f32 %v2527, 1.442695
        %v2719 = vpow.pop %v2718
        %v2720 = vmul.f32 %v2528, 1.442695
        %v2721 = vpow.pop %v2720
        %v2722 = vmul.f32 %v2529, 1.442695
        %v2723 = vpow.pop %v2722
        %v2724 = vmul.f32 %v2530, 1.442695
        %v2725 = vpow.pop %v2724
        %v2726 = vmul.f32 %v2531, 1.442695
        %v2727 = vpow.pop %v2726
        %v2728 = vmul.f32 %v2532, 1.442695
        %v2729 = vpow.pop %v2728
        %v2730 = vmul.f32 %v2533, 1.442695
        %v2731 = vpow.pop %v2730
        %v2732 = vmul.f32 %v2534, 1.442695
        %v2733 = vpow.pop %v2732
        %v2734 = vmul.f32 %v2535, 1.442695
        %v2735 = vpow.pop %v2734
        %v2736 = vmul.f32 %v2536, 1.442695
        %v2737 = vpow.pop %v2736
        %v2738 = vmul.f32 %v2537, 1.442695
        %v2739 = vpow.pop %v2738
        %v2740 = vmul.f32 %v2538, 1.442695
        %v2741 = vpow.pop %v2740
        %v2742 = vmul.f32 %v2539, 1.442695
        %v2743 = vpow.pop %v2742
        %v2744 = vmul.f32 %v2540, 1.442695
        %v2745 = vpow.pop %v2744
        %v2746 = vmul.f32 %v2541, 1.442695
        %v2747 = vpow.pop %v2746
        %v2748 = vmul.f32 %v2542, 1.442695
        %v2749 = vpow.pop %v2748
        %v2750 = vmul.f32 %v2543, 1.442695
        %v2751 = vpow.pop %v2750
        %v2752 = vmul.f32 %v2544, 1.442695
        %v2753 = vpow.pop %v2752
        %v2754 = vmul.f32 %v2545, 1.442695
        %v2755 = vpow.pop %v2754
        %v2756 = vmul.f32 %v2546, 1.442695
        %v2757 = vpow.pop %v2756
        %v2758 = vmul.f32 %v2547, 1.442695
        %v2759 = vpow.pop %v2758
        %v2760 = vmul.f32 %v2548, 1.442695
        %v2761 = vpow.pop %v2760
        %v2762 = vmul.f32 %v2549, 1.442695
        %v2763 = vpow.pop %v2762
        %v2764 = vmul.f32 %v2550, 1.442695
        %v2765 = vpow.pop %v2764
        %v2766 = vmul.f32 %v2551, 1.442695
        %v2767 = vpow.pop %v2766
        %v2768 = vmul.f32 %v2552, 1.442695
        %v2769 = vpow.pop %v2768
        %v2770 = vmul.f32 %v2553, 1.442695
        %v2771 = vpow.pop %v2770
        %v2772 = vmul.f32 %v2554, 1.442695
        %v2773 = vpow.pop %v2772
        %v2774 = vmul.f32 %v2555, 1.442695
        %v2775 = vpow.pop %v2774
        %v2776 = vmul.f32 %v2556, 1.442695
        %v2777 = vpow.pop %v2776
        %v2778 = vmul.f32 %v2557, 1.442695
        %v2779 = vpow.pop %v2778
        %v2780 = vmul.f32 %v2558, 1.442695
        %v2781 = vpow.pop %v2780
        %v2782 = vmul.f32 %v2559, 1.442695
        %v2783 = vpow.pop %v2782
        %v2784 = vmul.f32 %v2560, 1.442695
        %v2785 = vpow.pop %v2784
        %v2786 = vmul.f32 %v2561, 1.442695
        %v2787 = vpow.pop %v2786
        %v2788 = vmul.f32 %v2562, 1.442695
        %v2789 = vpow.pop %v2788
        %v2790 = vmul.f32 %v2563, 1.442695
        %v2791 = vpow.pop %v2790
        %v2792 = vmul.f32 %v2564, 1.442695
        %v2793 = vpow.pop %v2792
        %v2794 = vmul.f32 %v2565, 1.442695
        %v2795 = vpow.pop %v2794
        %v2796 = vmul.f32 %v2566, 1.442695
        %v2797 = vpow.pop %v2796
        %v2798 = vmul.f32 %v2567, 1.442695
        %v2799 = vpow.pop %v2798
        %v2800 = vmul.f32 %v2568, 1.442695
        %v2801 = vpow.pop %v2800
        %v2802 = vmul.f32 %v2569, 1.442695
        %v2803 = vpow.pop %v2802
        %v2804 = vmul.f32 %v2570, 1.442695
        %v2805 = vpow.pop %v2804
        %v2806 = vmul.f32 %v2571, 1.442695
        %v2807 = vpow.pop %v2806
        %v2808 = vmul.f32 %v2572, 1.442695
        %v2809 = vpow.pop %v2808
        %v2810 = vmul.f32 %v2573, 1.442695
        %v2811 = vpow.pop %v2810
        %v2812 = vmul.f32 %v2574, 1.442695
        %v2813 = vpow.pop %v2812
        %v2814 = vmul.f32 %v2575, 1.442695
        %v2815 = vpow.pop %v2814
        %v2816 = vmul.f32 %v2576, 1.442695
        %v2817 = vpow.pop %v2816
        %v2818 = vmul.f32 %v2577, 1.442695
        %v2819 = vpow.pop %v2818
        %v2820 = vmul.f32 %v2578, 1.442695
        %v2821 = vpow.pop %v2820
        %v2822 = vmul.f32 %v2579, 1.442695
        %v2823 = vpow.pop %v2822
        %v2824 = vmul.f32 %v2580, 1.442695
        %v2825 = vpow.pop %v2824
        %v2826 = vmul.f32 %v2581, 1.442695
        %v2827 = vpow.pop %v2826
        %v2828 = vmul.f32 %v2582, 1.442695
        %v2829 = vpow.pop %v2828
        %v2830 = vmul.f32 %v2583, 1.442695
        %v2831 = vpow.pop %v2830
        %v2832 = vmul.f32 %v2584, 1.442695
        %v2833 = vpow.pop %v2832
        %v2834 = vmul.f32 %v2585, 1.442695
        %v2835 = vpow.pop %v2834
        %v2836 = vmul.f32 %v2586, 1.442695
        %v2837 = vpow.pop %v2836
        %v2838 = vmul.f32 %v2587, 1.442695
        %v2839 = vpow.pop %v2838
        %v2840 = vmul.f32 %v2588, 1.442695
        %v2841 = vpow.pop %v2840
        %v2842 = vmul.f32 %v2589, 1.442695
        %v2843 = vpow.pop %v2842
        %v2844 = vmul.f32 %v2590, 1.442695
        %v2845 = vpow.pop %v2844
        %v2846 = vmul.f32 %v2591, 1.442695
        %v2847 = vpow.pop %v2846
        %v2848 = vmul.f32 %v2592, 1.442695
        %v2849 = vpow.pop %v2848
        %v2850 = vmul.f32 %v2593, 1.442695
        %v2851 = vpow.pop %v2850
        %v2852 = vmul.f32 %v2594, 1.442695
        %v2853 = vpow.pop %v2852
        %v2854 = vmul.f32 %v2595, 1.442695
        %v2855 = vpow.pop %v2854
        %v2856 = vmul.f32 %v2596, 1.442695
        %v2857 = vpow.pop %v2856
        %v2858 = vmul.f32 %v2597, 1.442695
        %v2859 = vpow.pop %v2858
        %v2860 = vmul.f32 %v2598, 1.442695
        %v2861 = vpow.pop %v2860
        %v2862 = vmul.f32 %v2599, 1.442695
        %v2863 = vpow.pop %v2862
        %v2864 = vmul.f32 %v2600, 1.442695
        %v2865 = vpow.pop %v2864
        %v2866 = vmul.f32 %v2601, 1.442695
        %v2867 = vpow.pop %v2866
        %v2868 = vmul.f32 %v2602, 1.442695
        %v2869 = vpow.pop %v2868
        %v2870 = vmul.f32 %v2603, 1.442695
        %v2871 = vpow.pop %v2870
        %v2872 = vmul.f32 %v2604, 1.442695
        %v2873 = vpow.pop %v2872
        %v2874 = vmul.f32 %v2605, 1.442695
        %v2875 = vpow.pop %v2874
        %v2876 = vmul.f32 %v2606, 1.442695
        %v2877 = vpow.pop %v2876
        %v2878 = vmul.f32 %v2607, 1.442695
        %v2879 = vpow.pop %v2878
        %v2880 = vmul.f32 %v2608, 1.442695
        %v2881 = vpow.pop %v2880
        %v2882 = vmul.f32 %v2609, 1.442695
        %v2883 = vpow.pop %v2882
        %v2884 = vmul.f32 %v2610, 1.442695
        %v2885 = vpow.pop %v2884
        %v2886 = vmul.f32 %v2611, 1.442695
        %v2887 = vpow.pop %v2886
        %v2888 = vmul.f32 %v2612, 1.442695
        %v2889 = vpow.pop %v2888
        %v2890 = vmul.f32 %v2613, 1.442695
        %v2891 = vpow.pop %v2890
        %v2892 = vmul.f32 %v2614, 1.442695
        %v2893 = vpow.pop %v2892
        %v2894 = vmul.f32 %v2615, 1.442695
        %v2895 = vpow.pop %v2894
        %v2896 = vmul.f32 %v2616, 1.442695
        %v2897 = vpow.pop %v2896
        %v2898 = vmul.f32 %v2617, 1.442695
        %v2899 = vpow.pop %v2898
        %v2900 = vmul.f32 %v2618, 1.442695
        %v2901 = vpow.pop %v2900
        %v2902 = vmul.f32 %v2619, 1.442695
        %v2903 = vpow.pop %v2902
        %v2904 = vmul.f32 %v2620, 1.442695
        %v2905 = vpow.pop %v2904
        %v2906 = vmul.f32 %v2621, 1.442695
        %v2907 = vpow.pop %v2906
        %v2908 = vmul.f32 %v2622, 1.442695
        %v2909 = vpow.pop %v2908
        %v2910 = vmul.f32 %v2623, 1.442695
        %v2911 = vpow.pop %v2910
        %v2912 = vmul.f32 %v2624, 1.442695
        %v2913 = vpow.pop %v2912
        %v2914 = vmul.f32 %v2625, 1.442695
        %v2915 = vpow.pop %v2914
        %v2916 = vmul.f32 %v2626, 1.442695
        %v2917 = vpow.pop %v2916
        %v2918 = vmul.f32 %v2627, 1.442695
        %v2919 = vpow.pop %v2918
        %v2920 = vmul.f32 %v2628, 1.442695
        %v2921 = vpow.pop %v2920
        %v2922 = vmul.f32 %v2629, 1.442695
        %v2923 = vpow.pop %v2922
        %v2924 = vmul.f32 %v2630, 1.442695
        %v2925 = vpow.pop %v2924
        %v2926 = vmul.f32 %v2631, 1.442695
        %v2927 = vpow.pop %v2926
        %v2928 = vmul.f32 %v2632, 1.442695
        %v2929 = vpow.pop %v2928
        %v2930 = vmul.f32 %v2633, 1.442695
        %v2931 = vpow.pop %v2930
        %v2932 = vmul.f32 %v2634, 1.442695
        %v2933 = vpow.pop %v2932
        %v2934 = vmul.f32 %v2635, 1.442695
        %v2935 = vpow.pop %v2934
        %v2936 = vmul.f32 %v2636, 1.442695
        %v2937 = vpow.pop %v2936
        %v2938 = vmul.f32 %v2637, 1.442695
        %v2939 = vpow.pop %v2938
        %v2940 = vmul.f32 %v2638, 1.442695
        %v2941 = vpow.pop %v2940
        %v2942 = vmul.f32 %v2639, 1.442695
        %v2943 = vpow.pop %v2942
        %v2944 = vmul.f32 %v2640, 1.442695
        %v2945 = vpow.pop %v2944
        %v2946 = vmul.f32 %v2641, 1.442695
        %v2947 = vpow.pop %v2946
        %v2948 = vmul.f32 %v2642, 1.442695
        %v2949 = vpow.pop %v2948
        %v2950 = vmul.f32 %v2643, 1.442695
        %v2951 = vpow.pop %v2950
        %v2952 = vmul.f32 %v2644, 1.442695
        %v2953 = vpow.pop %v2952
        %v2954 = vmul.f32 %v2645, 1.442695
        %v2955 = vpow.pop %v2954
        %v2956 = vmul.f32 %v2646, 1.442695
        %v2957 = vpow.pop %v2956
        %v2958 = vmul.f32 %v2647, 1.442695
        %v2959 = vpow.pop %v2958
        %v2960 = vmul.f32 %v2648, 1.442695
        %v2961 = vpow.pop %v2960
        %v2962 = vmul.f32 %v2649, 1.442695
        %v2963 = vpow.pop %v2962
        %v2964 = vmul.f32 %v2650, 1.442695
        %v2965 = vpow.pop %v2964
        %v2966 = vmul.f32 %v2651, 1.442695
        %v2967 = vpow.pop %v2966
        %v2968 = vmul.f32 %v2652, 1.442695
        %v2969 = vpow.pop %v2968
        %v2970 = vmul.f32 %v2653, 1.442695
        %v2971 = vpow.pop %v2970
        %v2972 = vmul.f32 %v2654, 1.442695
        %v2973 = vpow.pop %v2972
        %v2974 = vmul.f32 %v2655, 1.442695
        %v2975 = vpow.pop %v2974
        %v2976 = vmul.f32 %v2656, 1.442695
        %v2977 = vpow.pop %v2976
        %v2978 = vmul.f32 %v2657, 1.442695
        %v2979 = vpow.pop %v2978
        %v2980 = vmul.f32 %v2658, 1.442695
        %v2981 = vpow.pop %v2980
        %v2982 = vmul.f32 %v2659, 1.442695
        %v2983 = vpow.pop %v2982
        %v2984 = vmul.f32 %v2660, 1.442695
        %v2985 = vpow.pop %v2984
        %v2986 = vmul.f32 %v2661, 1.442695
        %v2987 = vpow.pop %v2986
        %v2988 = vmul.f32 %v2662, 1.442695
        %v2989 = vpow.pop %v2988
        %v2990 = vmul.f32 %v2663, 1.442695
        %v2991 = vpow.pop %v2990
        %v2992 = vmul.f32 %v2664, 1.442695
        %v2993 = vpow.pop %v2992
        %v2994 = vmul.f32 %v2665, 1.442695
        %v2995 = vpow.pop %v2994
        %v2996 = vmul.f32 %v2666, 1.442695
        %v2997 = vpow.pop %v2996
        %v2998 = vmul.f32 %v2667, 1.442695
        %v2999 = vpow.pop %v2998
        %v3000 = vmul.f32 %v2668, 1.442695
        %v3001 = vpow.pop %v3000
        %v3002 = vmul.f32 %v2669, 1.442695
        %v3003 = vpow.pop %v3002
        %v3004 = vmul.f32 %v2670, 1.442695
        %v3005 = vpow.pop %v3004
        %v3006 = vmul.f32 %v2671, 1.442695
        %v3007 = vpow.pop %v3006
        %v3008 = vmul.f32 %v2672, 1.442695
        %v3009 = vpow.pop %v3008
        %v3010 = vmul.f32 %v2673, 1.442695
        %v3011 = vpow.pop %v3010
        %v3012 = vmul.f32 %v2674, 1.442695
        %v3013 = vpow.pop %v3012
        %v3014 = vmul.f32 %v2675, 1.442695
        %v3015 = vpow.pop %v3014
        %v3016 = vmul.f32 %v2676, 1.442695
        %v3017 = vpow.pop %v3016
        %v3018 = vmul.f32 %v2677, 1.442695
        %v3019 = vpow.pop %v3018
        %v3020 = vmul.f32 %v2678, 1.442695
        %v3021 = vpow.pop %v3020
        %v3022 = vmul.f32 %v2679, 1.442695
        %v3023 = vpow.pop %v3022
        %v3024 = vmul.f32 %v2680, 1.442695
        %v3025 = vpow.pop %v3024
        %v3026 = vmul.f32 %v2681, 1.442695
        %v3027 = vpow.pop %v3026
        %v3028 = vmul.f32 %v2682, 1.442695
        %v3029 = vpow.pop %v3028
        %v3030 = vmul.f32 %v2683, 1.442695
        %v3031 = vpow.pop %v3030
        %v3032 = vmul.f32 %v2684, 1.442695
        %v3033 = vpow.pop %v3032
        %v3034 = vmul.f32 %v2685, 1.442695
        %v3035 = vpow.pop %v3034
        %v3036 = vmul.f32 %v2686, 1.442695
        %v3037 = vpow.pop %v3036
        %v3038 = vmul.f32 %v2687, 1.442695
        %v3039 = vpow.pop %v3038
        %v3040 = vmul.f32 %v2688, 1.442695
        %v3041 = vpow.pop %v3040
        %v3042 = vmul.f32 %v2689, 1.442695
        %v3043 = vpow.pop %v3042
        %v3044 = vmul.f32 %v2690, 1.442695
        %v3045 = vpow.pop %v3044
        %v3046 = vmul.f32 %v2691, 1.442695
        %v3047 = vpow.pop %v3046
        %v3048 = vmul.f32 %v2692, 1.442695
        %v3049 = vpow.pop %v3048
        %v3050 = vmul.f32 %v2693, 1.442695
        %v3051 = vpow.pop %v3050
        %v3052 = vmul.f32 %v2694, 1.442695
        %v3053 = vpow.pop %v3052
        %v3054 = vmul.f32 %v2695, 1.442695
        %v3055 = vpow.pop %v3054
        %v3056 = vmul.f32 %v2696, 1.442695
        %v3057 = vpow.pop %v3056
        %v3058 = vmul.f32 %v2697, 1.442695
        %v3059 = vpow.pop %v3058
        %v3060 = vmul.f32 %v2698, 1.442695
        %v3061 = vpow.pop %v3060
        %v3062 = vmul.f32 %v2699, 1.442695
        %v3063 = vpow.pop %v3062
        %v3064 = vmul.f32 %v2700, 1.442695
        %v3065 = vpow.pop %v3064
        %v3066 = vmul.f32 %v2701, 1.442695
        %v3067 = vpow.pop %v3066
        %v3068 = vmul.f32 %v2702, 1.442695
        %v3069 = vpow.pop %v3068
        %v3070 = vmul.f32 %v2703, 1.442695
        %v3071 = vpow.pop %v3070
        %v3072 = vadd.f32 %v2705, %v2707
        %v3073 = vadd.f32 %v3072, %v2709
        %v3074 = vadd.f32 %v3073, %v2711
        %3075 = vadd.xlane.f32.xlu0 %v3074
        %v3076 = vpop.xlane.xlu0 %3075
        %v3077 = vadd.f32 %v2713, %v2715
        %v3078 = vadd.f32 %v3077, %v2717
        %v3079 = vadd.f32 %v3078, %v2719
        %3080 = vadd.xlane.f32.xlu0 %v3079
        %v3081 = vpop.xlane.xlu0 %3080
        %v3082 = vadd.f32 %v2721, %v2723
        %v3083 = vadd.f32 %v3082, %v2725
        %v3084 = vadd.f32 %v3083, %v2727
        %3085 = vadd.xlane.f32.xlu0 %v3084
        %v3086 = vpop.xlane.xlu0 %3085
        %v3087 = vadd.f32 %v2729, %v2731
        %v3088 = vadd.f32 %v3087, %v2733
        %v3089 = vadd.f32 %v3088, %v2735
        %3090 = vadd.xlane.f32.xlu0 %v3089
        %v3091 = vpop.xlane.xlu0 %3090
        %v3092 = vadd.f32 %v2737, %v2739
        %v3093 = vadd.f32 %v3092, %v2741
        %v3094 = vadd.f32 %v3093, %v2743
        %3095 = vadd.xlane.f32.xlu0 %v3094
        %v3096 = vpop.xlane.xlu0 %3095
        %v3097 = vadd.f32 %v2745, %v2747
        %v3098 = vadd.f32 %v3097, %v2749
        %v3099 = vadd.f32 %v3098, %v2751
        %3100 = vadd.xlane.f32.xlu0 %v3099
        %v3101 = vpop.xlane.xlu0 %3100
        %v3102 = vadd.f32 %v2753, %v2755
        %v3103 = vadd.f32 %v3102, %v2757
        %v3104 = vadd.f32 %v3103, %v2759
        %3105 = vadd.xlane.f32.xlu0 %v3104
        %v3106 = vpop.xlane.xlu0 %3105
        %v3107 = vadd.f32 %v2761, %v2763
        %v3108 = vadd.f32 %v3107, %v2765
        %v3109 = vadd.f32 %v3108, %v2767
        %3110 = vadd.xlane.f32.xlu0 %v3109
        %v3111 = vpop.xlane.xlu0 %3110
        %v3112 = vadd.f32 %v2769, %v2771
        %v3113 = vadd.f32 %v3112, %v2773
        %v3114 = vadd.f32 %v3113, %v2775
        %3115 = vadd.xlane.f32.xlu0 %v3114
        %v3116 = vpop.xlane.xlu0 %3115
        %v3117 = vadd.f32 %v2777, %v2779
        %v3118 = vadd.f32 %v3117, %v2781
        %v3119 = vadd.f32 %v3118, %v2783
        %3120 = vadd.xlane.f32.xlu0 %v3119
        %v3121 = vpop.xlane.xlu0 %3120
        %v3122 = vadd.f32 %v2785, %v2787
        %v3123 = vadd.f32 %v3122, %v2789
        %v3124 = vadd.f32 %v3123, %v2791
        %3125 = vadd.xlane.f32.xlu0 %v3124
        %v3126 = vpop.xlane.xlu0 %3125
        %v3127 = vadd.f32 %v2793, %v2795
        %v3128 = vadd.f32 %v3127, %v2797
        %v3129 = vadd.f32 %v3128, %v2799
        %3130 = vadd.xlane.f32.xlu0 %v3129
        %v3131 = vpop.xlane.xlu0 %3130
        %v3132 = vadd.f32 %v2801, %v2803
        %v3133 = vadd.f32 %v3132, %v2805
        %v3134 = vadd.f32 %v3133, %v2807
        %3135 = vadd.xlane.f32.xlu0 %v3134
        %v3136 = vpop.xlane.xlu0 %3135
        %v3137 = vadd.f32 %v2809, %v2811
        %v3138 = vadd.f32 %v3137, %v2813
        %v3139 = vadd.f32 %v3138, %v2815
        %3140 = vadd.xlane.f32.xlu0 %v3139
        %v3141 = vpop.xlane.xlu0 %3140
        %v3142 = vadd.f32 %v2817, %v2819
        %v3143 = vadd.f32 %v3142, %v2821
        %v3144 = vadd.f32 %v3143, %v2823
        %3145 = vadd.xlane.f32.xlu0 %v3144
        %v3146 = vpop.xlane.xlu0 %3145
        %v3147 = vadd.f32 %v2825, %v2827
        %v3148 = vadd.f32 %v3147, %v2829
        %v3149 = vadd.f32 %v3148, %v2831
        %3150 = vadd.xlane.f32.xlu0 %v3149
        %v3151 = vpop.xlane.xlu0 %3150
        %v3152 = vadd.f32 %v2833, %v2835
        %v3153 = vadd.f32 %v3152, %v2837
        %v3154 = vadd.f32 %v3153, %v2839
        %3155 = vadd.xlane.f32.xlu0 %v3154
        %v3156 = vpop.xlane.xlu0 %3155
        %v3157 = vadd.f32 %v2841, %v2843
        %v3158 = vadd.f32 %v3157, %v2845
        %v3159 = vadd.f32 %v3158, %v2847
        %3160 = vadd.xlane.f32.xlu0 %v3159
        %v3161 = vpop.xlane.xlu0 %3160
        %v3162 = vadd.f32 %v2849, %v2851
        %v3163 = vadd.f32 %v3162, %v2853
        %v3164 = vadd.f32 %v3163, %v2855
        %3165 = vadd.xlane.f32.xlu0 %v3164
        %v3166 = vpop.xlane.xlu0 %3165
        %v3167 = vadd.f32 %v2857, %v2859
        %v3168 = vadd.f32 %v3167, %v2861
        %v3169 = vadd.f32 %v3168, %v2863
        %3170 = vadd.xlane.f32.xlu0 %v3169
        %v3171 = vpop.xlane.xlu0 %3170
        %v3172 = vadd.f32 %v2865, %v2867
        %v3173 = vadd.f32 %v3172, %v2869
        %v3174 = vadd.f32 %v3173, %v2871
        %3175 = vadd.xlane.f32.xlu0 %v3174
        %v3176 = vpop.xlane.xlu0 %3175
        %v3177 = vadd.f32 %v2873, %v2875
        %v3178 = vadd.f32 %v3177, %v2877
        %v3179 = vadd.f32 %v3178, %v2879
        %3180 = vadd.xlane.f32.xlu0 %v3179
        %v3181 = vpop.xlane.xlu0 %3180
        %v3182 = vadd.f32 %v2881, %v2883
        %v3183 = vadd.f32 %v3182, %v2885
        %v3184 = vadd.f32 %v3183, %v2887
        %3185 = vadd.xlane.f32.xlu0 %v3184
        %v3186 = vpop.xlane.xlu0 %3185
        %v3187 = vadd.f32 %v2889, %v2891
        %v3188 = vadd.f32 %v3187, %v2893
        %v3189 = vadd.f32 %v3188, %v2895
        %3190 = vadd.xlane.f32.xlu0 %v3189
        %v3191 = vpop.xlane.xlu0 %3190
        %v3192 = vadd.f32 %v2897, %v2899
        %v3193 = vadd.f32 %v3192, %v2901
        %v3194 = vadd.f32 %v3193, %v2903
        %3195 = vadd.xlane.f32.xlu0 %v3194
        %v3196 = vpop.xlane.xlu0 %3195
        %v3197 = vadd.f32 %v2905, %v2907
        %v3198 = vadd.f32 %v3197, %v2909
        %v3199 = vadd.f32 %v3198, %v2911
        %3200 = vadd.xlane.f32.xlu0 %v3199
        %v3201 = vpop.xlane.xlu0 %3200
        %v3202 = vadd.f32 %v2913, %v2915
        %v3203 = vadd.f32 %v3202, %v2917
        %v3204 = vadd.f32 %v3203, %v2919
        %3205 = vadd.xlane.f32.xlu0 %v3204
        %v3206 = vpop.xlane.xlu0 %3205
        %v3207 = vadd.f32 %v2921, %v2923
        %v3208 = vadd.f32 %v3207, %v2925
        %v3209 = vadd.f32 %v3208, %v2927
        %3210 = vadd.xlane.f32.xlu0 %v3209
        %v3211 = vpop.xlane.xlu0 %3210
        %v3212 = vadd.f32 %v2929, %v2931
        %v3213 = vadd.f32 %v3212, %v2933
        %v3214 = vadd.f32 %v3213, %v2935
        %3215 = vadd.xlane.f32.xlu0 %v3214
        %v3216 = vpop.xlane.xlu0 %3215
        %v3217 = vadd.f32 %v2937, %v2939
        %v3218 = vadd.f32 %v3217, %v2941
        %v3219 = vadd.f32 %v3218, %v2943
        %3220 = vadd.xlane.f32.xlu0 %v3219
        %v3221 = vpop.xlane.xlu0 %3220
        %v3222 = vadd.f32 %v2945, %v2947
        %v3223 = vadd.f32 %v3222, %v2949
        %v3224 = vadd.f32 %v3223, %v2951
        %3225 = vadd.xlane.f32.xlu0 %v3224
        %v3226 = vpop.xlane.xlu0 %3225
        %v3227 = vadd.f32 %v2953, %v2955
        %v3228 = vadd.f32 %v3227, %v2957
        %v3229 = vadd.f32 %v3228, %v2959
        %3230 = vadd.xlane.f32.xlu0 %v3229
        %v3231 = vpop.xlane.xlu0 %3230
        %v3232 = vadd.f32 %v2961, %v2963
        %v3233 = vadd.f32 %v3232, %v2965
        %v3234 = vadd.f32 %v3233, %v2967
        %3235 = vadd.xlane.f32.xlu0 %v3234
        %v3236 = vpop.xlane.xlu0 %3235
        %v3237 = vadd.f32 %v2969, %v2971
        %v3238 = vadd.f32 %v3237, %v2973
        %v3239 = vadd.f32 %v3238, %v2975
        %3240 = vadd.xlane.f32.xlu0 %v3239
        %v3241 = vpop.xlane.xlu0 %3240
        %v3242 = vadd.f32 %v2977, %v2979
        %v3243 = vadd.f32 %v3242, %v2981
        %v3244 = vadd.f32 %v3243, %v2983
        %3245 = vadd.xlane.f32.xlu0 %v3244
        %v3246 = vpop.xlane.xlu0 %3245
        %v3247 = vadd.f32 %v2985, %v2987
        %v3248 = vadd.f32 %v3247, %v2989
        %v3249 = vadd.f32 %v3248, %v2991
        %3250 = vadd.xlane.f32.xlu0 %v3249
        %v3251 = vpop.xlane.xlu0 %3250
        %v3252 = vadd.f32 %v2993, %v2995
        %v3253 = vadd.f32 %v3252, %v2997
        %v3254 = vadd.f32 %v3253, %v2999
        %3255 = vadd.xlane.f32.xlu0 %v3254
        %v3256 = vpop.xlane.xlu0 %3255
        %v3257 = vadd.f32 %v3001, %v3003
        %v3258 = vadd.f32 %v3257, %v3005
        %v3259 = vadd.f32 %v3258, %v3007
        %3260 = vadd.xlane.f32.xlu0 %v3259
        %v3261 = vpop.xlane.xlu0 %3260
        %v3262 = vadd.f32 %v3009, %v3011
        %v3263 = vadd.f32 %v3262, %v3013
        %v3264 = vadd.f32 %v3263, %v3015
        %3265 = vadd.xlane.f32.xlu0 %v3264
        %v3266 = vpop.xlane.xlu0 %3265
        %v3267 = vadd.f32 %v3017, %v3019
        %v3268 = vadd.f32 %v3267, %v3021
        %v3269 = vadd.f32 %v3268, %v3023
        %3270 = vadd.xlane.f32.xlu0 %v3269
        %v3271 = vpop.xlane.xlu0 %3270
        %v3272 = vadd.f32 %v3025, %v3027
        %v3273 = vadd.f32 %v3272, %v3029
        %v3274 = vadd.f32 %v3273, %v3031
        %3275 = vadd.xlane.f32.xlu0 %v3274
        %v3276 = vpop.xlane.xlu0 %3275
        %v3277 = vadd.f32 %v3033, %v3035
        %v3278 = vadd.f32 %v3277, %v3037
        %v3279 = vadd.f32 %v3278, %v3039
        %3280 = vadd.xlane.f32.xlu0 %v3279
        %v3281 = vpop.xlane.xlu0 %3280
        %v3282 = vadd.f32 %v3041, %v3043
        %v3283 = vadd.f32 %v3282, %v3045
        %v3284 = vadd.f32 %v3283, %v3047
        %3285 = vadd.xlane.f32.xlu0 %v3284
        %v3286 = vpop.xlane.xlu0 %3285
        %v3287 = vadd.f32 %v3049, %v3051
        %v3288 = vadd.f32 %v3287, %v3053
        %v3289 = vadd.f32 %v3288, %v3055
        %3290 = vadd.xlane.f32.xlu0 %v3289
        %v3291 = vpop.xlane.xlu0 %3290
        %v3292 = vadd.f32 %v3057, %v3059
        %v3293 = vadd.f32 %v3292, %v3061
        %v3294 = vadd.f32 %v3293, %v3063
        %3295 = vadd.xlane.f32.xlu0 %v3294
        %v3296 = vpop.xlane.xlu0 %3295
        %v3297 = vadd.f32 %v3065, %v3067
        %v3298 = vadd.f32 %v3297, %v3069
        %v3299 = vadd.f32 %v3298, %v3071
        %3300 = vadd.xlane.f32.xlu0 %v3299
        %v3301 = vpop.xlane.xlu0 %3300
        %v3302 = vpack.c.bf16 %v2713, %v2705
        %v3303 = vpack.c.bf16 %v2715, %v2707
        %v3304 = vpack.c.bf16 %v2717, %v2709
        %v3305 = vpack.c.bf16 %v2719, %v2711
        %v3306 = vpack.c.bf16 %v2729, %v2721
        %v3307 = vpack.c.bf16 %v2731, %v2723
        %v3308 = vpack.c.bf16 %v2733, %v2725
        %v3309 = vpack.c.bf16 %v2735, %v2727
        %v3310 = vpack.c.bf16 %v2745, %v2737
        %v3311 = vpack.c.bf16 %v2747, %v2739
        %v3312 = vpack.c.bf16 %v2749, %v2741
        %v3313 = vpack.c.bf16 %v2751, %v2743
        %v3314 = vpack.c.bf16 %v2761, %v2753
        %v3315 = vpack.c.bf16 %v2763, %v2755
        %v3316 = vpack.c.bf16 %v2765, %v2757
        %v3317 = vpack.c.bf16 %v2767, %v2759
        %v3318 = vpack.c.bf16 %v2777, %v2769
        %v3319 = vpack.c.bf16 %v2779, %v2771
        %v3320 = vpack.c.bf16 %v2781, %v2773
        %v3321 = vpack.c.bf16 %v2783, %v2775
        %v3322 = vpack.c.bf16 %v2793, %v2785
        %v3323 = vpack.c.bf16 %v2795, %v2787
        %v3324 = vpack.c.bf16 %v2797, %v2789
        %v3325 = vpack.c.bf16 %v2799, %v2791
        %v3326 = vpack.c.bf16 %v2809, %v2801
        %v3327 = vpack.c.bf16 %v2811, %v2803
        %v3328 = vpack.c.bf16 %v2813, %v2805
        %v3329 = vpack.c.bf16 %v2815, %v2807
        %v3330 = vpack.c.bf16 %v2825, %v2817
        %v3331 = vpack.c.bf16 %v2827, %v2819
        %v3332 = vpack.c.bf16 %v2829, %v2821
        %v3333 = vpack.c.bf16 %v2831, %v2823
        %v3334 = vpack.c.bf16 %v2841, %v2833
        %v3335 = vpack.c.bf16 %v2843, %v2835
        %v3336 = vpack.c.bf16 %v2845, %v2837
        %v3337 = vpack.c.bf16 %v2847, %v2839
        %v3338 = vpack.c.bf16 %v2857, %v2849
        %v3339 = vpack.c.bf16 %v2859, %v2851
        %v3340 = vpack.c.bf16 %v2861, %v2853
        %v3341 = vpack.c.bf16 %v2863, %v2855
        %v3342 = vpack.c.bf16 %v2873, %v2865
        %v3343 = vpack.c.bf16 %v2875, %v2867
        %v3344 = vpack.c.bf16 %v2877, %v2869
        %v3345 = vpack.c.bf16 %v2879, %v2871
        %v3346 = vpack.c.bf16 %v2889, %v2881
        %v3347 = vpack.c.bf16 %v2891, %v2883
        %v3348 = vpack.c.bf16 %v2893, %v2885
        %v3349 = vpack.c.bf16 %v2895, %v2887
        %v3350 = vpack.c.bf16 %v2905, %v2897
        %v3351 = vpack.c.bf16 %v2907, %v2899
        %v3352 = vpack.c.bf16 %v2909, %v2901
        %v3353 = vpack.c.bf16 %v2911, %v2903
        %v3354 = vpack.c.bf16 %v2921, %v2913
        %v3355 = vpack.c.bf16 %v2923, %v2915
        %v3356 = vpack.c.bf16 %v2925, %v2917
        %v3357 = vpack.c.bf16 %v2927, %v2919
        %v3358 = vpack.c.bf16 %v2937, %v2929
        %v3359 = vpack.c.bf16 %v2939, %v2931
        %v3360 = vpack.c.bf16 %v2941, %v2933
        %v3361 = vpack.c.bf16 %v2943, %v2935
        %v3362 = vpack.c.bf16 %v2953, %v2945
        %v3363 = vpack.c.bf16 %v2955, %v2947
        %v3364 = vpack.c.bf16 %v2957, %v2949
        %v3365 = vpack.c.bf16 %v2959, %v2951
        %v3366 = vpack.c.bf16 %v2969, %v2961
        %v3367 = vpack.c.bf16 %v2971, %v2963
        %v3368 = vpack.c.bf16 %v2973, %v2965
        %v3369 = vpack.c.bf16 %v2975, %v2967
        %v3370 = vpack.c.bf16 %v2985, %v2977
        %v3371 = vpack.c.bf16 %v2987, %v2979
        %v3372 = vpack.c.bf16 %v2989, %v2981
        %v3373 = vpack.c.bf16 %v2991, %v2983
        %v3374 = vpack.c.bf16 %v3001, %v2993
        %v3375 = vpack.c.bf16 %v3003, %v2995
        %v3376 = vpack.c.bf16 %v3005, %v2997
        %v3377 = vpack.c.bf16 %v3007, %v2999
        %v3378 = vpack.c.bf16 %v3017, %v3009
        %v3379 = vpack.c.bf16 %v3019, %v3011
        %v3380 = vpack.c.bf16 %v3021, %v3013
        %v3381 = vpack.c.bf16 %v3023, %v3015
        %v3382 = vpack.c.bf16 %v3033, %v3025
        %v3383 = vpack.c.bf16 %v3035, %v3027
        %v3384 = vpack.c.bf16 %v3037, %v3029
        %v3385 = vpack.c.bf16 %v3039, %v3031
        %v3386 = vpack.c.bf16 %v3049, %v3041
        %v3387 = vpack.c.bf16 %v3051, %v3043
        %v3388 = vpack.c.bf16 %v3053, %v3045
        %v3389 = vpack.c.bf16 %v3055, %v3047
        %v3390 = vpack.c.bf16 %v3065, %v3057
        %v3391 = vpack.c.bf16 %v3067, %v3059
        %v3392 = vpack.c.bf16 %v3069, %v3061
        %v3393 = vpack.c.bf16 %v3071, %v3063
        %3394 = vmatprep.subr.bf16.mxu0 0
        %3395 = vmatpush1.bf16.msra.mxu0 %v1719
        %3396 = vmatprep.subr.bf16.mxu0 0
        %3397 = vmatpush1.bf16.msra.mxu0 %v1720
        %3398 = vmatprep.subr.bf16.mxu0 0
        %3399 = vmatpush1.bf16.msra.mxu0 %v1721
        %3400 = vmatprep.subr.bf16.mxu0 0
        %3401 = vmatpush1.bf16.msra.mxu0 %v1722
        %3402 = vmatprep.subr.bf16.mxu0 0
        %3403 = vmatpush1.bf16.msra.mxu0 %v1723
        %3404 = vmatprep.subr.bf16.mxu0 0
        %3405 = vmatpush1.bf16.msra.mxu0 %v1724
        %3406 = vmatprep.subr.bf16.mxu0 0
        %3407 = vmatpush1.bf16.msra.mxu0 %v1725
        %3408 = vmatprep.subr.bf16.mxu0 0
        %3409 = vmatpush1.bf16.msra.mxu0 %v1726
        %3410 = vmatprep.subr.bf16.mxu0 0
        %3411 = vmatpush1.bf16.msra.mxu0 %v1727
        %3412 = vmatprep.subr.bf16.mxu0 0
        %3413 = vmatpush1.bf16.msra.mxu0 %v1728
        %3414 = vmatprep.subr.bf16.mxu0 0
        %3415 = vmatpush1.bf16.msra.mxu0 %v1729
        %3416 = vmatprep.subr.bf16.mxu0 0
        %3417 = vmatpush1.bf16.msra.mxu0 %v1730
        %3418 = vmatprep.subr.bf16.mxu0 0
        %3419 = vmatpush1.bf16.msra.mxu0 %v1731
        %3420 = vmatprep.subr.bf16.mxu0 0
        %3421 = vmatpush1.bf16.msra.mxu0 %v1732
        %3422 = vmatprep.subr.bf16.mxu0 0
        %3423 = vmatpush1.bf16.msra.mxu0 %v1733
        %3424 = vmatprep.subr.bf16.mxu0 0
        %3425 = vmatpush1.bf16.msra.mxu0 %v1734
        %3426 = vmatprep.mubr.bf16.mxu0 %v3303
        %3427 = vmatmul.mubr.bf16.gmra.mrb[0].mxu0 %v3302
        %v3428 = vpop.f32.mrb[0].mxu0
        %v3429 = vadd.f32 0.0, %v3428
        %v3430 = vpop.f32.mrb[0].mxu0
        %v3431 = vpop.f32.mrb[0].mxu0
        %v3432 = vadd.f32 0.0, %v3431
        %v3433 = vpop.f32.mrb[0].mxu0
        %3434 = vmatprep.mubr.bf16.mxu0 %v3307
        %3435 = vmatmul.mubr.bf16.gmra.mrb[0].mxu0 %v3306
        %v3436 = vpop.f32.mrb[0].mxu0
        %v3437 = vadd.f32 0.0, %v3436
        %v3438 = vpop.f32.mrb[0].mxu0
        %v3439 = vpop.f32.mrb[0].mxu0
        %v3440 = vadd.f32 0.0, %v3439
        %v3441 = vpop.f32.mrb[0].mxu0
        %3442 = vmatprep.mubr.bf16.mxu0 %v3311
        %3443 = vmatmul.mubr.bf16.gmra.mrb[0].mxu0 %v3310
        %v3444 = vpop.f32.mrb[0].mxu0
        %v3445 = vadd.f32 0.0, %v3444
        %v3446 = vpop.f32.mrb[0].mxu0
        %v3447 = vpop.f32.mrb[0].mxu0
        %v3448 = vadd.f32 0.0, %v3447
        %v3449 = vpop.f32.mrb[0].mxu0
        %3450 = vmatprep.mubr.bf16.mxu0 %v3315
        %3451 = vmatmul.mubr.bf16.gmra.mrb[0].mxu0 %v3314
        %v3452 = vpop.f32.mrb[0].mxu0
        %v3453 = vadd.f32 0.0, %v3452
        %v3454 = vpop.f32.mrb[0].mxu0
        %v3455 = vpop.f32.mrb[0].mxu0
        %v3456 = vadd.f32 0.0, %v3455
        %v3457 = vpop.f32.mrb[0].mxu0
        %3458 = vmatprep.mubr.bf16.mxu0 %v3319
        %3459 = vmatmul.mubr.bf16.gmra.mrb[0].mxu0 %v3318
        %v3460 = vpop.f32.mrb[0].mxu0
        %v3461 = vadd.f32 0.0, %v3460
        %v3462 = vpop.f32.mrb[0].mxu0
        %v3463 = vpop.f32.mrb[0].mxu0
        %v3464 = vadd.f32 0.0, %v3463
        %v3465 = vpop.f32.mrb[0].mxu0
        %3466 = vmatprep.mubr.bf16.mxu0 %v3323
        %3467 = vmatmul.mubr.bf16.gmra.mrb[0].mxu0 %v3322
        %v3468 = vpop.f32.mrb[0].mxu0
        %v3469 = vadd.f32 0.0, %v3468
        %v3470 = vpop.f32.mrb[0].mxu0
        %v3471 = vpop.f32.mrb[0].mxu0
        %v3472 = vadd.f32 0.0, %v3471
        %v3473 = vpop.f32.mrb[0].mxu0
        %3474 = vmatprep.mubr.bf16.mxu0 %v3327
        %3475 = vmatmul.mubr.bf16.gmra.mrb[0].mxu0 %v3326
        %v3476 = vpop.f32.mrb[0].mxu0
        %v3477 = vadd.f32 0.0, %v3476
        %v3478 = vpop.f32.mrb[0].mxu0
        %v3479 = vpop.f32.mrb[0].mxu0
        %v3480 = vadd.f32 0.0, %v3479
        %v3481 = vpop.f32.mrb[0].mxu0
        %3482 = vmatprep.mubr.bf16.mxu0 %v3331
        %3483 = vmatmul.mubr.bf16.gmra.mrb[0].mxu0 %v3330
        %v3484 = vpop.f32.mrb[0].mxu0
        %v3485 = vadd.f32 0.0, %v3484
        %v3486 = vpop.f32.mrb[0].mxu0
        %v3487 = vpop.f32.mrb[0].mxu0
        %v3488 = vadd.f32 0.0, %v3487
        %v3489 = vpop.f32.mrb[0].mxu0
        %3490 = vmatprep.mubr.bf16.mxu0 %v3335
        %3491 = vmatmul.mubr.bf16.gmra.mrb[0].mxu0 %v3334
        %v3492 = vpop.f32.mrb[0].mxu0
        %v3493 = vadd.f32 0.0, %v3492
        %v3494 = vpop.f32.mrb[0].mxu0
        %v3495 = vpop.f32.mrb[0].mxu0
        %v3496 = vadd.f32 0.0, %v3495
        %v3497 = vpop.f32.mrb[0].mxu0
        %3498 = vmatprep.mubr.bf16.mxu0 %v3339
        %3499 = vmatmul.mubr.bf16.gmra.mrb[0].mxu0 %v3338
        %v3500 = vpop.f32.mrb[0].mxu0
        %v3501 = vadd.f32 0.0, %v3500
        %v3502 = vpop.f32.mrb[0].mxu0
        %v3503 = vpop.f32.mrb[0].mxu0
        %v3504 = vadd.f32 0.0, %v3503
        %v3505 = vpop.f32.mrb[0].mxu0
        %3506 = vmatprep.mubr.bf16.mxu0 %v3343
        %3507 = vmatmul.mubr.bf16.gmra.mrb[0].mxu0 %v3342
        %v3508 = vpop.f32.mrb[0].mxu0
        %v3509 = vadd.f32 0.0, %v3508
        %v3510 = vpop.f32.mrb[0].mxu0
        %v3511 = vpop.f32.mrb[0].mxu0
        %v3512 = vadd.f32 0.0, %v3511
        %v3513 = vpop.f32.mrb[0].mxu0
        %3514 = vmatprep.mubr.bf16.mxu0 %v3347
        %3515 = vmatmul.mubr.bf16.gmra.mrb[0].mxu0 %v3346
        %v3516 = vpop.f32.mrb[0].mxu0
        %v3517 = vadd.f32 0.0, %v3516
        %v3518 = vpop.f32.mrb[0].mxu0
        %v3519 = vpop.f32.mrb[0].mxu0
        %v3520 = vadd.f32 0.0, %v3519
        %v3521 = vpop.f32.mrb[0].mxu0
        %3522 = vmatprep.mubr.bf16.mxu0 %v3351
        %3523 = vmatmul.mubr.bf16.gmra.mrb[0].mxu0 %v3350
        %v3524 = vpop.f32.mrb[0].mxu0
        %v3525 = vadd.f32 0.0, %v3524
        %v3526 = vpop.f32.mrb[0].mxu0
        %v3527 = vpop.f32.mrb[0].mxu0
        %v3528 = vadd.f32 0.0, %v3527
        %v3529 = vpop.f32.mrb[0].mxu0
        %3530 = vmatprep.mubr.bf16.mxu0 %v3355
        %3531 = vmatmul.mubr.bf16.gmra.mrb[0].mxu0 %v3354
        %v3532 = vpop.f32.mrb[0].mxu0
        %v3533 = vadd.f32 0.0, %v3532
        %v3534 = vpop.f32.mrb[0].mxu0
        %v3535 = vpop.f32.mrb[0].mxu0
        %v3536 = vadd.f32 0.0, %v3535
        %v3537 = vpop.f32.mrb[0].mxu0
        %3538 = vmatprep.mubr.bf16.mxu0 %v3359
        %3539 = vmatmul.mubr.bf16.gmra.mrb[0].mxu0 %v3358
        %v3540 = vpop.f32.mrb[0].mxu0
        %v3541 = vadd.f32 0.0, %v3540
        %v3542 = vpop.f32.mrb[0].mxu0
        %v3543 = vpop.f32.mrb[0].mxu0
        %v3544 = vadd.f32 0.0, %v3543
        %v3545 = vpop.f32.mrb[0].mxu0
        %3546 = vmatprep.mubr.bf16.mxu0 %v3363
        %3547 = vmatmul.mubr.bf16.gmra.mrb[0].mxu0 %v3362
        %v3548 = vpop.f32.mrb[0].mxu0
        %v3549 = vadd.f32 0.0, %v3548
        %v3550 = vpop.f32.mrb[0].mxu0
        %v3551 = vpop.f32.mrb[0].mxu0
        %v3552 = vadd.f32 0.0, %v3551
        %v3553 = vpop.f32.mrb[0].mxu0
        %3554 = vmatprep.mubr.bf16.mxu0 %v3367
        %3555 = vmatmul.mubr.bf16.gmra.mrb[0].mxu0 %v3366
        %v3556 = vpop.f32.mrb[0].mxu0
        %v3557 = vadd.f32 0.0, %v3556
        %v3558 = vpop.f32.mrb[0].mxu0
        %v3559 = vpop.f32.mrb[0].mxu0
        %v3560 = vadd.f32 0.0, %v3559
        %v3561 = vpop.f32.mrb[0].mxu0
        %3562 = vmatprep.mubr.bf16.mxu0 %v3371
        %3563 = vmatmul.mubr.bf16.gmra.mrb[0].mxu0 %v3370
        %v3564 = vpop.f32.mrb[0].mxu0
        %v3565 = vadd.f32 0.0, %v3564
        %v3566 = vpop.f32.mrb[0].mxu0
        %v3567 = vpop.f32.mrb[0].mxu0
        %v3568 = vadd.f32 0.0, %v3567
        %v3569 = vpop.f32.mrb[0].mxu0
        %3570 = vmatprep.mubr.bf16.mxu0 %v3375
        %3571 = vmatmul.mubr.bf16.gmra.mrb[0].mxu0 %v3374
        %v3572 = vpop.f32.mrb[0].mxu0
        %v3573 = vadd.f32 0.0, %v3572
        %v3574 = vpop.f32.mrb[0].mxu0
        %v3575 = vpop.f32.mrb[0].mxu0
        %v3576 = vadd.f32 0.0, %v3575
        %v3577 = vpop.f32.mrb[0].mxu0
        %3578 = vmatprep.mubr.bf16.mxu0 %v3379
        %3579 = vmatmul.mubr.bf16.gmra.mrb[0].mxu0 %v3378
        %v3580 = vpop.f32.mrb[0].mxu0
        %v3581 = vadd.f32 0.0, %v3580
        %v3582 = vpop.f32.mrb[0].mxu0
        %v3583 = vpop.f32.mrb[0].mxu0
        %v3584 = vadd.f32 0.0, %v3583
        %v3585 = vpop.f32.mrb[0].mxu0
        %3586 = vmatprep.mubr.bf16.mxu0 %v3383
        %3587 = vmatmul.mubr.bf16.gmra.mrb[0].mxu0 %v3382
        %v3588 = vpop.f32.mrb[0].mxu0
        %v3589 = vadd.f32 0.0, %v3588
        %v3590 = vpop.f32.mrb[0].mxu0
        %v3591 = vpop.f32.mrb[0].mxu0
        %v3592 = vadd.f32 0.0, %v3591
        %v3593 = vpop.f32.mrb[0].mxu0
        %3594 = vmatprep.mubr.bf16.mxu0 %v3387
        %3595 = vmatmul.mubr.bf16.gmra.mrb[0].mxu0 %v3386
        %v3596 = vpop.f32.mrb[0].mxu0
        %v3597 = vadd.f32 0.0, %v3596
        %v3598 = vpop.f32.mrb[0].mxu0
        %v3599 = vpop.f32.mrb[0].mxu0
        %v3600 = vadd.f32 0.0, %v3599
        %v3601 = vpop.f32.mrb[0].mxu0
        %3602 = vmatprep.mubr.bf16.mxu0 %v3391
        %3603 = vmatmul.mubr.bf16.gmra.mrb[0].mxu0 %v3390
        %v3604 = vpop.f32.mrb[0].mxu0
        %v3605 = vadd.f32 0.0, %v3604
        %v3606 = vpop.f32.mrb[0].mxu0
        %v3607 = vpop.f32.mrb[0].mxu0
        %v3608 = vadd.f32 0.0, %v3607
        %v3609 = vpop.f32.mrb[0].mxu0
        %3610 = vdwg.mxu0
        %3611 = vmatprep.subr.bf16.mxu0 0
        %3612 = vmatpush1.bf16.msra.mxu0 %v1735
        %3613 = vmatprep.subr.bf16.mxu0 0
        %3614 = vmatpush1.bf16.msra.mxu0 %v1736
        %3615 = vmatprep.subr.bf16.mxu0 0
        %3616 = vmatpush1.bf16.msra.mxu0 %v1737
        %3617 = vmatprep.subr.bf16.mxu0 0
        %3618 = vmatpush1.bf16.msra.mxu0 %v1738
        %3619 = vmatprep.subr.bf16.mxu0 0
        %3620 = vmatpush1.bf16.msra.mxu0 %v1739
        %3621 = vmatprep.subr.bf16.mxu0 0
        %3622 = vmatpush1.bf16.msra.mxu0 %v1740
        %3623 = vmatprep.subr.bf16.mxu0 0
        %3624 = vmatpush1.bf16.msra.mxu0 %v1741
        %3625 = vmatprep.subr.bf16.mxu0 0
        %3626 = vmatpush1.bf16.msra.mxu0 %v1742
        %3627 = vmatprep.subr.bf16.mxu0 0
        %3628 = vmatpush1.bf16.msra.mxu0 %v1743
        %3629 = vmatprep.subr.bf16.mxu0 0
        %3630 = vmatpush1.bf16.msra.mxu0 %v1744
        %3631 = vmatprep.subr.bf16.mxu0 0
        %3632 = vmatpush1.bf16.msra.mxu0 %v1745
        %3633 = vmatprep.subr.bf16.mxu0 0
        %3634 = vmatpush1.bf16.msra.mxu0 %v1746
        %3635 = vmatprep.subr.bf16.mxu0 0
        %3636 = vmatpush1.bf16.msra.mxu0 %v1747
        %3637 = vmatprep.subr.bf16.mxu0 0
        %3638 = vmatpush1.bf16.msra.mxu0 %v1748
        %3639 = vmatprep.subr.bf16.mxu0 0
        %3640 = vmatpush1.bf16.msra.mxu0 %v1749
        %3641 = vmatprep.subr.bf16.mxu0 0
        %3642 = vmatpush1.bf16.msra.mxu0 %v1750
        %3643 = vmatprep.mubr.bf16.mxu0 %v3305
        %3644 = vmatmul.mubr.bf16.gmra.mrb[0].mxu0 %v3304
        %v3645 = vpop.f32.mrb[0].mxu0
        %v3646 = vadd.f32 %v3429, %v3645
        %v3647 = vpop.f32.mrb[0].mxu0
        %v3648 = vpop.f32.mrb[0].mxu0
        %v3649 = vadd.f32 %v3432, %v3648
        %v3650 = vpop.f32.mrb[0].mxu0
        %3651 = vmatprep.mubr.bf16.mxu0 %v3309
        %3652 = vmatmul.mubr.bf16.gmra.mrb[0].mxu0 %v3308
        %v3653 = vpop.f32.mrb[0].mxu0
        %v3654 = vadd.f32 %v3437, %v3653
        %v3655 = vpop.f32.mrb[0].mxu0
        %v3656 = vpop.f32.mrb[0].mxu0
        %v3657 = vadd.f32 %v3440, %v3656
        %v3658 = vpop.f32.mrb[0].mxu0
        %3659 = vmatprep.mubr.bf16.mxu0 %v3313
        %3660 = vmatmul.mubr.bf16.gmra.mrb[0].mxu0 %v3312
        %v3661 = vpop.f32.mrb[0].mxu0
        %v3662 = vadd.f32 %v3445, %v3661
        %v3663 = vpop.f32.mrb[0].mxu0
        %v3664 = vpop.f32.mrb[0].mxu0
        %v3665 = vadd.f32 %v3448, %v3664
        %v3666 = vpop.f32.mrb[0].mxu0
        %3667 = vmatprep.mubr.bf16.mxu0 %v3317
        %3668 = vmatmul.mubr.bf16.gmra.mrb[0].mxu0 %v3316
        %v3669 = vpop.f32.mrb[0].mxu0
        %v3670 = vadd.f32 %v3453, %v3669
        %v3671 = vpop.f32.mrb[0].mxu0
        %v3672 = vpop.f32.mrb[0].mxu0
        %v3673 = vadd.f32 %v3456, %v3672
        %v3674 = vpop.f32.mrb[0].mxu0
        %3675 = vmatprep.mubr.bf16.mxu0 %v3321
        %3676 = vmatmul.mubr.bf16.gmra.mrb[0].mxu0 %v3320
        %v3677 = vpop.f32.mrb[0].mxu0
        %v3678 = vadd.f32 %v3461, %v3677
        %v3679 = vpop.f32.mrb[0].mxu0
        %v3680 = vpop.f32.mrb[0].mxu0
        %v3681 = vadd.f32 %v3464, %v3680
        %v3682 = vpop.f32.mrb[0].mxu0
        %3683 = vmatprep.mubr.bf16.mxu0 %v3325
        %3684 = vmatmul.mubr.bf16.gmra.mrb[0].mxu0 %v3324
        %v3685 = vpop.f32.mrb[0].mxu0
        %v3686 = vadd.f32 %v3469, %v3685
        %v3687 = vpop.f32.mrb[0].mxu0
        %v3688 = vpop.f32.mrb[0].mxu0
        %v3689 = vadd.f32 %v3472, %v3688
        %v3690 = vpop.f32.mrb[0].mxu0
        %3691 = vmatprep.mubr.bf16.mxu0 %v3329
        %3692 = vmatmul.mubr.bf16.gmra.mrb[0].mxu0 %v3328
        %v3693 = vpop.f32.mrb[0].mxu0
        %v3694 = vadd.f32 %v3477, %v3693
        %v3695 = vpop.f32.mrb[0].mxu0
        %v3696 = vpop.f32.mrb[0].mxu0
        %v3697 = vadd.f32 %v3480, %v3696
        %v3698 = vpop.f32.mrb[0].mxu0
        %3699 = vmatprep.mubr.bf16.mxu0 %v3333
        %3700 = vmatmul.mubr.bf16.gmra.mrb[0].mxu0 %v3332
        %v3701 = vpop.f32.mrb[0].mxu0
        %v3702 = vadd.f32 %v3485, %v3701
        %v3703 = vpop.f32.mrb[0].mxu0
        %v3704 = vpop.f32.mrb[0].mxu0
        %v3705 = vadd.f32 %v3488, %v3704
        %v3706 = vpop.f32.mrb[0].mxu0
        %3707 = vmatprep.mubr.bf16.mxu0 %v3337
        %3708 = vmatmul.mubr.bf16.gmra.mrb[0].mxu0 %v3336
        %v3709 = vpop.f32.mrb[0].mxu0
        %v3710 = vadd.f32 %v3493, %v3709
        %v3711 = vpop.f32.mrb[0].mxu0
        %v3712 = vpop.f32.mrb[0].mxu0
        %v3713 = vadd.f32 %v3496, %v3712
        %v3714 = vpop.f32.mrb[0].mxu0
        %3715 = vmatprep.mubr.bf16.mxu0 %v3341
        %3716 = vmatmul.mubr.bf16.gmra.mrb[0].mxu0 %v3340
        %v3717 = vpop.f32.mrb[0].mxu0
        %v3718 = vadd.f32 %v3501, %v3717
        %v3719 = vpop.f32.mrb[0].mxu0
        %v3720 = vpop.f32.mrb[0].mxu0
        %v3721 = vadd.f32 %v3504, %v3720
        %v3722 = vpop.f32.mrb[0].mxu0
        %3723 = vmatprep.mubr.bf16.mxu0 %v3345
        %3724 = vmatmul.mubr.bf16.gmra.mrb[0].mxu0 %v3344
        %v3725 = vpop.f32.mrb[0].mxu0
        %v3726 = vadd.f32 %v3509, %v3725
        %v3727 = vpop.f32.mrb[0].mxu0
        %v3728 = vpop.f32.mrb[0].mxu0
        %v3729 = vadd.f32 %v3512, %v3728
        %v3730 = vpop.f32.mrb[0].mxu0
        %3731 = vmatprep.mubr.bf16.mxu0 %v3349
        %3732 = vmatmul.mubr.bf16.gmra.mrb[0].mxu0 %v3348
        %v3733 = vpop.f32.mrb[0].mxu0
        %v3734 = vadd.f32 %v3517, %v3733
        %v3735 = vpop.f32.mrb[0].mxu0
        %v3736 = vpop.f32.mrb[0].mxu0
        %v3737 = vadd.f32 %v3520, %v3736
        %v3738 = vpop.f32.mrb[0].mxu0
        %3739 = vmatprep.mubr.bf16.mxu0 %v3353
        %3740 = vmatmul.mubr.bf16.gmra.mrb[0].mxu0 %v3352
        %v3741 = vpop.f32.mrb[0].mxu0
        %v3742 = vadd.f32 %v3525, %v3741
        %v3743 = vpop.f32.mrb[0].mxu0
        %v3744 = vpop.f32.mrb[0].mxu0
        %v3745 = vadd.f32 %v3528, %v3744
        %v3746 = vpop.f32.mrb[0].mxu0
        %3747 = vmatprep.mubr.bf16.mxu0 %v3357
        %3748 = vmatmul.mubr.bf16.gmra.mrb[0].mxu0 %v3356
        %v3749 = vpop.f32.mrb[0].mxu0
        %v3750 = vadd.f32 %v3533, %v3749
        %v3751 = vpop.f32.mrb[0].mxu0
        %v3752 = vpop.f32.mrb[0].mxu0
        %v3753 = vadd.f32 %v3536, %v3752
        %v3754 = vpop.f32.mrb[0].mxu0
        %3755 = vmatprep.mubr.bf16.mxu0 %v3361
        %3756 = vmatmul.mubr.bf16.gmra.mrb[0].mxu0 %v3360
        %v3757 = vpop.f32.mrb[0].mxu0
        %v3758 = vadd.f32 %v3541, %v3757
        %v3759 = vpop.f32.mrb[0].mxu0
        %v3760 = vpop.f32.mrb[0].mxu0
        %v3761 = vadd.f32 %v3544, %v3760
        %v3762 = vpop.f32.mrb[0].mxu0
        %3763 = vmatprep.mubr.bf16.mxu0 %v3365
        %3764 = vmatmul.mubr.bf16.gmra.mrb[0].mxu0 %v3364
        %v3765 = vpop.f32.mrb[0].mxu0
        %v3766 = vadd.f32 %v3549, %v3765
        %v3767 = vpop.f32.mrb[0].mxu0
        %v3768 = vpop.f32.mrb[0].mxu0
        %v3769 = vadd.f32 %v3552, %v3768
        %v3770 = vpop.f32.mrb[0].mxu0
        %3771 = vmatprep.mubr.bf16.mxu0 %v3369
        %3772 = vmatmul.mubr.bf16.gmra.mrb[0].mxu0 %v3368
        %v3773 = vpop.f32.mrb[0].mxu0
        %v3774 = vadd.f32 %v3557, %v3773
        %v3775 = vpop.f32.mrb[0].mxu0
        %v3776 = vpop.f32.mrb[0].mxu0
        %v3777 = vadd.f32 %v3560, %v3776
        %v3778 = vpop.f32.mrb[0].mxu0
        %3779 = vmatprep.mubr.bf16.mxu0 %v3373
        %3780 = vmatmul.mubr.bf16.gmra.mrb[0].mxu0 %v3372
        %v3781 = vpop.f32.mrb[0].mxu0
        %v3782 = vadd.f32 %v3565, %v3781
        %v3783 = vpop.f32.mrb[0].mxu0
        %v3784 = vpop.f32.mrb[0].mxu0
        %v3785 = vadd.f32 %v3568, %v3784
        %v3786 = vpop.f32.mrb[0].mxu0
        %3787 = vmatprep.mubr.bf16.mxu0 %v3377
        %3788 = vmatmul.mubr.bf16.gmra.mrb[0].mxu0 %v3376
        %v3789 = vpop.f32.mrb[0].mxu0
        %v3790 = vadd.f32 %v3573, %v3789
        %v3791 = vpop.f32.mrb[0].mxu0
        %v3792 = vpop.f32.mrb[0].mxu0
        %v3793 = vadd.f32 %v3576, %v3792
        %v3794 = vpop.f32.mrb[0].mxu0
        %3795 = vmatprep.mubr.bf16.mxu0 %v3381
        %3796 = vmatmul.mubr.bf16.gmra.mrb[0].mxu0 %v3380
        %v3797 = vpop.f32.mrb[0].mxu0
        %v3798 = vadd.f32 %v3581, %v3797
        %v3799 = vpop.f32.mrb[0].mxu0
        %v3800 = vpop.f32.mrb[0].mxu0
        %v3801 = vadd.f32 %v3584, %v3800
        %v3802 = vpop.f32.mrb[0].mxu0
        %3803 = vmatprep.mubr.bf16.mxu0 %v3385
        %3804 = vmatmul.mubr.bf16.gmra.mrb[0].mxu0 %v3384
        %v3805 = vpop.f32.mrb[0].mxu0
        %v3806 = vadd.f32 %v3589, %v3805
        %v3807 = vpop.f32.mrb[0].mxu0
        %v3808 = vpop.f32.mrb[0].mxu0
        %v3809 = vadd.f32 %v3592, %v3808
        %v3810 = vpop.f32.mrb[0].mxu0
        %3811 = vmatprep.mubr.bf16.mxu0 %v3389
        %3812 = vmatmul.mubr.bf16.gmra.mrb[0].mxu0 %v3388
        %v3813 = vpop.f32.mrb[0].mxu0
        %v3814 = vadd.f32 %v3597, %v3813
        %v3815 = vpop.f32.mrb[0].mxu0
        %v3816 = vpop.f32.mrb[0].mxu0
        %v3817 = vadd.f32 %v3600, %v3816
        %v3818 = vpop.f32.mrb[0].mxu0
        %3819 = vmatprep.mubr.bf16.mxu0 %v3393
        %3820 = vmatmul.mubr.bf16.gmra.mrb[0].mxu0 %v3392
        %v3821 = vpop.f32.mrb[0].mxu0
        %v3822 = vadd.f32 %v3605, %v3821
        %v3823 = vpop.f32.mrb[0].mxu0
        %v3824 = vpop.f32.mrb[0].mxu0
        %v3825 = vadd.f32 %v3608, %v3824
        %v3826 = vpop.f32.mrb[0].mxu0
        %3827 = vdwg.mxu0
        %v3828 = vrcp.pop %v3076
        %v3829 = vrcp.pop %v3081
        %v3830 = vrcp.pop %v3086
        %v3831 = vrcp.pop %v3091
        %v3832 = vrcp.pop %v3096
        %v3833 = vrcp.pop %v3101
        %v3834 = vrcp.pop %v3106
        %v3835 = vrcp.pop %v3111
        %v3836 = vrcp.pop %v3116
        %v3837 = vrcp.pop %v3121
        %v3838 = vrcp.pop %v3126
        %v3839 = vrcp.pop %v3131
        %v3840 = vrcp.pop %v3136
        %v3841 = vrcp.pop %v3141
        %v3842 = vrcp.pop %v3146
        %v3843 = vrcp.pop %v3151
        %v3844 = vrcp.pop %v3156
        %v3845 = vrcp.pop %v3161
        %v3846 = vrcp.pop %v3166
        %v3847 = vrcp.pop %v3171
        %v3848 = vrcp.pop %v3176
        %v3849 = vrcp.pop %v3181
        %v3850 = vrcp.pop %v3186
        %v3851 = vrcp.pop %v3191
        %v3852 = vrcp.pop %v3196
        %v3853 = vrcp.pop %v3201
        %v3854 = vrcp.pop %v3206
        %v3855 = vrcp.pop %v3211
        %v3856 = vrcp.pop %v3216
        %v3857 = vrcp.pop %v3221
        %v3858 = vrcp.pop %v3226
        %v3859 = vrcp.pop %v3231
        %v3860 = vrcp.pop %v3236
        %v3861 = vrcp.pop %v3241
        %v3862 = vrcp.pop %v3246
        %v3863 = vrcp.pop %v3251
        %v3864 = vrcp.pop %v3256
        %v3865 = vrcp.pop %v3261
        %v3866 = vrcp.pop %v3266
        %v3867 = vrcp.pop %v3271
        %v3868 = vrcp.pop %v3276
        %v3869 = vrcp.pop %v3281
        %v3870 = vrcp.pop %v3286
        %v3871 = vrcp.pop %v3291
        %v3872 = vrcp.pop %v3296
        %v3873 = vrcp.pop %v3301
        %v3874 = vmul.f32 %v3646, %v3828
        %v3875 = vmul.f32 %v3649, %v3829
        %v3876 = vmul.f32 %v3654, %v3830
        %v3877 = vmul.f32 %v3657, %v3831
        %v3878 = vmul.f32 %v3662, %v3832
        %v3879 = vmul.f32 %v3665, %v3833
        %v3880 = vmul.f32 %v3670, %v3834
        %v3881 = vmul.f32 %v3673, %v3835
        %v3882 = vmul.f32 %v3678, %v3836
        %v3883 = vmul.f32 %v3681, %v3837
        %v3884 = vmul.f32 %v3686, %v3838
        %v3885 = vmul.f32 %v3689, %v3839
        %v3886 = vmul.f32 %v3694, %v3840
        %v3887 = vmul.f32 %v3697, %v3841
        %v3888 = vmul.f32 %v3702, %v3842
        %v3889 = vmul.f32 %v3705, %v3843
        %v3890 = vmul.f32 %v3710, %v3844
        %v3891 = vmul.f32 %v3713, %v3845
        %v3892 = vmul.f32 %v3718, %v3846
        %v3893 = vmul.f32 %v3721, %v3847
        %v3894 = vmul.f32 %v3726, %v3848
        %v3895 = vmul.f32 %v3729, %v3849
        %v3896 = vmul.f32 %v3734, %v3850
        %v3897 = vmul.f32 %v3737, %v3851
        %v3898 = vmul.f32 %v3742, %v3852
        %v3899 = vmul.f32 %v3745, %v3853
        %v3900 = vmul.f32 %v3750, %v3854
        %v3901 = vmul.f32 %v3753, %v3855
        %v3902 = vmul.f32 %v3758, %v3856
        %v3903 = vmul.f32 %v3761, %v3857
        %v3904 = vmul.f32 %v3766, %v3858
        %v3905 = vmul.f32 %v3769, %v3859
        %v3906 = vmul.f32 %v3774, %v3860
        %v3907 = vmul.f32 %v3777, %v3861
        %v3908 = vmul.f32 %v3782, %v3862
        %v3909 = vmul.f32 %v3785, %v3863
        %v3910 = vmul.f32 %v3790, %v3864
        %v3911 = vmul.f32 %v3793, %v3865
        %v3912 = vmul.f32 %v3798, %v3866
        %v3913 = vmul.f32 %v3801, %v3867
        %v3914 = vmul.f32 %v3806, %v3868
        %v3915 = vmul.f32 %v3809, %v3869
        %v3916 = vmul.f32 %v3814, %v3870
        %v3917 = vmul.f32 %v3817, %v3871
        %v3918 = vmul.f32 %v3822, %v3872
        %v3919 = vmul.f32 %v3825, %v3873
        %3920 = vst [vmem:[%s335] sm:$0xff] %v3874
        %3921 = vst [vmem:[%s335 + $0x8] sm:$0xff] %v3875
        %3922 = vst [vmem:[%s335 + $0x10] sm:$0xff] %v3876
        %3923 = vst [vmem:[%s335 + $0x18] sm:$0xff] %v3877
        %3924 = vst [vmem:[%s335 + $0x20] sm:$0xff] %v3878
        %3925 = vst [vmem:[%s335 + $0x28] sm:$0xff] %v3879
        %3926 = vst [vmem:[%s335 + $0x30] sm:$0xff] %v3880
        %3927 = vst [vmem:[%s335 + $0x38] sm:$0xff] %v3881
        %3928 = vst [vmem:[%s335 + $0x40] sm:$0xff] %v3882
        %3929 = vst [vmem:[%s335 + $0x48] sm:$0xff] %v3883
        %3930 = vst [vmem:[%s335 + $0x50] sm:$0xff] %v3884
        %3931 = vst [vmem:[%s335 + $0x58] sm:$0xff] %v3885
        %3932 = vst [vmem:[%s335 + $0x60] sm:$0xff] %v3886
        %3933 = vst [vmem:[%s335 + $0x68] sm:$0xff] %v3887
        %3934 = vst [vmem:[%s335 + $0x70] sm:$0xff] %v3888
        %3935 = vst [vmem:[%s335 + $0x78] sm:$0xff] %v3889
        %3936 = vst [vmem:[%s335 + $0x80] sm:$0xff] %v3890
        %3937 = vst [vmem:[%s335 + $0x88] sm:$0xff] %v3891
        %3938 = vst [vmem:[%s335 + $0x90] sm:$0xff] %v3892
        %3939 = vst [vmem:[%s335 + $0x98] sm:$0xff] %v3893
        %3940 = vst [vmem:[%s335 + $0xa0] sm:$0xff] %v3894
        %3941 = vst [vmem:[%s335 + $0xa8] sm:$0xff] %v3895
        %3942 = vst [vmem:[%s335 + $0xb0] sm:$0xff] %v3896
        %3943 = vst [vmem:[%s335 + $0xb8] sm:$0xff] %v3897
        %3944 = vst [vmem:[%s335 + $0xc0] sm:$0xff] %v3898
        %3945 = vst [vmem:[%s335 + $0xc8] sm:$0xff] %v3899
        %3946 = vst [vmem:[%s335 + $0xd0] sm:$0xff] %v3900
        %3947 = vst [vmem:[%s335 + $0xd8] sm:$0xff] %v3901
        %3948 = vst [vmem:[%s335 + $0xe0] sm:$0xff] %v3902
        %3949 = vst [vmem:[%s335 + $0xe8] sm:$0xff] %v3903
        %3950 = vst [vmem:[%s335 + $0xf0] sm:$0xff] %v3904
        %3951 = vst [vmem:[%s335 + $0xf8] sm:$0xff] %v3905
        %3952 = vst [vmem:[%s335 + $0x100] sm:$0xff] %v3906
        %3953 = vst [vmem:[%s335 + $0x108] sm:$0xff] %v3907
        %3954 = vst [vmem:[%s335 + $0x110] sm:$0xff] %v3908
        %3955 = vst [vmem:[%s335 + $0x118] sm:$0xff] %v3909
        %3956 = vst [vmem:[%s335 + $0x120] sm:$0xff] %v3910
        %3957 = vst [vmem:[%s335 + $0x128] sm:$0xff] %v3911
        %3958 = vst [vmem:[%s335 + $0x130] sm:$0xff] %v3912
        %3959 = vst [vmem:[%s335 + $0x138] sm:$0xff] %v3913
        %3960 = vst [vmem:[%s335 + $0x140] sm:$0xff] %v3914
        %3961 = vst [vmem:[%s335 + $0x148] sm:$0xff] %v3915
        %3962 = vst [vmem:[%s335 + $0x150] sm:$0xff] %v3916
        %3963 = vst [vmem:[%s335 + $0x158] sm:$0xff] %v3917
        %3964 = vst [vmem:[%s335 + $0x160] sm:$0xff] %v3918
        %3965 = vst [vmem:[%s335 + $0x168] sm:$0xff] %v3919
        %s3966 = sand.u32 %s184, 1
        %s3967 = scalar_lea.sflag [#allocation5], %s3966
        %s3968 = sand.u32 %s184, 1
        %s3969 = smul.addr %s3968, 368
        %s3970 = scalar_lea.vmem [#allocation11], %s3969
        // Predicated region
        $region65: #{tpu_custom_call.1} parent=43 // pred_check
          %p3971 = pneg %p194
        $region66: #{tpu_custom_call.1} parent=43 // pred_check_branch
          %3973 = sbr.rel (%p3971) target = $region68
        $region67: #{tpu_custom_call.1} parent=43 // pred_region
          %s3974 = smul.u32 %s29, 2
          %s3975 = sadd.s32 %s3974, %s30
          %s3976 = smul.u32 46, %s3975
          %s3978 = ssub.s32 5888, 5888
          %3979 = vsyncadd %s3967, %s3978
          %s3980 = smul.addr %s3976, 128
          %s3981 = scalar_lea.hbm %s6, %s3980
          %s3982 = sshll.u32 %s3970, 4
          %s3983 = int_to_ptr.vmem [resolvable:$true] %s3982
          %3988 = dma.vmem_to_hbm [thread:$0]  %s3983, 5888, %s3981, %s3967, 128, 128, 8
        $region68: #{tpu_custom_call.1} parent=43 // pred_fallthru
          _
      $region44: #{tpu_custom_call.1} parent=5 // pred_fallthru
        _
      %p3989 = scmp.le.s32.totalorder 2, %s20
      // Predicated region
      $region69: #{tpu_custom_call.1} parent=5 // pred_check
        %p3990 = pneg %p3989
      $region70: #{tpu_custom_call.1} parent=5 // pred_check_branch
        %3992 = sbr.rel (%p3990) target = $region72
      $region71: #{tpu_custom_call.1} parent=5 // pred_region
        %s3993 = ssub.s32 %s20, 2
        // Predicated region
        $region73: #{tpu_custom_call.1} parent=71 // pred_check
          %p3994 = pneg %p200
        $region74: #{tpu_custom_call.1} parent=71 // pred_check_branch
          %3996 = sbr.rel (%p3994) target = $region76
        $region75: #{tpu_custom_call.1} parent=71 // pred_region
          %s3997 = sand.u32 %s185, 1
          %s3998 = scalar_lea.sflag [#allocation5], %s3997
          %s3999 = sand.u32 %s185, 1
          %s4000 = smul.addr %s3999, 368
          %s4001 = scalar_lea.vmem [#allocation11], %s4000
          %4002 = dma.done %s3998, 5888
        $region76: #{tpu_custom_call.1} parent=71 // pred_fallthru
          _
      $region72: #{tpu_custom_call.1} parent=5 // pred_fallthru
        _
    $region6: #{tpu_custom_call.1} parent=1 // loop_footer
      %s24 = sadd.s32 1, %s20
    $region7: #{tpu_custom_call.1} parent=1 // loop_footer_branch
      %19 = sbr.rel target = $region3
    $region8: #{tpu_custom_call.1} parent=1 // loop_exit
      _
    %4003 = vsyncpa [#allocation4], 1
    %s4004 = scalar_lea.sflag [#allocation4], 1
    %4005 = vsyncpa %s4004, 1
    %4006 = vsyncpa [#allocation7], 1
    %4007 = vsyncpa [#allocation10], 1
    %4008 = vsyncpa [#allocation5], 1
    %s4009 = scalar_lea.sflag [#allocation5], 1
    %4010 = vsyncpa %s4009, 1

</llo_original>
